<compile_context>
chip_gen: v7x
topology: tpu7x:2x2x1
jax: 0.10.0
libtpu: 0.0.40
codegen_flags: <defaults>
</compile_context>

<pallas_src>
from functools import partial

import numpy as np
import jax
import jax.numpy as jnp
from jax.experimental import pallas as pl
from jax.experimental.pallas import tpu as pltpu

# ----------------------------------------------------------------------------
# Configuration consistent with the PyTorch module.  The module implicitly forces
# conditioning_dim == 1 (since `_initial` is built with initial_noise_size=1 but
# fed xT = paths[:, -1, 1:]) and data_size == 1 (final reshape needs data_size+1
# == dim).
# ----------------------------------------------------------------------------
DATA_SIZE = 1                 # output dims, less time
NOISE_SIZE = 4                # Brownian motion dims (noise_type='general')
HIDDEN_SIZE = 16              # SDE hidden state
MLP_SIZE = 32                 # neurons per hidden MLP layer
NUM_LAYERS = 2                # -> NUM_LAYERS-1 hidden (mlp->mlp) layers
ORDER = 3                     # signature depth
CONDITIONING_DIM = 1          # conditioning path dims, less time
PATH_DIM = CONDITIONING_DIM + 1
SIG_SIZE = sum(PATH_DIM ** k for k in range(1, ORDER + 1))   # 'all_words' count
SIG_SCALE = 1.0
TSCALE = 1.0                  # tanh regularisation scale on MLP outputs
TANH = True
ACTIVATION = "lipswish"
NUM_HIDDEN = NUM_LAYERS - 1

FUSED = 2 * MLP_SIZE                               # drift + diffusion fused width
OUT_W = HIDDEN_SIZE + HIDDEN_SIZE * NOISE_SIZE     # fused output width (drift | diff cols)
MAX_TILE_L = 128                                   # max time steps per grid iteration


def _act(x):
    if ACTIVATION == "lipswish":
        # sigmoid via tanh: one EUP op + 2 VPU ops (cheaper than exp->add->divide)
        return 0.909 * x * (0.5 * jnp.tanh(0.5 * x) + 0.5)
    if ACTIVATION == "relu":
        return jnp.maximum(x, 0.0)
    return jnp.tanh(x)


# ----------------------------------------------------------------------------
# Pallas kernel: tile_l reversible-Heun steps per grid iteration.
# State (y, z) and the cached drift / diffusion-column evaluations persist in
# VMEM scratch across grid iterations.  The kernel emits the per-step hidden
# states; the readout Linear is applied once in the wrapper.
# ----------------------------------------------------------------------------
def _sde_chunk_kernel(dts_ref, dwb_ref, tw_ref, tw0_ref, h0_ref, b1c_ref,
                      w1h_ref, wh_ref, bh_ref, wo_ref, bo_ref,
                      out_ref,
                      y_sc, z_sc, f_sc, g_sc):
    c = pl.program_id(0)
    tile_l = dwb_ref.shape[0]
    H = HIDDEN_SIZE

    # loop-invariant loads: once per chunk, closed over by the time loop
    w1_h = w1h_ref[...]          # (H, 2M)
    b1c = b1c_ref[...]           # (B, 2M)   : c0 @ W1_c + b1   (hoisted per sample)
    wo = wo_ref[...]             # (2M, H + N*H) block-diagonal fused output layer
    bo = bo_ref[...]             # (1, H + N*H)
    whs = [wh_ref[l] for l in range(NUM_HIDDEN)]     # (2M, 2M) each
    bhs = [bh_ref[l] for l in range(NUM_HIDDEN)]     # (1, 2M) each

    def fused_mlp(tb, z):
        # one evaluation of BOTH drift and diffusion MLPs (block-diagonal fusion)
        h = jnp.dot(z, w1_h, preferred_element_type=jnp.float32) + tb + b1c
        h = _act(h)
        for l in range(NUM_HIDDEN):
            h = _act(jnp.dot(h, whs[l], preferred_element_type=jnp.float32) + bhs[l])
        out = jnp.dot(h, wo, preferred_element_type=jnp.float32) + bo
        if TANH:
            out = TSCALE * jnp.tanh(out)
        return out[:, :H], out[:, H:]        # drift (B,H), diffusion cols (B, N*H)

    def contract(gcols, dwb):
        # g(t, z) . dW with dW pre-broadcast to n-major/h-minor columns:
        # one VPU multiply + NOISE_SIZE-1 static lane-slice adds.
        prod = gcols * dwb
        acc = prod[:, 0:H]
        for n in range(1, NOISE_SIZE):
            acc = acc + prod[:, n * H:(n + 1) * H]
        return acc

    @pl.when(c == 0)
    def _():
        h0 = h0_ref[...]
        y_sc[...] = h0
        z_sc[...] = h0
        f0, g0 = fused_mlp(tw0_ref[...], h0)      # seed the f/g cache at (ts[0], h0)
        f_sc[...] = f0
        g_sc[...] = g0

    base = c * tile_l

    def body(i, carry):
        y, z, fc, gc = carry
        dt = dts_ref[base + i]                    # SMEM scalar
        dwb = dwb_ref[i]                          # (B, N*H) broadcast increments
        tb = tw_ref[i]                            # (1, 2M)  : t1 * W1_t (hoisted)
        # Reversible Heun (Kidger et al.), Stratonovich:
        g0 = contract(gc, dwb)
        z1 = 2.0 * y - z + fc * dt + g0
        f1, g1c = fused_mlp(tb, z1)
        g1 = contract(g1c, dwb)
        y1 = y + (0.5 * dt) * (fc + f1) + 0.5 * (g0 + g1)
        out_ref[i] = y1                           # hidden state; readout in wrapper
        return y1, z1, f1, g1c

    carry0 = (y_sc[...], z_sc[...], f_sc[...], g_sc[...])
    y, z, fc, gc = jax.lax.fori_loop(0, tile_l, body, carry0,
                                     unroll=min(8, tile_l))

    y_sc[...] = y
    z_sc[...] = z
    f_sc[...] = fc
    g_sc[...] = gc


def sde_generate(dts_pad, dWb, tw, tw0, h0, b1c, fused, *, tile_l):
    l_pad = dWb.shape[0]
    n_chunks = l_pad // tile_l
    B = h0.shape[0]
    NH = NOISE_SIZE * HIDDEN_SIZE

    def full_spec(shape):
        nd = len(shape)
        return pl.BlockSpec(shape, lambda c, _nd=nd: (0,) * _nd)

    in_specs = [
        # dt per step; fine in SMEM for moderate horizons.
        # TODO(synk): for L >~ 1e5 switch to per-chunk dt blocks (SMEM pads to pow2).
        pl.BlockSpec(memory_space=pltpu.MemorySpace.SMEM),                     # dts
        pl.BlockSpec((tile_l, B, NH), lambda c: (c, 0, 0)),                    # dW (broadcast)
        pl.BlockSpec((tile_l, 1, FUSED), lambda c: (c, 0, 0)),                 # t1*W1_t
        full_spec(tw0.shape),                                                  # ts[0]*W1_t
        full_spec(h0.shape), full_spec(b1c.shape),
        full_spec(fused["w1_h"].shape), full_spec(fused["wh"].shape),
        full_spec(fused["bh"].shape), full_spec(fused["wo"].shape),
        full_spec(fused["bo"].shape),
    ]
    out_spec = pl.BlockSpec((tile_l, B, HIDDEN_SIZE), lambda c: (c, 0, 0))

    return pl.pallas_call(
        _sde_chunk_kernel,
        out_shape=jax.ShapeDtypeStruct((l_pad, B, HIDDEN_SIZE), jnp.float32),
        grid_spec=pltpu.PrefetchScalarGridSpec(
            num_scalar_prefetch=0,
            grid=(n_chunks,),
            in_specs=in_specs,
            out_specs=out_spec,
            scratch_shapes=[pltpu.VMEM((B, HIDDEN_SIZE), jnp.float32),                # y
                            pltpu.VMEM((B, HIDDEN_SIZE), jnp.float32),                # z
                            pltpu.VMEM((B, HIDDEN_SIZE), jnp.float32),                # cached f
                            pltpu.VMEM((B, NOISE_SIZE * HIDDEN_SIZE), jnp.float32)],  # cached g cols
        ),
        compiler_params=pltpu.CompilerParams(dimension_semantics=("arbitrary",)),
    )(dts_pad, dWb, tw, tw0, h0, b1c,
      fused["w1_h"], fused["wh"], fused["bh"], fused["wo"], fused["bo"])


# ----------------------------------------------------------------------------
# Signature (signatory.signature, all_words) via Chen's identity — JAX glue.
# Sequential lax.scan fold of per-segment signatures (only the final signature
# is needed; no associative_scan, no -1 reshapes).
# ----------------------------------------------------------------------------
def signature_all_words(path, order):
    B, L, d = path.shape
    inc = path[:, 1:, :] - path[:, :-1, :]              # (B, n, d), n = L-1
    n = L - 1

    # per-segment signatures exp(dx): level k = dx^{(x)k} / k!
    levels = [inc]
    cur = inc
    for k in range(2, order + 1):
        cur = (cur[..., :, None] * inc[..., None, :]).reshape(B, n, d ** k) / k
        levels.append(cur)

    def chen(S, T):                                     # truncated tensor product
        out = []
        for k in range(1, order + 1):
            term = S[k - 1] + T[k - 1]
            for i in range(1, k):
                j = k - i
                prod = S[i - 1][..., :, None] * T[j - 1][..., None, :]
                term = term + prod.reshape(prod.shape[:-2] + (d ** k,))
            out.append(term)
        return tuple(out)

    init = tuple(lvl[:, 0, :] for lvl in levels)                        # (B, d^k)
    rest = tuple(jnp.swapaxes(lvl[:, 1:, :], 0, 1) for lvl in levels)   # (n-1, B, d^k)

    def step(carry, seg):
        return chen(carry, seg), None

    sig, _ = jax.lax.scan(step, init, rest)
    return jnp.concatenate(sig, axis=-1)                # (B, sum d^k)


def sig_scale_vec(dim, order, scale):
    return jnp.concatenate(
        [jnp.full((dim ** k,), scale ** k, jnp.float32) for k in range(1, order + 1)])


# ----------------------------------------------------------------------------
# Parameters (PyTorch-Linear-style uniform +-1/sqrt(fan_in)) and fused layout.
# ----------------------------------------------------------------------------
def init_params(key):
    ks = jax.random.split(key, 4)

    def linear(k, fan_in, fan_out):
        k1, k2 = jax.random.split(k)
        bound = 1.0 / float(np.sqrt(fan_in))
        W = jax.random.uniform(k1, (fan_in, fan_out), jnp.float32, -bound, bound)
        b = jax.random.uniform(k2, (1, fan_out), jnp.float32, -bound, bound)
        return W, b

    def mlp_params(k, in_size, out_size):
        kk = jax.random.split(k, NUM_LAYERS + 1)
        W1, b1 = linear(kk[0], in_size, MLP_SIZE)
        Wh, bh = [], []
        for l in range(NUM_HIDDEN):
            W, b = linear(kk[1 + l], MLP_SIZE, MLP_SIZE)
            Wh.append(W)
            bh.append(b)
        Wo, bo = linear(kk[-1], MLP_SIZE, out_size)
        return W1, b1, jnp.stack(Wh), jnp.stack(bh), Wo, bo

    Wi, bi = linear(ks[0], CONDITIONING_DIM + SIG_SIZE, HIDDEN_SIZE)      # _initial
    in_dim = 1 + HIDDEN_SIZE + SIG_SIZE
    fW1, fb1, fWh, fbh, fWo, fbo = mlp_params(ks[1], in_dim, HIDDEN_SIZE)               # drift
    gW1, gb1, gWh, gbh, gWo, gbo = mlp_params(ks[2], in_dim, HIDDEN_SIZE * NOISE_SIZE)  # diffusion
    Wr, br = linear(ks[3], HIDDEN_SIZE + SIG_SIZE, DATA_SIZE)             # _readout
    return dict(Wi=Wi, bi=bi,
                fW1=fW1, fb1=fb1, fWh=fWh, fbh=fbh, fWo=fWo, fbo=fbo,
                gW1=gW1, gb1=gb1, gWh=gWh, gbh=gbh, gWo=gWo, gbo=gbo,
                Wr=Wr, br=br)


def fuse_params(p):
    H, M, N = HIDDEN_SIZE, MLP_SIZE, NOISE_SIZE
    # _initial Linear on cat([xT, c0]) -> row split
    wi_x, wi_c = p["Wi"][:CONDITIONING_DIM], p["Wi"][CONDITIONING_DIM:]
    # fused first layer (drift cols | diffusion cols) of Linear(cat([t, x, c0]))
    w1 = jnp.concatenate([p["fW1"], p["gW1"]], axis=1)                   # (1+H+S, 2M)
    w1_t, w1_h, w1_c = w1[:1], w1[1:1 + H], w1[1 + H:]
    b1 = jnp.concatenate([p["fb1"], p["gb1"]], axis=1)                   # (1, 2M)

    def bdiag(a, b):
        za = jnp.zeros((a.shape[0], b.shape[1]), jnp.float32)
        zb = jnp.zeros((b.shape[0], a.shape[1]), jnp.float32)
        return jnp.concatenate([jnp.concatenate([a, za], axis=1),
                                jnp.concatenate([zb, b], axis=1)], axis=0)

    wh = jnp.stack([bdiag(p["fWh"][l], p["gWh"][l]) for l in range(NUM_HIDDEN)])
    bh = jnp.stack([jnp.concatenate([p["fbh"][l], p["gbh"][l]], axis=1)
                    for l in range(NUM_HIDDEN)])
    # torch .view(B, hidden, noise): diffusion output column h*N + n -> reorder to n*H + h
    gWo_r = p["gWo"].reshape(M, H, N).transpose(0, 2, 1).reshape(M, N * H)
    gbo_r = p["gbo"].reshape(1, H, N).transpose(0, 2, 1).reshape(1, N * H)
    wo = bdiag(p["fWo"], gWo_r)                                          # (2M, H + N*H)
    bo = jnp.concatenate([p["fbo"], gbo_r], axis=1)
    # _readout Linear on cat([h, c0]) -> row split
    rwh, rwc = p["Wr"][:H], p["Wr"][H:]
    return dict(wi_x=wi_x, wi_c=wi_c, bi=p["bi"],
                w1_t=w1_t, w1_h=w1_h, w1_c=w1_c, b1=b1,
                wh=wh, bh=bh, wo=wo, bo=bo,
                rwh=rwh, rwc=rwc, rb=p["br"])


# ----------------------------------------------------------------------------
# Forward pass (mirrors PathConditionalSigGenerator.forward)
# ----------------------------------------------------------------------------
@partial(jax.jit, static_argnums=(3,))
def forward(params, ts, paths, emp_size, noise_key):
    batch_size, _, dim = paths.shape
    length = ts.shape[0]
    assert dim == PATH_DIM and dim == DATA_SIZE + 1 and DATA_SIZE == 1

    f = fuse_params(params)
    ts = ts.astype(jnp.float32)

    paths = jnp.repeat(paths, emp_size, axis=0)                 # repeat_interleave
    B = paths.shape[0]
    xT = paths[:, -1, 1:]                                       # (B, conditioning_dim)
    uc0 = signature_all_words(paths, ORDER)                     # (B, sig_size)
    c0 = uc0 * sig_scale_vec(dim, ORDER, SIG_SCALE)

    # Loop-invariant c0 projections hoisted out of the kernel (computed once):
    h0 = xT @ f["wi_x"] + c0 @ f["wi_c"] + f["bi"]              # _initial Linear   (B, H)
    b1c = c0 @ f["w1_c"] + f["b1"]                              # first-layer bias  (B, 2M)
    roc = c0 @ f["rwc"] + f["rb"]                               # readout bias      (B, D)

    # Adaptive chunking: one grid step for short horizons, up to 128 steps/chunk
    # for long ones (padded tail steps have dt=0, dW=0; padding is end-only).
    nsteps = length - 1
    tile_l = min(MAX_TILE_L, ((nsteps + 7) // 8) * 8)
    n_chunks = -(-nsteps // tile_l)
    l_pad = n_chunks * tile_l

    dts = jnp.diff(ts)
    dts_pad = jnp.concatenate([dts, jnp.zeros((l_pad - nsteps,), jnp.float32)])
    ts_ext = jnp.concatenate(
        [ts, jnp.full((l_pad + 1 - length,), ts[-1], jnp.float32)])

    # Brownian increments per output interval (dt = diff(ts), dt_scale=1).
    # TODO(synk): torchsde's BrownianInterval RNG stream and dt_scale sub-stepping
    # are not reproduced; independent Gaussian increments are sampled per interval.
    dW = (jax.random.normal(noise_key, (l_pad, B, NOISE_SIZE), jnp.float32)
          * jnp.sqrt(jnp.maximum(dts_pad, 0.0))[:, None, None])
    # pre-broadcast to n-major / h-minor columns (matches diffusion column layout)
    dWb = jnp.repeat(dW, HIDDEN_SIZE, axis=-1)                  # (l_pad, B, N*H)

    # per-step t-dependent first-layer term, hoisted out of the kernel
    tw = (ts_ext[1:, None] * f["w1_t"])[:, None, :]             # (l_pad, 1, 2M)
    tw0 = ts[0] * f["w1_t"]                                     # (1, 2M)

    ys_states = sde_generate(dts_pad.astype(jnp.float32), dWb, tw, tw0,
                             h0.astype(jnp.float32), b1c.astype(jnp.float32),
                             f, tile_l=tile_l)                  # (l_pad, B, H)

    # Readout hoisted off the serial per-step chain: one batched matmul in XLA.
    ro = jnp.squeeze(ys_states @ f["rwh"], -1) + roc[:, 0][None, :]     # (l_pad, B)
    ys_rest = ro.T[:, :nsteps]                                          # (B, L-1)
    ys0 = h0 @ f["rwh"] + roc                                           # readout at ts[0]
    ys = jnp.concatenate([ys0, ys_rest], axis=1)[..., None]             # (B, L, 1)

    ts_exp = jnp.broadcast_to(ts[None, :, None], (B, length, 1))
    yhat = jnp.concatenate([ts_exp, ys], axis=-1)               # (B, L, 1 + data_size)
    # torchcde.linear_interpolation_coeffs is the identity for NaN-free inputs.
    return yhat.reshape(batch_size, emp_size, length, dim)


if __name__ == "__main__":
    key = jax.random.PRNGKey(0)
    kp, kpath, knoise = jax.random.split(key, 3)

    batch_size, emp_size = 2, 4       # B = batch_size*emp_size = 8 (full sublane group)
    length = 8
    path_len = 10

    params = init_params(kp)

    ts = jnp.linspace(0.0, 1.0, length).astype(jnp.float32)
    # conditioning paths: (batch, path_len, PATH_DIM), channel 0 = time
    t_path = jnp.linspace(0.0, 1.0, path_len).astype(jnp.float32)
    vals = jnp.cumsum(
        0.1 * jax.random.normal(kpath, (batch_size, path_len, CONDITIONING_DIM)), axis=1)
    paths = jnp.concatenate(
        [jnp.broadcast_to(t_path[None, :, None], (batch_size, path_len, 1)), vals],
        axis=-1).astype(jnp.float32)

    out = forward(params, ts, paths, emp_size, knoise)
    out = jax.block_until_ready(out)

    assert out.shape == (batch_size, emp_size, length, PATH_DIM), out.shape
    assert out.dtype == jnp.float32
    assert bool(jnp.all(jnp.isfinite(out)))
    print("KERNEL_OK")
</pallas_src>

<mosaic_0001>
module attributes {stable_mosaic.version = 11 : i64} {
  func.func @_sde_chunk_kernel(%arg0: i32, %arg1: memref<8xf32, #tpu.memory_space<smem>>, %arg2: memref<8x8x64xf32, #tpu.memory_space<vmem>>, %arg3: memref<8x1x64xf32, #tpu.memory_space<vmem>>, %arg4: memref<1x64xf32, #tpu.memory_space<vmem>>, %arg5: memref<8x16xf32, #tpu.memory_space<vmem>>, %arg6: memref<8x64xf32, #tpu.memory_space<vmem>>, %arg7: memref<16x64xf32, #tpu.memory_space<vmem>>, %arg8: memref<1x64x64xf32, #tpu.memory_space<vmem>>, %arg9: memref<1x1x64xf32, #tpu.memory_space<vmem>>, %arg10: memref<64x80xf32, #tpu.memory_space<vmem>>, %arg11: memref<1x80xf32, #tpu.memory_space<vmem>>, %arg12: memref<8x8x16xf32, #tpu.memory_space<vmem>>, %arg13: memref<8x16xf32, #tpu.memory_space<vmem>>, %arg14: memref<8x16xf32, #tpu.memory_space<vmem>>, %arg15: memref<8x16xf32, #tpu.memory_space<vmem>>, %arg16: memref<8x64xf32, #tpu.memory_space<vmem>>) attributes {dimension_semantics = [#tpu.dimension_semantics<arbitrary>], iteration_bounds = array<i64: 1>, scalar_prefetch = 0 : i64, scratch_operands = 4 : i64, tpu.core_type = #tpu.core_type<tc>, window_params = [{transform_indices = @transform_0, window_bounds = array<i64: 8>}, {transform_indices = @transform_1, window_bounds = array<i64: 8, 8, 64>}, {transform_indices = @transform_2, window_bounds = array<i64: 8, 1, 64>}, {pipeline_mode = #tpu.pipeline_mode<synchronous>, transform_indices = @transform_3, window_bounds = array<i64: 1, 64>}, {pipeline_mode = #tpu.pipeline_mode<synchronous>, transform_indices = @transform_4, window_bounds = array<i64: 8, 16>}, {pipeline_mode = #tpu.pipeline_mode<synchronous>, transform_indices = @transform_5, window_bounds = array<i64: 8, 64>}, {pipeline_mode = #tpu.pipeline_mode<synchronous>, transform_indices = @transform_6, window_bounds = array<i64: 16, 64>}, {pipeline_mode = #tpu.pipeline_mode<synchronous>, transform_indices = @transform_7, window_bounds = array<i64: 1, 64, 64>}, {pipeline_mode = #tpu.pipeline_mode<synchronous>, transform_indices = @transform_8, window_bounds = array<i64: 1, 1, 64>}, {pipeline_mode = #tpu.pipeline_mode<synchronous>, transform_indices = @transform_9, window_bounds = array<i64: 64, 80>}, {pipeline_mode = #tpu.pipeline_mode<synchronous>, transform_indices = @transform_10, window_bounds = array<i64: 1, 80>}, {transform_indices = @transform_11, window_bounds = array<i64: 8, 8, 16>}]} {
    %c0 = arith.constant 0 : index
    %c0_0 = arith.constant 0 : index
    %0 = vector.load %arg7[%c0, %c0_0] : memref<16x64xf32, #tpu.memory_space<vmem>>, vector<16x64xf32>
    %c0_1 = arith.constant 0 : index
    %c0_2 = arith.constant 0 : index
    %1 = vector.load %arg6[%c0_1, %c0_2] : memref<8x64xf32, #tpu.memory_space<vmem>>, vector<8x64xf32>
    %c0_3 = arith.constant 0 : index
    %c0_4 = arith.constant 0 : index
    %2 = vector.load %arg10[%c0_3, %c0_4] : memref<64x80xf32, #tpu.memory_space<vmem>>, vector<64x80xf32>
    %c0_5 = arith.constant 0 : index
    %c0_6 = arith.constant 0 : index
    %3 = vector.load %arg11[%c0_5, %c0_6] : memref<1x80xf32, #tpu.memory_space<vmem>>, vector<1x80xf32>
    %c0_7 = arith.constant 0 : index
    %c0_8 = arith.constant 0 : index
    %c0_9 = arith.constant 0 : index
    %4 = vector.load %arg8[%c0_7, %c0_8, %c0_9] : memref<1x64x64xf32, #tpu.memory_space<vmem>>, vector<1x64x64xf32>
    %5 = vector.shape_cast %4 : vector<1x64x64xf32> to vector<64x64xf32>
    %c0_10 = arith.constant 0 : index
    %c0_11 = arith.constant 0 : index
    %c0_12 = arith.constant 0 : index
    %6 = vector.load %arg9[%c0_10, %c0_11, %c0_12] : memref<1x1x64xf32, #tpu.memory_space<vmem>>, vector<1x1x64xf32>
    %7 = vector.shape_cast %6 : vector<1x1x64xf32> to vector<1x64xf32>
    %c0_i32 = arith.constant 0 : i32
    %8 = arith.cmpi eq, %arg0, %c0_i32 : i32
    %9 = arith.extui %8 : i1 to i32
    %c0_i32_13 = arith.constant 0 : i32
    %10 = arith.cmpi ne, %9, %c0_i32_13 : i32
    scf.if %10 {
      %c0_199 = arith.constant 0 : index
      %c0_200 = arith.constant 0 : index
      %660 = vector.load %arg5[%c0_199, %c0_200] : memref<8x16xf32, #tpu.memory_space<vmem>>, vector<8x16xf32>
      %c0_201 = arith.constant 0 : index
      %c0_202 = arith.constant 0 : index
      %661 = vector.load %arg13[%c0_201, %c0_202] : memref<8x16xf32, #tpu.memory_space<vmem>>, vector<8x16xf32>
      tpu.vector_store %arg13[%c0_201, %c0_202], %660 {strides = array<i32>} : memref<8x16xf32, #tpu.memory_space<vmem>>, vector<8x16xf32>,
      %c0_203 = arith.constant 0 : index
      %c0_204 = arith.constant 0 : index
      %662 = vector.load %arg14[%c0_203, %c0_204] : memref<8x16xf32, #tpu.memory_space<vmem>>, vector<8x16xf32>
      tpu.vector_store %arg14[%c0_203, %c0_204], %660 {strides = array<i32>} : memref<8x16xf32, #tpu.memory_space<vmem>>, vector<8x16xf32>,
      %c0_205 = arith.constant 0 : index
      %c0_206 = arith.constant 0 : index
      %663 = vector.load %arg4[%c0_205, %c0_206] : memref<1x64xf32, #tpu.memory_space<vmem>>, vector<1x64xf32>
      %cst_207 = arith.constant dense<0.000000e+00> : vector<8x64xf32>
      %664 = tpu.matmul %660, %0, %cst_207 {dimension_numbers = #tpu.dot_dimension_numbers<[1], [0], [0], [1], [0, 0, 1, 1], [], []>} : vector<8x16xf32>, vector<16x64xf32>, vector<8x64xf32> -> vector<8x64xf32>
      %665 = vector.broadcast %663 : vector<1x64xf32> to vector<8x64xf32>
      %666 = arith.addf %664, %665 : vector<8x64xf32>
      %667 = arith.addf %666, %1 : vector<8x64xf32>
      %cst_208 = arith.constant 0.908999979 : f32
      %668 = vector.broadcast %cst_208 : f32 to vector<8x64xf32>
      %669 = arith.mulf %668, %667 : vector<8x64xf32>
      %cst_209 = arith.constant 5.000000e-01 : f32
      %670 = vector.broadcast %cst_209 : f32 to vector<8x64xf32>
      %671 = arith.mulf %670, %667 : vector<8x64xf32>
      %672 = math.tanh %671 : vector<8x64xf32>
      %cst_210 = arith.constant 5.000000e-01 : f32
      %673 = vector.broadcast %cst_210 : f32 to vector<8x64xf32>
      %674 = arith.mulf %673, %672 : vector<8x64xf32>
      %cst_211 = arith.constant 5.000000e-01 : f32
      %675 = vector.broadcast %cst_211 : f32 to vector<8x64xf32>
      %676 = arith.addf %674, %675 : vector<8x64xf32>
      %677 = arith.mulf %669, %676 : vector<8x64xf32>
      %cst_212 = arith.constant dense<0.000000e+00> : vector<8x64xf32>
      %678 = tpu.matmul %677, %5, %cst_212 {dimension_numbers = #tpu.dot_dimension_numbers<[1], [0], [0], [1], [0, 0, 1, 1], [], []>} : vector<8x64xf32>, vector<64x64xf32>, vector<8x64xf32> -> vector<8x64xf32>
      %679 = vector.broadcast %7 : vector<1x64xf32> to vector<8x64xf32>
      %680 = arith.addf %678, %679 : vector<8x64xf32>
      %cst_213 = arith.constant 0.908999979 : f32
      %681 = vector.broadcast %cst_213 : f32 to vector<8x64xf32>
      %682 = arith.mulf %681, %680 : vector<8x64xf32>
      %cst_214 = arith.constant 5.000000e-01 : f32
      %683 = vector.broadcast %cst_214 : f32 to vector<8x64xf32>
      %684 = arith.mulf %683, %680 : vector<8x64xf32>
      %685 = math.tanh %684 : vector<8x64xf32>
      %cst_215 = arith.constant 5.000000e-01 : f32
      %686 = vector.broadcast %cst_215 : f32 to vector<8x64xf32>
      %687 = arith.mulf %686, %685 : vector<8x64xf32>
      %cst_216 = arith.constant 5.000000e-01 : f32
      %688 = vector.broadcast %cst_216 : f32 to vector<8x64xf32>
      %689 = arith.addf %687, %688 : vector<8x64xf32>
      %690 = arith.mulf %682, %689 : vector<8x64xf32>
      %cst_217 = arith.constant dense<0.000000e+00> : vector<8x80xf32>
      %691 = tpu.matmul %690, %2, %cst_217 {dimension_numbers = #tpu.dot_dimension_numbers<[1], [0], [0], [1], [0, 0, 1, 1], [], []>} : vector<8x64xf32>, vector<64x80xf32>, vector<8x80xf32> -> vector<8x80xf32>
      %692 = vector.broadcast %3 : vector<1x80xf32> to vector<8x80xf32>
      %693 = arith.addf %691, %692 : vector<8x80xf32>
      %694 = math.tanh %693 : vector<8x80xf32>
      %cst_218 = arith.constant 1.000000e+00 : f32
      %695 = vector.broadcast %cst_218 : f32 to vector<8x80xf32>
      %696 = arith.mulf %695, %694 : vector<8x80xf32>
      %697 = vector.extract_strided_slice %696 {offsets = [0, 0], sizes = [8, 16], strides = [1, 1]} : vector<8x80xf32> to vector<8x16xf32>
      %698 = vector.extract_strided_slice %696 {offsets = [0, 16], sizes = [8, 64], strides = [1, 1]} : vector<8x80xf32> to vector<8x64xf32>
      %c0_219 = arith.constant 0 : index
      %c0_220 = arith.constant 0 : index
      %699 = vector.load %arg15[%c0_219, %c0_220] : memref<8x16xf32, #tpu.memory_space<vmem>>, vector<8x16xf32>
      tpu.vector_store %arg15[%c0_219, %c0_220], %697 {strides = array<i32>} : memref<8x16xf32, #tpu.memory_space<vmem>>, vector<8x16xf32>,
      %c0_221 = arith.constant 0 : index
      %c0_222 = arith.constant 0 : index
      %700 = vector.load %arg16[%c0_221, %c0_222] : memref<8x64xf32, #tpu.memory_space<vmem>>, vector<8x64xf32>
      tpu.vector_store %arg16[%c0_221, %c0_222], %698 {strides = array<i32>} : memref<8x64xf32, #tpu.memory_space<vmem>>, vector<8x64xf32>,
    } else {
    }
    %c8_i32 = arith.constant 8 : i32
    %11 = arith.muli %arg0, %c8_i32 : i32
    %c0_14 = arith.constant 0 : index
    %c0_15 = arith.constant 0 : index
    %12 = vector.load %arg13[%c0_14, %c0_15] : memref<8x16xf32, #tpu.memory_space<vmem>>, vector<8x16xf32>
    %c0_16 = arith.constant 0 : index
    %c0_17 = arith.constant 0 : index
    %13 = vector.load %arg14[%c0_16, %c0_17] : memref<8x16xf32, #tpu.memory_space<vmem>>, vector<8x16xf32>
    %c0_18 = arith.constant 0 : index
    %c0_19 = arith.constant 0 : index
    %14 = vector.load %arg15[%c0_18, %c0_19] : memref<8x16xf32, #tpu.memory_space<vmem>>, vector<8x16xf32>
    %c0_20 = arith.constant 0 : index
    %c0_21 = arith.constant 0 : index
    %15 = vector.load %arg16[%c0_20, %c0_21] : memref<8x64xf32, #tpu.memory_space<vmem>>, vector<8x64xf32>
    %c0_i32_22 = arith.constant 0 : i32
    %16 = arith.addi %11, %c0_i32_22 : i32
    %17 = arith.index_cast %16 : i32 to index
    %18 = memref.load %arg1[%17] : memref<8xf32, #tpu.memory_space<smem>>
    %19 = arith.index_cast %c0_i32_22 : i32 to index
    %c0_23 = arith.constant 0 : index
    %c0_24 = arith.constant 0 : index
    %20 = vector.load %arg2[%19, %c0_23, %c0_24] : memref<8x8x64xf32, #tpu.memory_space<vmem>>, vector<1x8x64xf32>
    %21 = vector.shape_cast %20 : vector<1x8x64xf32> to vector<8x64xf32>
    %22 = arith.index_cast %c0_i32_22 : i32 to index
    %c0_25 = arith.constant 0 : index
    %c0_26 = arith.constant 0 : index
    %23 = vector.load %arg3[%22, %c0_25, %c0_26] : memref<8x1x64xf32, #tpu.memory_space<vmem>>, vector<1x1x64xf32>
    %24 = vector.shape_cast %23 : vector<1x1x64xf32> to vector<1x64xf32>
    %25 = arith.mulf %15, %21 : vector<8x64xf32>
    %26 = vector.extract_strided_slice %25 {offsets = [0, 0], sizes = [8, 16], strides = [1, 1]} : vector<8x64xf32> to vector<8x16xf32>
    %27 = vector.extract_strided_slice %25 {offsets = [0, 16], sizes = [8, 16], strides = [1, 1]} : vector<8x64xf32> to vector<8x16xf32>
    %28 = arith.addf %26, %27 : vector<8x16xf32>
    %29 = vector.extract_strided_slice %25 {offsets = [0, 32], sizes = [8, 16], strides = [1, 1]} : vector<8x64xf32> to vector<8x16xf32>
    %30 = arith.addf %28, %29 : vector<8x16xf32>
    %31 = vector.extract_strided_slice %25 {offsets = [0, 48], sizes = [8, 16], strides = [1, 1]} : vector<8x64xf32> to vector<8x16xf32>
    %32 = arith.addf %30, %31 : vector<8x16xf32>
    %cst = arith.constant 2.000000e+00 : f32
    %33 = vector.broadcast %cst : f32 to vector<8x16xf32>
    %34 = arith.mulf %33, %12 : vector<8x16xf32>
    %35 = arith.subf %34, %13 : vector<8x16xf32>
    %36 = vector.broadcast %18 : f32 to vector<8x16xf32>
    %37 = arith.mulf %14, %36 : vector<8x16xf32>
    %38 = arith.addf %35, %37 : vector<8x16xf32>
    %39 = arith.addf %38, %32 : vector<8x16xf32>
    %cst_27 = arith.constant dense<0.000000e+00> : vector<8x64xf32>
    %40 = tpu.matmul %39, %0, %cst_27 {dimension_numbers = #tpu.dot_dimension_numbers<[1], [0], [0], [1], [0, 0, 1, 1], [], []>} : vector<8x16xf32>, vector<16x64xf32>, vector<8x64xf32> -> vector<8x64xf32>
    %41 = vector.broadcast %24 : vector<1x64xf32> to vector<8x64xf32>
    %42 = arith.addf %40, %41 : vector<8x64xf32>
    %43 = arith.addf %42, %1 : vector<8x64xf32>
    %cst_28 = arith.constant 0.908999979 : f32
    %44 = vector.broadcast %cst_28 : f32 to vector<8x64xf32>
    %45 = arith.mulf %44, %43 : vector<8x64xf32>
    %cst_29 = arith.constant 5.000000e-01 : f32
    %46 = vector.broadcast %cst_29 : f32 to vector<8x64xf32>
    %47 = arith.mulf %46, %43 : vector<8x64xf32>
    %48 = math.tanh %47 : vector<8x64xf32>
    %cst_30 = arith.constant 5.000000e-01 : f32
    %49 = vector.broadcast %cst_30 : f32 to vector<8x64xf32>
    %50 = arith.mulf %49, %48 : vector<8x64xf32>
    %cst_31 = arith.constant 5.000000e-01 : f32
    %51 = vector.broadcast %cst_31 : f32 to vector<8x64xf32>
    %52 = arith.addf %50, %51 : vector<8x64xf32>
    %53 = arith.mulf %45, %52 : vector<8x64xf32>
    %cst_32 = arith.constant dense<0.000000e+00> : vector<8x64xf32>
    %54 = tpu.matmul %53, %5, %cst_32 {dimension_numbers = #tpu.dot_dimension_numbers<[1], [0], [0], [1], [0, 0, 1, 1], [], []>} : vector<8x64xf32>, vector<64x64xf32>, vector<8x64xf32> -> vector<8x64xf32>
    %55 = vector.broadcast %7 : vector<1x64xf32> to vector<8x64xf32>
    %56 = arith.addf %54, %55 : vector<8x64xf32>
    %cst_33 = arith.constant 0.908999979 : f32
    %57 = vector.broadcast %cst_33 : f32 to vector<8x64xf32>
    %58 = arith.mulf %57, %56 : vector<8x64xf32>
    %cst_34 = arith.constant 5.000000e-01 : f32
    %59 = vector.broadcast %cst_34 : f32 to vector<8x64xf32>
    %60 = arith.mulf %59, %56 : vector<8x64xf32>
    %61 = math.tanh %60 : vector<8x64xf32>
    %cst_35 = arith.constant 5.000000e-01 : f32
    %62 = vector.broadcast %cst_35 : f32 to vector<8x64xf32>
    %63 = arith.mulf %62, %61 : vector<8x64xf32>
    %cst_36 = arith.constant 5.000000e-01 : f32
    %64 = vector.broadcast %cst_36 : f32 to vector<8x64xf32>
    %65 = arith.addf %63, %64 : vector<8x64xf32>
    %66 = arith.mulf %58, %65 : vector<8x64xf32>
    %cst_37 = arith.constant dense<0.000000e+00> : vector<8x80xf32>
    %67 = tpu.matmul %66, %2, %cst_37 {dimension_numbers = #tpu.dot_dimension_numbers<[1], [0], [0], [1], [0, 0, 1, 1], [], []>} : vector<8x64xf32>, vector<64x80xf32>, vector<8x80xf32> -> vector<8x80xf32>
    %68 = vector.broadcast %3 : vector<1x80xf32> to vector<8x80xf32>
    %69 = arith.addf %67, %68 : vector<8x80xf32>
    %70 = math.tanh %69 : vector<8x80xf32>
    %cst_38 = arith.constant 1.000000e+00 : f32
    %71 = vector.broadcast %cst_38 : f32 to vector<8x80xf32>
    %72 = arith.mulf %71, %70 : vector<8x80xf32>
    %73 = vector.extract_strided_slice %72 {offsets = [0, 0], sizes = [8, 16], strides = [1, 1]} : vector<8x80xf32> to vector<8x16xf32>
    %74 = vector.extract_strided_slice %72 {offsets = [0, 16], sizes = [8, 64], strides = [1, 1]} : vector<8x80xf32> to vector<8x64xf32>
    %75 = arith.mulf %74, %21 : vector<8x64xf32>
    %76 = vector.extract_strided_slice %75 {offsets = [0, 0], sizes = [8, 16], strides = [1, 1]} : vector<8x64xf32> to vector<8x16xf32>
    %77 = vector.extract_strided_slice %75 {offsets = [0, 16], sizes = [8, 16], strides = [1, 1]} : vector<8x64xf32> to vector<8x16xf32>
    %78 = arith.addf %76, %77 : vector<8x16xf32>
    %79 = vector.extract_strided_slice %75 {offsets = [0, 32], sizes = [8, 16], strides = [1, 1]} : vector<8x64xf32> to vector<8x16xf32>
    %80 = arith.addf %78, %79 : vector<8x16xf32>
    %81 = vector.extract_strided_slice %75 {offsets = [0, 48], sizes = [8, 16], strides = [1, 1]} : vector<8x64xf32> to vector<8x16xf32>
    %82 = arith.addf %80, %81 : vector<8x16xf32>
    %cst_39 = arith.constant 5.000000e-01 : f32
    %83 = arith.mulf %cst_39, %18 : f32
    %84 = arith.addf %14, %73 : vector<8x16xf32>
    %85 = vector.broadcast %83 : f32 to vector<8x16xf32>
    %86 = arith.mulf %85, %84 : vector<8x16xf32>
    %87 = arith.addf %12, %86 : vector<8x16xf32>
    %88 = arith.addf %32, %82 : vector<8x16xf32>
    %cst_40 = arith.constant 5.000000e-01 : f32
    %89 = vector.broadcast %cst_40 : f32 to vector<8x16xf32>
    %90 = arith.mulf %89, %88 : vector<8x16xf32>
    %91 = arith.addf %87, %90 : vector<8x16xf32>
    %92 = arith.index_cast %c0_i32_22 : i32 to index
    %c0_41 = arith.constant 0 : index
    %c0_42 = arith.constant 0 : index
    %93 = vector.load %arg12[%92, %c0_41, %c0_42] : memref<8x8x16xf32, #tpu.memory_space<vmem>>, vector<1x8x16xf32>
    %94 = vector.shape_cast %93 : vector<1x8x16xf32> to vector<8x16xf32>
    %95 = vector.shape_cast %91 : vector<8x16xf32> to vector<1x8x16xf32>
    tpu.vector_store %arg12[%92, %c0_41, %c0_42], %95 {strides = array<i32>} : memref<8x8x16xf32, #tpu.memory_space<vmem>>, vector<1x8x16xf32>,
    %c1_i32 = arith.constant 1 : i32
    %96 = arith.addi %11, %c1_i32 : i32
    %97 = arith.index_cast %96 : i32 to index
    %98 = memref.load %arg1[%97] : memref<8xf32, #tpu.memory_space<smem>>
    %99 = arith.index_cast %c1_i32 : i32 to index
    %c0_43 = arith.constant 0 : index
    %c0_44 = arith.constant 0 : index
    %100 = vector.load %arg2[%99, %c0_43, %c0_44] : memref<8x8x64xf32, #tpu.memory_space<vmem>>, vector<1x8x64xf32>
    %101 = vector.shape_cast %100 : vector<1x8x64xf32> to vector<8x64xf32>
    %102 = arith.index_cast %c1_i32 : i32 to index
    %c0_45 = arith.constant 0 : index
    %c0_46 = arith.constant 0 : index
    %103 = vector.load %arg3[%102, %c0_45, %c0_46] : memref<8x1x64xf32, #tpu.memory_space<vmem>>, vector<1x1x64xf32>
    %104 = vector.shape_cast %103 : vector<1x1x64xf32> to vector<1x64xf32>
    %105 = arith.mulf %74, %101 : vector<8x64xf32>
    %106 = vector.extract_strided_slice %105 {offsets = [0, 0], sizes = [8, 16], strides = [1, 1]} : vector<8x64xf32> to vector<8x16xf32>
    %107 = vector.extract_strided_slice %105 {offsets = [0, 16], sizes = [8, 16], strides = [1, 1]} : vector<8x64xf32> to vector<8x16xf32>
    %108 = arith.addf %106, %107 : vector<8x16xf32>
    %109 = vector.extract_strided_slice %105 {offsets = [0, 32], sizes = [8, 16], strides = [1, 1]} : vector<8x64xf32> to vector<8x16xf32>
    %110 = arith.addf %108, %109 : vector<8x16xf32>
    %111 = vector.extract_strided_slice %105 {offsets = [0, 48], sizes = [8, 16], strides = [1, 1]} : vector<8x64xf32> to vector<8x16xf32>
    %112 = arith.addf %110, %111 : vector<8x16xf32>
    %cst_47 = arith.constant 2.000000e+00 : f32
    %113 = vector.broadcast %cst_47 : f32 to vector<8x16xf32>
    %114 = arith.mulf %113, %91 : vector<8x16xf32>
    %115 = arith.subf %114, %39 : vector<8x16xf32>
    %116 = vector.broadcast %98 : f32 to vector<8x16xf32>
    %117 = arith.mulf %73, %116 : vector<8x16xf32>
    %118 = arith.addf %115, %117 : vector<8x16xf32>
    %119 = arith.addf %118, %112 : vector<8x16xf32>
    %cst_48 = arith.constant dense<0.000000e+00> : vector<8x64xf32>
    %120 = tpu.matmul %119, %0, %cst_48 {dimension_numbers = #tpu.dot_dimension_numbers<[1], [0], [0], [1], [0, 0, 1, 1], [], []>} : vector<8x16xf32>, vector<16x64xf32>, vector<8x64xf32> -> vector<8x64xf32>
    %121 = vector.broadcast %104 : vector<1x64xf32> to vector<8x64xf32>
    %122 = arith.addf %120, %121 : vector<8x64xf32>
    %123 = arith.addf %122, %1 : vector<8x64xf32>
    %cst_49 = arith.constant 0.908999979 : f32
    %124 = vector.broadcast %cst_49 : f32 to vector<8x64xf32>
    %125 = arith.mulf %124, %123 : vector<8x64xf32>
    %cst_50 = arith.constant 5.000000e-01 : f32
    %126 = vector.broadcast %cst_50 : f32 to vector<8x64xf32>
    %127 = arith.mulf %126, %123 : vector<8x64xf32>
    %128 = math.tanh %127 : vector<8x64xf32>
    %cst_51 = arith.constant 5.000000e-01 : f32
    %129 = vector.broadcast %cst_51 : f32 to vector<8x64xf32>
    %130 = arith.mulf %129, %128 : vector<8x64xf32>
    %cst_52 = arith.constant 5.000000e-01 : f32
    %131 = vector.broadcast %cst_52 : f32 to vector<8x64xf32>
    %132 = arith.addf %130, %131 : vector<8x64xf32>
    %133 = arith.mulf %125, %132 : vector<8x64xf32>
    %cst_53 = arith.constant dense<0.000000e+00> : vector<8x64xf32>
    %134 = tpu.matmul %133, %5, %cst_53 {dimension_numbers = #tpu.dot_dimension_numbers<[1], [0], [0], [1], [0, 0, 1, 1], [], []>} : vector<8x64xf32>, vector<64x64xf32>, vector<8x64xf32> -> vector<8x64xf32>
    %135 = vector.broadcast %7 : vector<1x64xf32> to vector<8x64xf32>
    %136 = arith.addf %134, %135 : vector<8x64xf32>
    %cst_54 = arith.constant 0.908999979 : f32
    %137 = vector.broadcast %cst_54 : f32 to vector<8x64xf32>
    %138 = arith.mulf %137, %136 : vector<8x64xf32>
    %cst_55 = arith.constant 5.000000e-01 : f32
    %139 = vector.broadcast %cst_55 : f32 to vector<8x64xf32>
    %140 = arith.mulf %139, %136 : vector<8x64xf32>
    %141 = math.tanh %140 : vector<8x64xf32>
    %cst_56 = arith.constant 5.000000e-01 : f32
    %142 = vector.broadcast %cst_56 : f32 to vector<8x64xf32>
    %143 = arith.mulf %142, %141 : vector<8x64xf32>
    %cst_57 = arith.constant 5.000000e-01 : f32
    %144 = vector.broadcast %cst_57 : f32 to vector<8x64xf32>
    %145 = arith.addf %143, %144 : vector<8x64xf32>
    %146 = arith.mulf %138, %145 : vector<8x64xf32>
    %cst_58 = arith.constant dense<0.000000e+00> : vector<8x80xf32>
    %147 = tpu.matmul %146, %2, %cst_58 {dimension_numbers = #tpu.dot_dimension_numbers<[1], [0], [0], [1], [0, 0, 1, 1], [], []>} : vector<8x64xf32>, vector<64x80xf32>, vector<8x80xf32> -> vector<8x80xf32>
    %148 = vector.broadcast %3 : vector<1x80xf32> to vector<8x80xf32>
    %149 = arith.addf %147, %148 : vector<8x80xf32>
    %150 = math.tanh %149 : vector<8x80xf32>
    %cst_59 = arith.constant 1.000000e+00 : f32
    %151 = vector.broadcast %cst_59 : f32 to vector<8x80xf32>
    %152 = arith.mulf %151, %150 : vector<8x80xf32>
    %153 = vector.extract_strided_slice %152 {offsets = [0, 0], sizes = [8, 16], strides = [1, 1]} : vector<8x80xf32> to vector<8x16xf32>
    %154 = vector.extract_strided_slice %152 {offsets = [0, 16], sizes = [8, 64], strides = [1, 1]} : vector<8x80xf32> to vector<8x64xf32>
    %155 = arith.mulf %154, %101 : vector<8x64xf32>
    %156 = vector.extract_strided_slice %155 {offsets = [0, 0], sizes = [8, 16], strides = [1, 1]} : vector<8x64xf32> to vector<8x16xf32>
    %157 = vector.extract_strided_slice %155 {offsets = [0, 16], sizes = [8, 16], strides = [1, 1]} : vector<8x64xf32> to vector<8x16xf32>
    %158 = arith.addf %156, %157 : vector<8x16xf32>
    %159 = vector.extract_strided_slice %155 {offsets = [0, 32], sizes = [8, 16], strides = [1, 1]} : vector<8x64xf32> to vector<8x16xf32>
    %160 = arith.addf %158, %159 : vector<8x16xf32>
    %161 = vector.extract_strided_slice %155 {offsets = [0, 48], sizes = [8, 16], strides = [1, 1]} : vector<8x64xf32> to vector<8x16xf32>
    %162 = arith.addf %160, %161 : vector<8x16xf32>
    %cst_60 = arith.constant 5.000000e-01 : f32
    %163 = arith.mulf %cst_60, %98 : f32
    %164 = arith.addf %73, %153 : vector<8x16xf32>
    %165 = vector.broadcast %163 : f32 to vector<8x16xf32>
    %166 = arith.mulf %165, %164 : vector<8x16xf32>
    %167 = arith.addf %91, %166 : vector<8x16xf32>
    %168 = arith.addf %112, %162 : vector<8x16xf32>
    %cst_61 = arith.constant 5.000000e-01 : f32
    %169 = vector.broadcast %cst_61 : f32 to vector<8x16xf32>
    %170 = arith.mulf %169, %168 : vector<8x16xf32>
    %171 = arith.addf %167, %170 : vector<8x16xf32>
    %172 = arith.index_cast %c1_i32 : i32 to index
    %c0_62 = arith.constant 0 : index
    %c0_63 = arith.constant 0 : index
    %173 = vector.load %arg12[%172, %c0_62, %c0_63] : memref<8x8x16xf32, #tpu.memory_space<vmem>>, vector<1x8x16xf32>
    %174 = vector.shape_cast %173 : vector<1x8x16xf32> to vector<8x16xf32>
    %175 = vector.shape_cast %171 : vector<8x16xf32> to vector<1x8x16xf32>
    tpu.vector_store %arg12[%172, %c0_62, %c0_63], %175 {strides = array<i32>} : memref<8x8x16xf32, #tpu.memory_space<vmem>>, vector<1x8x16xf32>,
    %c2_i32 = arith.constant 2 : i32
    %176 = arith.addi %11, %c2_i32 : i32
    %177 = arith.index_cast %176 : i32 to index
    %178 = memref.load %arg1[%177] : memref<8xf32, #tpu.memory_space<smem>>
    %179 = arith.index_cast %c2_i32 : i32 to index
    %c0_64 = arith.constant 0 : index
    %c0_65 = arith.constant 0 : index
    %180 = vector.load %arg2[%179, %c0_64, %c0_65] : memref<8x8x64xf32, #tpu.memory_space<vmem>>, vector<1x8x64xf32>
    %181 = vector.shape_cast %180 : vector<1x8x64xf32> to vector<8x64xf32>
    %182 = arith.index_cast %c2_i32 : i32 to index
    %c0_66 = arith.constant 0 : index
    %c0_67 = arith.constant 0 : index
    %183 = vector.load %arg3[%182, %c0_66, %c0_67] : memref<8x1x64xf32, #tpu.memory_space<vmem>>, vector<1x1x64xf32>
    %184 = vector.shape_cast %183 : vector<1x1x64xf32> to vector<1x64xf32>
    %185 = arith.mulf %154, %181 : vector<8x64xf32>
    %186 = vector.extract_strided_slice %185 {offsets = [0, 0], sizes = [8, 16], strides = [1, 1]} : vector<8x64xf32> to vector<8x16xf32>
    %187 = vector.extract_strided_slice %185 {offsets = [0, 16], sizes = [8, 16], strides = [1, 1]} : vector<8x64xf32> to vector<8x16xf32>
    %188 = arith.addf %186, %187 : vector<8x16xf32>
    %189 = vector.extract_strided_slice %185 {offsets = [0, 32], sizes = [8, 16], strides = [1, 1]} : vector<8x64xf32> to vector<8x16xf32>
    %190 = arith.addf %188, %189 : vector<8x16xf32>
    %191 = vector.extract_strided_slice %185 {offsets = [0, 48], sizes = [8, 16], strides = [1, 1]} : vector<8x64xf32> to vector<8x16xf32>
    %192 = arith.addf %190, %191 : vector<8x16xf32>
    %cst_68 = arith.constant 2.000000e+00 : f32
    %193 = vector.broadcast %cst_68 : f32 to vector<8x16xf32>
    %194 = arith.mulf %193, %171 : vector<8x16xf32>
    %195 = arith.subf %194, %119 : vector<8x16xf32>
    %196 = vector.broadcast %178 : f32 to vector<8x16xf32>
    %197 = arith.mulf %153, %196 : vector<8x16xf32>
    %198 = arith.addf %195, %197 : vector<8x16xf32>
    %199 = arith.addf %198, %192 : vector<8x16xf32>
    %cst_69 = arith.constant dense<0.000000e+00> : vector<8x64xf32>
    %200 = tpu.matmul %199, %0, %cst_69 {dimension_numbers = #tpu.dot_dimension_numbers<[1], [0], [0], [1], [0, 0, 1, 1], [], []>} : vector<8x16xf32>, vector<16x64xf32>, vector<8x64xf32> -> vector<8x64xf32>
    %201 = vector.broadcast %184 : vector<1x64xf32> to vector<8x64xf32>
    %202 = arith.addf %200, %201 : vector<8x64xf32>
    %203 = arith.addf %202, %1 : vector<8x64xf32>
    %cst_70 = arith.constant 0.908999979 : f32
    %204 = vector.broadcast %cst_70 : f32 to vector<8x64xf32>
    %205 = arith.mulf %204, %203 : vector<8x64xf32>
    %cst_71 = arith.constant 5.000000e-01 : f32
    %206 = vector.broadcast %cst_71 : f32 to vector<8x64xf32>
    %207 = arith.mulf %206, %203 : vector<8x64xf32>
    %208 = math.tanh %207 : vector<8x64xf32>
    %cst_72 = arith.constant 5.000000e-01 : f32
    %209 = vector.broadcast %cst_72 : f32 to vector<8x64xf32>
    %210 = arith.mulf %209, %208 : vector<8x64xf32>
    %cst_73 = arith.constant 5.000000e-01 : f32
    %211 = vector.broadcast %cst_73 : f32 to vector<8x64xf32>
    %212 = arith.addf %210, %211 : vector<8x64xf32>
    %213 = arith.mulf %205, %212 : vector<8x64xf32>
    %cst_74 = arith.constant dense<0.000000e+00> : vector<8x64xf32>
    %214 = tpu.matmul %213, %5, %cst_74 {dimension_numbers = #tpu.dot_dimension_numbers<[1], [0], [0], [1], [0, 0, 1, 1], [], []>} : vector<8x64xf32>, vector<64x64xf32>, vector<8x64xf32> -> vector<8x64xf32>
    %215 = vector.broadcast %7 : vector<1x64xf32> to vector<8x64xf32>
    %216 = arith.addf %214, %215 : vector<8x64xf32>
    %cst_75 = arith.constant 0.908999979 : f32
    %217 = vector.broadcast %cst_75 : f32 to vector<8x64xf32>
    %218 = arith.mulf %217, %216 : vector<8x64xf32>
    %cst_76 = arith.constant 5.000000e-01 : f32
    %219 = vector.broadcast %cst_76 : f32 to vector<8x64xf32>
    %220 = arith.mulf %219, %216 : vector<8x64xf32>
    %221 = math.tanh %220 : vector<8x64xf32>
    %cst_77 = arith.constant 5.000000e-01 : f32
    %222 = vector.broadcast %cst_77 : f32 to vector<8x64xf32>
    %223 = arith.mulf %222, %221 : vector<8x64xf32>
    %cst_78 = arith.constant 5.000000e-01 : f32
    %224 = vector.broadcast %cst_78 : f32 to vector<8x64xf32>
    %225 = arith.addf %223, %224 : vector<8x64xf32>
    %226 = arith.mulf %218, %225 : vector<8x64xf32>
    %cst_79 = arith.constant dense<0.000000e+00> : vector<8x80xf32>
    %227 = tpu.matmul %226, %2, %cst_79 {dimension_numbers = #tpu.dot_dimension_numbers<[1], [0], [0], [1], [0, 0, 1, 1], [], []>} : vector<8x64xf32>, vector<64x80xf32>, vector<8x80xf32> -> vector<8x80xf32>
    %228 = vector.broadcast %3 : vector<1x80xf32> to vector<8x80xf32>
    %229 = arith.addf %227, %228 : vector<8x80xf32>
    %230 = math.tanh %229 : vector<8x80xf32>
    %cst_80 = arith.constant 1.000000e+00 : f32
    %231 = vector.broadcast %cst_80 : f32 to vector<8x80xf32>
    %232 = arith.mulf %231, %230 : vector<8x80xf32>
    %233 = vector.extract_strided_slice %232 {offsets = [0, 0], sizes = [8, 16], strides = [1, 1]} : vector<8x80xf32> to vector<8x16xf32>
    %234 = vector.extract_strided_slice %232 {offsets = [0, 16], sizes = [8, 64], strides = [1, 1]} : vector<8x80xf32> to vector<8x64xf32>
    %235 = arith.mulf %234, %181 : vector<8x64xf32>
    %236 = vector.extract_strided_slice %235 {offsets = [0, 0], sizes = [8, 16], strides = [1, 1]} : vector<8x64xf32> to vector<8x16xf32>
    %237 = vector.extract_strided_slice %235 {offsets = [0, 16], sizes = [8, 16], strides = [1, 1]} : vector<8x64xf32> to vector<8x16xf32>
    %238 = arith.addf %236, %237 : vector<8x16xf32>
    %239 = vector.extract_strided_slice %235 {offsets = [0, 32], sizes = [8, 16], strides = [1, 1]} : vector<8x64xf32> to vector<8x16xf32>
    %240 = arith.addf %238, %239 : vector<8x16xf32>
    %241 = vector.extract_strided_slice %235 {offsets = [0, 48], sizes = [8, 16], strides = [1, 1]} : vector<8x64xf32> to vector<8x16xf32>
    %242 = arith.addf %240, %241 : vector<8x16xf32>
    %cst_81 = arith.constant 5.000000e-01 : f32
    %243 = arith.mulf %cst_81, %178 : f32
    %244 = arith.addf %153, %233 : vector<8x16xf32>
    %245 = vector.broadcast %243 : f32 to vector<8x16xf32>
    %246 = arith.mulf %245, %244 : vector<8x16xf32>
    %247 = arith.addf %171, %246 : vector<8x16xf32>
    %248 = arith.addf %192, %242 : vector<8x16xf32>
    %cst_82 = arith.constant 5.000000e-01 : f32
    %249 = vector.broadcast %cst_82 : f32 to vector<8x16xf32>
    %250 = arith.mulf %249, %248 : vector<8x16xf32>
    %251 = arith.addf %247, %250 : vector<8x16xf32>
    %252 = arith.index_cast %c2_i32 : i32 to index
    %c0_83 = arith.constant 0 : index
    %c0_84 = arith.constant 0 : index
    %253 = vector.load %arg12[%252, %c0_83, %c0_84] : memref<8x8x16xf32, #tpu.memory_space<vmem>>, vector<1x8x16xf32>
    %254 = vector.shape_cast %253 : vector<1x8x16xf32> to vector<8x16xf32>
    %255 = vector.shape_cast %251 : vector<8x16xf32> to vector<1x8x16xf32>
    tpu.vector_store %arg12[%252, %c0_83, %c0_84], %255 {strides = array<i32>} : memref<8x8x16xf32, #tpu.memory_space<vmem>>, vector<1x8x16xf32>,
    %c3_i32 = arith.constant 3 : i32
    %256 = arith.addi %11, %c3_i32 : i32
    %257 = arith.index_cast %256 : i32 to index
    %258 = memref.load %arg1[%257] : memref<8xf32, #tpu.memory_space<smem>>
    %259 = arith.index_cast %c3_i32 : i32 to index
    %c0_85 = arith.constant 0 : index
    %c0_86 = arith.constant 0 : index
    %260 = vector.load %arg2[%259, %c0_85, %c0_86] : memref<8x8x64xf32, #tpu.memory_space<vmem>>, vector<1x8x64xf32>
    %261 = vector.shape_cast %260 : vector<1x8x64xf32> to vector<8x64xf32>
    %262 = arith.index_cast %c3_i32 : i32 to index
    %c0_87 = arith.constant 0 : index
    %c0_88 = arith.constant 0 : index
    %263 = vector.load %arg3[%262, %c0_87, %c0_88] : memref<8x1x64xf32, #tpu.memory_space<vmem>>, vector<1x1x64xf32>
    %264 = vector.shape_cast %263 : vector<1x1x64xf32> to vector<1x64xf32>
    %265 = arith.mulf %234, %261 : vector<8x64xf32>
    %266 = vector.extract_strided_slice %265 {offsets = [0, 0], sizes = [8, 16], strides = [1, 1]} : vector<8x64xf32> to vector<8x16xf32>
    %267 = vector.extract_strided_slice %265 {offsets = [0, 16], sizes = [8, 16], strides = [1, 1]} : vector<8x64xf32> to vector<8x16xf32>
    %268 = arith.addf %266, %267 : vector<8x16xf32>
    %269 = vector.extract_strided_slice %265 {offsets = [0, 32], sizes = [8, 16], strides = [1, 1]} : vector<8x64xf32> to vector<8x16xf32>
    %270 = arith.addf %268, %269 : vector<8x16xf32>
    %271 = vector.extract_strided_slice %265 {offsets = [0, 48], sizes = [8, 16], strides = [1, 1]} : vector<8x64xf32> to vector<8x16xf32>
    %272 = arith.addf %270, %271 : vector<8x16xf32>
    %cst_89 = arith.constant 2.000000e+00 : f32
    %273 = vector.broadcast %cst_89 : f32 to vector<8x16xf32>
    %274 = arith.mulf %273, %251 : vector<8x16xf32>
    %275 = arith.subf %274, %199 : vector<8x16xf32>
    %276 = vector.broadcast %258 : f32 to vector<8x16xf32>
    %277 = arith.mulf %233, %276 : vector<8x16xf32>
    %278 = arith.addf %275, %277 : vector<8x16xf32>
    %279 = arith.addf %278, %272 : vector<8x16xf32>
    %cst_90 = arith.constant dense<0.000000e+00> : vector<8x64xf32>
    %280 = tpu.matmul %279, %0, %cst_90 {dimension_numbers = #tpu.dot_dimension_numbers<[1], [0], [0], [1], [0, 0, 1, 1], [], []>} : vector<8x16xf32>, vector<16x64xf32>, vector<8x64xf32> -> vector<8x64xf32>
    %281 = vector.broadcast %264 : vector<1x64xf32> to vector<8x64xf32>
    %282 = arith.addf %280, %281 : vector<8x64xf32>
    %283 = arith.addf %282, %1 : vector<8x64xf32>
    %cst_91 = arith.constant 0.908999979 : f32
    %284 = vector.broadcast %cst_91 : f32 to vector<8x64xf32>
    %285 = arith.mulf %284, %283 : vector<8x64xf32>
    %cst_92 = arith.constant 5.000000e-01 : f32
    %286 = vector.broadcast %cst_92 : f32 to vector<8x64xf32>
    %287 = arith.mulf %286, %283 : vector<8x64xf32>
    %288 = math.tanh %287 : vector<8x64xf32>
    %cst_93 = arith.constant 5.000000e-01 : f32
    %289 = vector.broadcast %cst_93 : f32 to vector<8x64xf32>
    %290 = arith.mulf %289, %288 : vector<8x64xf32>
    %cst_94 = arith.constant 5.000000e-01 : f32
    %291 = vector.broadcast %cst_94 : f32 to vector<8x64xf32>
    %292 = arith.addf %290, %291 : vector<8x64xf32>
    %293 = arith.mulf %285, %292 : vector<8x64xf32>
    %cst_95 = arith.constant dense<0.000000e+00> : vector<8x64xf32>
    %294 = tpu.matmul %293, %5, %cst_95 {dimension_numbers = #tpu.dot_dimension_numbers<[1], [0], [0], [1], [0, 0, 1, 1], [], []>} : vector<8x64xf32>, vector<64x64xf32>, vector<8x64xf32> -> vector<8x64xf32>
    %295 = vector.broadcast %7 : vector<1x64xf32> to vector<8x64xf32>
    %296 = arith.addf %294, %295 : vector<8x64xf32>
    %cst_96 = arith.constant 0.908999979 : f32
    %297 = vector.broadcast %cst_96 : f32 to vector<8x64xf32>
    %298 = arith.mulf %297, %296 : vector<8x64xf32>
    %cst_97 = arith.constant 5.000000e-01 : f32
    %299 = vector.broadcast %cst_97 : f32 to vector<8x64xf32>
    %300 = arith.mulf %299, %296 : vector<8x64xf32>
    %301 = math.tanh %300 : vector<8x64xf32>
    %cst_98 = arith.constant 5.000000e-01 : f32
    %302 = vector.broadcast %cst_98 : f32 to vector<8x64xf32>
    %303 = arith.mulf %302, %301 : vector<8x64xf32>
    %cst_99 = arith.constant 5.000000e-01 : f32
    %304 = vector.broadcast %cst_99 : f32 to vector<8x64xf32>
    %305 = arith.addf %303, %304 : vector<8x64xf32>
    %306 = arith.mulf %298, %305 : vector<8x64xf32>
    %cst_100 = arith.constant dense<0.000000e+00> : vector<8x80xf32>
    %307 = tpu.matmul %306, %2, %cst_100 {dimension_numbers = #tpu.dot_dimension_numbers<[1], [0], [0], [1], [0, 0, 1, 1], [], []>} : vector<8x64xf32>, vector<64x80xf32>, vector<8x80xf32> -> vector<8x80xf32>
    %308 = vector.broadcast %3 : vector<1x80xf32> to vector<8x80xf32>
    %309 = arith.addf %307, %308 : vector<8x80xf32>
    %310 = math.tanh %309 : vector<8x80xf32>
    %cst_101 = arith.constant 1.000000e+00 : f32
    %311 = vector.broadcast %cst_101 : f32 to vector<8x80xf32>
    %312 = arith.mulf %311, %310 : vector<8x80xf32>
    %313 = vector.extract_strided_slice %312 {offsets = [0, 0], sizes = [8, 16], strides = [1, 1]} : vector<8x80xf32> to vector<8x16xf32>
    %314 = vector.extract_strided_slice %312 {offsets = [0, 16], sizes = [8, 64], strides = [1, 1]} : vector<8x80xf32> to vector<8x64xf32>
    %315 = arith.mulf %314, %261 : vector<8x64xf32>
    %316 = vector.extract_strided_slice %315 {offsets = [0, 0], sizes = [8, 16], strides = [1, 1]} : vector<8x64xf32> to vector<8x16xf32>
    %317 = vector.extract_strided_slice %315 {offsets = [0, 16], sizes = [8, 16], strides = [1, 1]} : vector<8x64xf32> to vector<8x16xf32>
    %318 = arith.addf %316, %317 : vector<8x16xf32>
    %319 = vector.extract_strided_slice %315 {offsets = [0, 32], sizes = [8, 16], strides = [1, 1]} : vector<8x64xf32> to vector<8x16xf32>
    %320 = arith.addf %318, %319 : vector<8x16xf32>
    %321 = vector.extract_strided_slice %315 {offsets = [0, 48], sizes = [8, 16], strides = [1, 1]} : vector<8x64xf32> to vector<8x16xf32>
    %322 = arith.addf %320, %321 : vector<8x16xf32>
    %cst_102 = arith.constant 5.000000e-01 : f32
    %323 = arith.mulf %cst_102, %258 : f32
    %324 = arith.addf %233, %313 : vector<8x16xf32>
    %325 = vector.broadcast %323 : f32 to vector<8x16xf32>
    %326 = arith.mulf %325, %324 : vector<8x16xf32>
    %327 = arith.addf %251, %326 : vector<8x16xf32>
    %328 = arith.addf %272, %322 : vector<8x16xf32>
    %cst_103 = arith.constant 5.000000e-01 : f32
    %329 = vector.broadcast %cst_103 : f32 to vector<8x16xf32>
    %330 = arith.mulf %329, %328 : vector<8x16xf32>
    %331 = arith.addf %327, %330 : vector<8x16xf32>
    %332 = arith.index_cast %c3_i32 : i32 to index
    %c0_104 = arith.constant 0 : index
    %c0_105 = arith.constant 0 : index
    %333 = vector.load %arg12[%332, %c0_104, %c0_105] : memref<8x8x16xf32, #tpu.memory_space<vmem>>, vector<1x8x16xf32>
    %334 = vector.shape_cast %333 : vector<1x8x16xf32> to vector<8x16xf32>
    %335 = vector.shape_cast %331 : vector<8x16xf32> to vector<1x8x16xf32>
    tpu.vector_store %arg12[%332, %c0_104, %c0_105], %335 {strides = array<i32>} : memref<8x8x16xf32, #tpu.memory_space<vmem>>, vector<1x8x16xf32>,
    %c4_i32 = arith.constant 4 : i32
    %336 = arith.addi %11, %c4_i32 : i32
    %337 = arith.index_cast %336 : i32 to index
    %338 = memref.load %arg1[%337] : memref<8xf32, #tpu.memory_space<smem>>
    %339 = arith.index_cast %c4_i32 : i32 to index
    %c0_106 = arith.constant 0 : index
    %c0_107 = arith.constant 0 : index
    %340 = vector.load %arg2[%339, %c0_106, %c0_107] : memref<8x8x64xf32, #tpu.memory_space<vmem>>, vector<1x8x64xf32>
    %341 = vector.shape_cast %340 : vector<1x8x64xf32> to vector<8x64xf32>
    %342 = arith.index_cast %c4_i32 : i32 to index
    %c0_108 = arith.constant 0 : index
    %c0_109 = arith.constant 0 : index
    %343 = vector.load %arg3[%342, %c0_108, %c0_109] : memref<8x1x64xf32, #tpu.memory_space<vmem>>, vector<1x1x64xf32>
    %344 = vector.shape_cast %343 : vector<1x1x64xf32> to vector<1x64xf32>
    %345 = arith.mulf %314, %341 : vector<8x64xf32>
    %346 = vector.extract_strided_slice %345 {offsets = [0, 0], sizes = [8, 16], strides = [1, 1]} : vector<8x64xf32> to vector<8x16xf32>
    %347 = vector.extract_strided_slice %345 {offsets = [0, 16], sizes = [8, 16], strides = [1, 1]} : vector<8x64xf32> to vector<8x16xf32>
    %348 = arith.addf %346, %347 : vector<8x16xf32>
    %349 = vector.extract_strided_slice %345 {offsets = [0, 32], sizes = [8, 16], strides = [1, 1]} : vector<8x64xf32> to vector<8x16xf32>
    %350 = arith.addf %348, %349 : vector<8x16xf32>
    %351 = vector.extract_strided_slice %345 {offsets = [0, 48], sizes = [8, 16], strides = [1, 1]} : vector<8x64xf32> to vector<8x16xf32>
    %352 = arith.addf %350, %351 : vector<8x16xf32>
    %cst_110 = arith.constant 2.000000e+00 : f32
    %353 = vector.broadcast %cst_110 : f32 to vector<8x16xf32>
    %354 = arith.mulf %353, %331 : vector<8x16xf32>
    %355 = arith.subf %354, %279 : vector<8x16xf32>
    %356 = vector.broadcast %338 : f32 to vector<8x16xf32>
    %357 = arith.mulf %313, %356 : vector<8x16xf32>
    %358 = arith.addf %355, %357 : vector<8x16xf32>
    %359 = arith.addf %358, %352 : vector<8x16xf32>
    %cst_111 = arith.constant dense<0.000000e+00> : vector<8x64xf32>
    %360 = tpu.matmul %359, %0, %cst_111 {dimension_numbers = #tpu.dot_dimension_numbers<[1], [0], [0], [1], [0, 0, 1, 1], [], []>} : vector<8x16xf32>, vector<16x64xf32>, vector<8x64xf32> -> vector<8x64xf32>
    %361 = vector.broadcast %344 : vector<1x64xf32> to vector<8x64xf32>
    %362 = arith.addf %360, %361 : vector<8x64xf32>
    %363 = arith.addf %362, %1 : vector<8x64xf32>
    %cst_112 = arith.constant 0.908999979 : f32
    %364 = vector.broadcast %cst_112 : f32 to vector<8x64xf32>
    %365 = arith.mulf %364, %363 : vector<8x64xf32>
    %cst_113 = arith.constant 5.000000e-01 : f32
    %366 = vector.broadcast %cst_113 : f32 to vector<8x64xf32>
    %367 = arith.mulf %366, %363 : vector<8x64xf32>
    %368 = math.tanh %367 : vector<8x64xf32>
    %cst_114 = arith.constant 5.000000e-01 : f32
    %369 = vector.broadcast %cst_114 : f32 to vector<8x64xf32>
    %370 = arith.mulf %369, %368 : vector<8x64xf32>
    %cst_115 = arith.constant 5.000000e-01 : f32
    %371 = vector.broadcast %cst_115 : f32 to vector<8x64xf32>
    %372 = arith.addf %370, %371 : vector<8x64xf32>
    %373 = arith.mulf %365, %372 : vector<8x64xf32>
    %cst_116 = arith.constant dense<0.000000e+00> : vector<8x64xf32>
    %374 = tpu.matmul %373, %5, %cst_116 {dimension_numbers = #tpu.dot_dimension_numbers<[1], [0], [0], [1], [0, 0, 1, 1], [], []>} : vector<8x64xf32>, vector<64x64xf32>, vector<8x64xf32> -> vector<8x64xf32>
    %375 = vector.broadcast %7 : vector<1x64xf32> to vector<8x64xf32>
    %376 = arith.addf %374, %375 : vector<8x64xf32>
    %cst_117 = arith.constant 0.908999979 : f32
    %377 = vector.broadcast %cst_117 : f32 to vector<8x64xf32>
    %378 = arith.mulf %377, %376 : vector<8x64xf32>
    %cst_118 = arith.constant 5.000000e-01 : f32
    %379 = vector.broadcast %cst_118 : f32 to vector<8x64xf32>
    %380 = arith.mulf %379, %376 : vector<8x64xf32>
    %381 = math.tanh %380 : vector<8x64xf32>
    %cst_119 = arith.constant 5.000000e-01 : f32
    %382 = vector.broadcast %cst_119 : f32 to vector<8x64xf32>
    %383 = arith.mulf %382, %381 : vector<8x64xf32>
    %cst_120 = arith.constant 5.000000e-01 : f32
    %384 = vector.broadcast %cst_120 : f32 to vector<8x64xf32>
    %385 = arith.addf %383, %384 : vector<8x64xf32>
    %386 = arith.mulf %378, %385 : vector<8x64xf32>
    %cst_121 = arith.constant dense<0.000000e+00> : vector<8x80xf32>
    %387 = tpu.matmul %386, %2, %cst_121 {dimension_numbers = #tpu.dot_dimension_numbers<[1], [0], [0], [1], [0, 0, 1, 1], [], []>} : vector<8x64xf32>, vector<64x80xf32>, vector<8x80xf32> -> vector<8x80xf32>
    %388 = vector.broadcast %3 : vector<1x80xf32> to vector<8x80xf32>
    %389 = arith.addf %387, %388 : vector<8x80xf32>
    %390 = math.tanh %389 : vector<8x80xf32>
    %cst_122 = arith.constant 1.000000e+00 : f32
    %391 = vector.broadcast %cst_122 : f32 to vector<8x80xf32>
    %392 = arith.mulf %391, %390 : vector<8x80xf32>
    %393 = vector.extract_strided_slice %392 {offsets = [0, 0], sizes = [8, 16], strides = [1, 1]} : vector<8x80xf32> to vector<8x16xf32>
    %394 = vector.extract_strided_slice %392 {offsets = [0, 16], sizes = [8, 64], strides = [1, 1]} : vector<8x80xf32> to vector<8x64xf32>
    %395 = arith.mulf %394, %341 : vector<8x64xf32>
    %396 = vector.extract_strided_slice %395 {offsets = [0, 0], sizes = [8, 16], strides = [1, 1]} : vector<8x64xf32> to vector<8x16xf32>
    %397 = vector.extract_strided_slice %395 {offsets = [0, 16], sizes = [8, 16], strides = [1, 1]} : vector<8x64xf32> to vector<8x16xf32>
    %398 = arith.addf %396, %397 : vector<8x16xf32>
    %399 = vector.extract_strided_slice %395 {offsets = [0, 32], sizes = [8, 16], strides = [1, 1]} : vector<8x64xf32> to vector<8x16xf32>
    %400 = arith.addf %398, %399 : vector<8x16xf32>
    %401 = vector.extract_strided_slice %395 {offsets = [0, 48], sizes = [8, 16], strides = [1, 1]} : vector<8x64xf32> to vector<8x16xf32>
    %402 = arith.addf %400, %401 : vector<8x16xf32>
    %cst_123 = arith.constant 5.000000e-01 : f32
    %403 = arith.mulf %cst_123, %338 : f32
    %404 = arith.addf %313, %393 : vector<8x16xf32>
    %405 = vector.broadcast %403 : f32 to vector<8x16xf32>
    %406 = arith.mulf %405, %404 : vector<8x16xf32>
    %407 = arith.addf %331, %406 : vector<8x16xf32>
    %408 = arith.addf %352, %402 : vector<8x16xf32>
    %cst_124 = arith.constant 5.000000e-01 : f32
    %409 = vector.broadcast %cst_124 : f32 to vector<8x16xf32>
    %410 = arith.mulf %409, %408 : vector<8x16xf32>
    %411 = arith.addf %407, %410 : vector<8x16xf32>
    %412 = arith.index_cast %c4_i32 : i32 to index
    %c0_125 = arith.constant 0 : index
    %c0_126 = arith.constant 0 : index
    %413 = vector.load %arg12[%412, %c0_125, %c0_126] : memref<8x8x16xf32, #tpu.memory_space<vmem>>, vector<1x8x16xf32>
    %414 = vector.shape_cast %413 : vector<1x8x16xf32> to vector<8x16xf32>
    %415 = vector.shape_cast %411 : vector<8x16xf32> to vector<1x8x16xf32>
    tpu.vector_store %arg12[%412, %c0_125, %c0_126], %415 {strides = array<i32>} : memref<8x8x16xf32, #tpu.memory_space<vmem>>, vector<1x8x16xf32>,
    %c5_i32 = arith.constant 5 : i32
    %416 = arith.addi %11, %c5_i32 : i32
    %417 = arith.index_cast %416 : i32 to index
    %418 = memref.load %arg1[%417] : memref<8xf32, #tpu.memory_space<smem>>
    %419 = arith.index_cast %c5_i32 : i32 to index
    %c0_127 = arith.constant 0 : index
    %c0_128 = arith.constant 0 : index
    %420 = vector.load %arg2[%419, %c0_127, %c0_128] : memref<8x8x64xf32, #tpu.memory_space<vmem>>, vector<1x8x64xf32>
    %421 = vector.shape_cast %420 : vector<1x8x64xf32> to vector<8x64xf32>
    %422 = arith.index_cast %c5_i32 : i32 to index
    %c0_129 = arith.constant 0 : index
    %c0_130 = arith.constant 0 : index
    %423 = vector.load %arg3[%422, %c0_129, %c0_130] : memref<8x1x64xf32, #tpu.memory_space<vmem>>, vector<1x1x64xf32>
    %424 = vector.shape_cast %423 : vector<1x1x64xf32> to vector<1x64xf32>
    %425 = arith.mulf %394, %421 : vector<8x64xf32>
    %426 = vector.extract_strided_slice %425 {offsets = [0, 0], sizes = [8, 16], strides = [1, 1]} : vector<8x64xf32> to vector<8x16xf32>
    %427 = vector.extract_strided_slice %425 {offsets = [0, 16], sizes = [8, 16], strides = [1, 1]} : vector<8x64xf32> to vector<8x16xf32>
    %428 = arith.addf %426, %427 : vector<8x16xf32>
    %429 = vector.extract_strided_slice %425 {offsets = [0, 32], sizes = [8, 16], strides = [1, 1]} : vector<8x64xf32> to vector<8x16xf32>
    %430 = arith.addf %428, %429 : vector<8x16xf32>
    %431 = vector.extract_strided_slice %425 {offsets = [0, 48], sizes = [8, 16], strides = [1, 1]} : vector<8x64xf32> to vector<8x16xf32>
    %432 = arith.addf %430, %431 : vector<8x16xf32>
    %cst_131 = arith.constant 2.000000e+00 : f32
    %433 = vector.broadcast %cst_131 : f32 to vector<8x16xf32>
    %434 = arith.mulf %433, %411 : vector<8x16xf32>
    %435 = arith.subf %434, %359 : vector<8x16xf32>
    %436 = vector.broadcast %418 : f32 to vector<8x16xf32>
    %437 = arith.mulf %393, %436 : vector<8x16xf32>
    %438 = arith.addf %435, %437 : vector<8x16xf32>
    %439 = arith.addf %438, %432 : vector<8x16xf32>
    %cst_132 = arith.constant dense<0.000000e+00> : vector<8x64xf32>
    %440 = tpu.matmul %439, %0, %cst_132 {dimension_numbers = #tpu.dot_dimension_numbers<[1], [0], [0], [1], [0, 0, 1, 1], [], []>} : vector<8x16xf32>, vector<16x64xf32>, vector<8x64xf32> -> vector<8x64xf32>
    %441 = vector.broadcast %424 : vector<1x64xf32> to vector<8x64xf32>
    %442 = arith.addf %440, %441 : vector<8x64xf32>
    %443 = arith.addf %442, %1 : vector<8x64xf32>
    %cst_133 = arith.constant 0.908999979 : f32
    %444 = vector.broadcast %cst_133 : f32 to vector<8x64xf32>
    %445 = arith.mulf %444, %443 : vector<8x64xf32>
    %cst_134 = arith.constant 5.000000e-01 : f32
    %446 = vector.broadcast %cst_134 : f32 to vector<8x64xf32>
    %447 = arith.mulf %446, %443 : vector<8x64xf32>
    %448 = math.tanh %447 : vector<8x64xf32>
    %cst_135 = arith.constant 5.000000e-01 : f32
    %449 = vector.broadcast %cst_135 : f32 to vector<8x64xf32>
    %450 = arith.mulf %449, %448 : vector<8x64xf32>
    %cst_136 = arith.constant 5.000000e-01 : f32
    %451 = vector.broadcast %cst_136 : f32 to vector<8x64xf32>
    %452 = arith.addf %450, %451 : vector<8x64xf32>
    %453 = arith.mulf %445, %452 : vector<8x64xf32>
    %cst_137 = arith.constant dense<0.000000e+00> : vector<8x64xf32>
    %454 = tpu.matmul %453, %5, %cst_137 {dimension_numbers = #tpu.dot_dimension_numbers<[1], [0], [0], [1], [0, 0, 1, 1], [], []>} : vector<8x64xf32>, vector<64x64xf32>, vector<8x64xf32> -> vector<8x64xf32>
    %455 = vector.broadcast %7 : vector<1x64xf32> to vector<8x64xf32>
    %456 = arith.addf %454, %455 : vector<8x64xf32>
    %cst_138 = arith.constant 0.908999979 : f32
    %457 = vector.broadcast %cst_138 : f32 to vector<8x64xf32>
    %458 = arith.mulf %457, %456 : vector<8x64xf32>
    %cst_139 = arith.constant 5.000000e-01 : f32
    %459 = vector.broadcast %cst_139 : f32 to vector<8x64xf32>
    %460 = arith.mulf %459, %456 : vector<8x64xf32>
    %461 = math.tanh %460 : vector<8x64xf32>
    %cst_140 = arith.constant 5.000000e-01 : f32
    %462 = vector.broadcast %cst_140 : f32 to vector<8x64xf32>
    %463 = arith.mulf %462, %461 : vector<8x64xf32>
    %cst_141 = arith.constant 5.000000e-01 : f32
    %464 = vector.broadcast %cst_141 : f32 to vector<8x64xf32>
    %465 = arith.addf %463, %464 : vector<8x64xf32>
    %466 = arith.mulf %458, %465 : vector<8x64xf32>
    %cst_142 = arith.constant dense<0.000000e+00> : vector<8x80xf32>
    %467 = tpu.matmul %466, %2, %cst_142 {dimension_numbers = #tpu.dot_dimension_numbers<[1], [0], [0], [1], [0, 0, 1, 1], [], []>} : vector<8x64xf32>, vector<64x80xf32>, vector<8x80xf32> -> vector<8x80xf32>
    %468 = vector.broadcast %3 : vector<1x80xf32> to vector<8x80xf32>
    %469 = arith.addf %467, %468 : vector<8x80xf32>
    %470 = math.tanh %469 : vector<8x80xf32>
    %cst_143 = arith.constant 1.000000e+00 : f32
    %471 = vector.broadcast %cst_143 : f32 to vector<8x80xf32>
    %472 = arith.mulf %471, %470 : vector<8x80xf32>
    %473 = vector.extract_strided_slice %472 {offsets = [0, 0], sizes = [8, 16], strides = [1, 1]} : vector<8x80xf32> to vector<8x16xf32>
    %474 = vector.extract_strided_slice %472 {offsets = [0, 16], sizes = [8, 64], strides = [1, 1]} : vector<8x80xf32> to vector<8x64xf32>
    %475 = arith.mulf %474, %421 : vector<8x64xf32>
    %476 = vector.extract_strided_slice %475 {offsets = [0, 0], sizes = [8, 16], strides = [1, 1]} : vector<8x64xf32> to vector<8x16xf32>
    %477 = vector.extract_strided_slice %475 {offsets = [0, 16], sizes = [8, 16], strides = [1, 1]} : vector<8x64xf32> to vector<8x16xf32>
    %478 = arith.addf %476, %477 : vector<8x16xf32>
    %479 = vector.extract_strided_slice %475 {offsets = [0, 32], sizes = [8, 16], strides = [1, 1]} : vector<8x64xf32> to vector<8x16xf32>
    %480 = arith.addf %478, %479 : vector<8x16xf32>
    %481 = vector.extract_strided_slice %475 {offsets = [0, 48], sizes = [8, 16], strides = [1, 1]} : vector<8x64xf32> to vector<8x16xf32>
    %482 = arith.addf %480, %481 : vector<8x16xf32>
    %cst_144 = arith.constant 5.000000e-01 : f32
    %483 = arith.mulf %cst_144, %418 : f32
    %484 = arith.addf %393, %473 : vector<8x16xf32>
    %485 = vector.broadcast %483 : f32 to vector<8x16xf32>
    %486 = arith.mulf %485, %484 : vector<8x16xf32>
    %487 = arith.addf %411, %486 : vector<8x16xf32>
    %488 = arith.addf %432, %482 : vector<8x16xf32>
    %cst_145 = arith.constant 5.000000e-01 : f32
    %489 = vector.broadcast %cst_145 : f32 to vector<8x16xf32>
    %490 = arith.mulf %489, %488 : vector<8x16xf32>
    %491 = arith.addf %487, %490 : vector<8x16xf32>
    %492 = arith.index_cast %c5_i32 : i32 to index
    %c0_146 = arith.constant 0 : index
    %c0_147 = arith.constant 0 : index
    %493 = vector.load %arg12[%492, %c0_146, %c0_147] : memref<8x8x16xf32, #tpu.memory_space<vmem>>, vector<1x8x16xf32>
    %494 = vector.shape_cast %493 : vector<1x8x16xf32> to vector<8x16xf32>
    %495 = vector.shape_cast %491 : vector<8x16xf32> to vector<1x8x16xf32>
    tpu.vector_store %arg12[%492, %c0_146, %c0_147], %495 {strides = array<i32>} : memref<8x8x16xf32, #tpu.memory_space<vmem>>, vector<1x8x16xf32>,
    %c6_i32 = arith.constant 6 : i32
    %496 = arith.addi %11, %c6_i32 : i32
    %497 = arith.index_cast %496 : i32 to index
    %498 = memref.load %arg1[%497] : memref<8xf32, #tpu.memory_space<smem>>
    %499 = arith.index_cast %c6_i32 : i32 to index
    %c0_148 = arith.constant 0 : index
    %c0_149 = arith.constant 0 : index
    %500 = vector.load %arg2[%499, %c0_148, %c0_149] : memref<8x8x64xf32, #tpu.memory_space<vmem>>, vector<1x8x64xf32>
    %501 = vector.shape_cast %500 : vector<1x8x64xf32> to vector<8x64xf32>
    %502 = arith.index_cast %c6_i32 : i32 to index
    %c0_150 = arith.constant 0 : index
    %c0_151 = arith.constant 0 : index
    %503 = vector.load %arg3[%502, %c0_150, %c0_151] : memref<8x1x64xf32, #tpu.memory_space<vmem>>, vector<1x1x64xf32>
    %504 = vector.shape_cast %503 : vector<1x1x64xf32> to vector<1x64xf32>
    %505 = arith.mulf %474, %501 : vector<8x64xf32>
    %506 = vector.extract_strided_slice %505 {offsets = [0, 0], sizes = [8, 16], strides = [1, 1]} : vector<8x64xf32> to vector<8x16xf32>
    %507 = vector.extract_strided_slice %505 {offsets = [0, 16], sizes = [8, 16], strides = [1, 1]} : vector<8x64xf32> to vector<8x16xf32>
    %508 = arith.addf %506, %507 : vector<8x16xf32>
    %509 = vector.extract_strided_slice %505 {offsets = [0, 32], sizes = [8, 16], strides = [1, 1]} : vector<8x64xf32> to vector<8x16xf32>
    %510 = arith.addf %508, %509 : vector<8x16xf32>
    %511 = vector.extract_strided_slice %505 {offsets = [0, 48], sizes = [8, 16], strides = [1, 1]} : vector<8x64xf32> to vector<8x16xf32>
    %512 = arith.addf %510, %511 : vector<8x16xf32>
    %cst_152 = arith.constant 2.000000e+00 : f32
    %513 = vector.broadcast %cst_152 : f32 to vector<8x16xf32>
    %514 = arith.mulf %513, %491 : vector<8x16xf32>
    %515 = arith.subf %514, %439 : vector<8x16xf32>
    %516 = vector.broadcast %498 : f32 to vector<8x16xf32>
    %517 = arith.mulf %473, %516 : vector<8x16xf32>
    %518 = arith.addf %515, %517 : vector<8x16xf32>
    %519 = arith.addf %518, %512 : vector<8x16xf32>
    %cst_153 = arith.constant dense<0.000000e+00> : vector<8x64xf32>
    %520 = tpu.matmul %519, %0, %cst_153 {dimension_numbers = #tpu.dot_dimension_numbers<[1], [0], [0], [1], [0, 0, 1, 1], [], []>} : vector<8x16xf32>, vector<16x64xf32>, vector<8x64xf32> -> vector<8x64xf32>
    %521 = vector.broadcast %504 : vector<1x64xf32> to vector<8x64xf32>
    %522 = arith.addf %520, %521 : vector<8x64xf32>
    %523 = arith.addf %522, %1 : vector<8x64xf32>
    %cst_154 = arith.constant 0.908999979 : f32
    %524 = vector.broadcast %cst_154 : f32 to vector<8x64xf32>
    %525 = arith.mulf %524, %523 : vector<8x64xf32>
    %cst_155 = arith.constant 5.000000e-01 : f32
    %526 = vector.broadcast %cst_155 : f32 to vector<8x64xf32>
    %527 = arith.mulf %526, %523 : vector<8x64xf32>
    %528 = math.tanh %527 : vector<8x64xf32>
    %cst_156 = arith.constant 5.000000e-01 : f32
    %529 = vector.broadcast %cst_156 : f32 to vector<8x64xf32>
    %530 = arith.mulf %529, %528 : vector<8x64xf32>
    %cst_157 = arith.constant 5.000000e-01 : f32
    %531 = vector.broadcast %cst_157 : f32 to vector<8x64xf32>
    %532 = arith.addf %530, %531 : vector<8x64xf32>
    %533 = arith.mulf %525, %532 : vector<8x64xf32>
    %cst_158 = arith.constant dense<0.000000e+00> : vector<8x64xf32>
    %534 = tpu.matmul %533, %5, %cst_158 {dimension_numbers = #tpu.dot_dimension_numbers<[1], [0], [0], [1], [0, 0, 1, 1], [], []>} : vector<8x64xf32>, vector<64x64xf32>, vector<8x64xf32> -> vector<8x64xf32>
    %535 = vector.broadcast %7 : vector<1x64xf32> to vector<8x64xf32>
    %536 = arith.addf %534, %535 : vector<8x64xf32>
    %cst_159 = arith.constant 0.908999979 : f32
    %537 = vector.broadcast %cst_159 : f32 to vector<8x64xf32>
    %538 = arith.mulf %537, %536 : vector<8x64xf32>
    %cst_160 = arith.constant 5.000000e-01 : f32
    %539 = vector.broadcast %cst_160 : f32 to vector<8x64xf32>
    %540 = arith.mulf %539, %536 : vector<8x64xf32>
    %541 = math.tanh %540 : vector<8x64xf32>
    %cst_161 = arith.constant 5.000000e-01 : f32
    %542 = vector.broadcast %cst_161 : f32 to vector<8x64xf32>
    %543 = arith.mulf %542, %541 : vector<8x64xf32>
    %cst_162 = arith.constant 5.000000e-01 : f32
    %544 = vector.broadcast %cst_162 : f32 to vector<8x64xf32>
    %545 = arith.addf %543, %544 : vector<8x64xf32>
    %546 = arith.mulf %538, %545 : vector<8x64xf32>
    %cst_163 = arith.constant dense<0.000000e+00> : vector<8x80xf32>
    %547 = tpu.matmul %546, %2, %cst_163 {dimension_numbers = #tpu.dot_dimension_numbers<[1], [0], [0], [1], [0, 0, 1, 1], [], []>} : vector<8x64xf32>, vector<64x80xf32>, vector<8x80xf32> -> vector<8x80xf32>
    %548 = vector.broadcast %3 : vector<1x80xf32> to vector<8x80xf32>
    %549 = arith.addf %547, %548 : vector<8x80xf32>
    %550 = math.tanh %549 : vector<8x80xf32>
    %cst_164 = arith.constant 1.000000e+00 : f32
    %551 = vector.broadcast %cst_164 : f32 to vector<8x80xf32>
    %552 = arith.mulf %551, %550 : vector<8x80xf32>
    %553 = vector.extract_strided_slice %552 {offsets = [0, 0], sizes = [8, 16], strides = [1, 1]} : vector<8x80xf32> to vector<8x16xf32>
    %554 = vector.extract_strided_slice %552 {offsets = [0, 16], sizes = [8, 64], strides = [1, 1]} : vector<8x80xf32> to vector<8x64xf32>
    %555 = arith.mulf %554, %501 : vector<8x64xf32>
    %556 = vector.extract_strided_slice %555 {offsets = [0, 0], sizes = [8, 16], strides = [1, 1]} : vector<8x64xf32> to vector<8x16xf32>
    %557 = vector.extract_strided_slice %555 {offsets = [0, 16], sizes = [8, 16], strides = [1, 1]} : vector<8x64xf32> to vector<8x16xf32>
    %558 = arith.addf %556, %557 : vector<8x16xf32>
    %559 = vector.extract_strided_slice %555 {offsets = [0, 32], sizes = [8, 16], strides = [1, 1]} : vector<8x64xf32> to vector<8x16xf32>
    %560 = arith.addf %558, %559 : vector<8x16xf32>
    %561 = vector.extract_strided_slice %555 {offsets = [0, 48], sizes = [8, 16], strides = [1, 1]} : vector<8x64xf32> to vector<8x16xf32>
    %562 = arith.addf %560, %561 : vector<8x16xf32>
    %cst_165 = arith.constant 5.000000e-01 : f32
    %563 = arith.mulf %cst_165, %498 : f32
    %564 = arith.addf %473, %553 : vector<8x16xf32>
    %565 = vector.broadcast %563 : f32 to vector<8x16xf32>
    %566 = arith.mulf %565, %564 : vector<8x16xf32>
    %567 = arith.addf %491, %566 : vector<8x16xf32>
    %568 = arith.addf %512, %562 : vector<8x16xf32>
    %cst_166 = arith.constant 5.000000e-01 : f32
    %569 = vector.broadcast %cst_166 : f32 to vector<8x16xf32>
    %570 = arith.mulf %569, %568 : vector<8x16xf32>
    %571 = arith.addf %567, %570 : vector<8x16xf32>
    %572 = arith.index_cast %c6_i32 : i32 to index
    %c0_167 = arith.constant 0 : index
    %c0_168 = arith.constant 0 : index
    %573 = vector.load %arg12[%572, %c0_167, %c0_168] : memref<8x8x16xf32, #tpu.memory_space<vmem>>, vector<1x8x16xf32>
    %574 = vector.shape_cast %573 : vector<1x8x16xf32> to vector<8x16xf32>
    %575 = vector.shape_cast %571 : vector<8x16xf32> to vector<1x8x16xf32>
    tpu.vector_store %arg12[%572, %c0_167, %c0_168], %575 {strides = array<i32>} : memref<8x8x16xf32, #tpu.memory_space<vmem>>, vector<1x8x16xf32>,
    %c7_i32 = arith.constant 7 : i32
    %576 = arith.addi %11, %c7_i32 : i32
    %577 = arith.index_cast %576 : i32 to index
    %578 = memref.load %arg1[%577] : memref<8xf32, #tpu.memory_space<smem>>
    %579 = arith.index_cast %c7_i32 : i32 to index
    %c0_169 = arith.constant 0 : index
    %c0_170 = arith.constant 0 : index
    %580 = vector.load %arg2[%579, %c0_169, %c0_170] : memref<8x8x64xf32, #tpu.memory_space<vmem>>, vector<1x8x64xf32>
    %581 = vector.shape_cast %580 : vector<1x8x64xf32> to vector<8x64xf32>
    %582 = arith.index_cast %c7_i32 : i32 to index
    %c0_171 = arith.constant 0 : index
    %c0_172 = arith.constant 0 : index
    %583 = vector.load %arg3[%582, %c0_171, %c0_172] : memref<8x1x64xf32, #tpu.memory_space<vmem>>, vector<1x1x64xf32>
    %584 = vector.shape_cast %583 : vector<1x1x64xf32> to vector<1x64xf32>
    %585 = arith.mulf %554, %581 : vector<8x64xf32>
    %586 = vector.extract_strided_slice %585 {offsets = [0, 0], sizes = [8, 16], strides = [1, 1]} : vector<8x64xf32> to vector<8x16xf32>
    %587 = vector.extract_strided_slice %585 {offsets = [0, 16], sizes = [8, 16], strides = [1, 1]} : vector<8x64xf32> to vector<8x16xf32>
    %588 = arith.addf %586, %587 : vector<8x16xf32>
    %589 = vector.extract_strided_slice %585 {offsets = [0, 32], sizes = [8, 16], strides = [1, 1]} : vector<8x64xf32> to vector<8x16xf32>
    %590 = arith.addf %588, %589 : vector<8x16xf32>
    %591 = vector.extract_strided_slice %585 {offsets = [0, 48], sizes = [8, 16], strides = [1, 1]} : vector<8x64xf32> to vector<8x16xf32>
    %592 = arith.addf %590, %591 : vector<8x16xf32>
    %cst_173 = arith.constant 2.000000e+00 : f32
    %593 = vector.broadcast %cst_173 : f32 to vector<8x16xf32>
    %594 = arith.mulf %593, %571 : vector<8x16xf32>
    %595 = arith.subf %594, %519 : vector<8x16xf32>
    %596 = vector.broadcast %578 : f32 to vector<8x16xf32>
    %597 = arith.mulf %553, %596 : vector<8x16xf32>
    %598 = arith.addf %595, %597 : vector<8x16xf32>
    %599 = arith.addf %598, %592 : vector<8x16xf32>
    %cst_174 = arith.constant dense<0.000000e+00> : vector<8x64xf32>
    %600 = tpu.matmul %599, %0, %cst_174 {dimension_numbers = #tpu.dot_dimension_numbers<[1], [0], [0], [1], [0, 0, 1, 1], [], []>} : vector<8x16xf32>, vector<16x64xf32>, vector<8x64xf32> -> vector<8x64xf32>
    %601 = vector.broadcast %584 : vector<1x64xf32> to vector<8x64xf32>
    %602 = arith.addf %600, %601 : vector<8x64xf32>
    %603 = arith.addf %602, %1 : vector<8x64xf32>
    %cst_175 = arith.constant 0.908999979 : f32
    %604 = vector.broadcast %cst_175 : f32 to vector<8x64xf32>
    %605 = arith.mulf %604, %603 : vector<8x64xf32>
    %cst_176 = arith.constant 5.000000e-01 : f32
    %606 = vector.broadcast %cst_176 : f32 to vector<8x64xf32>
    %607 = arith.mulf %606, %603 : vector<8x64xf32>
    %608 = math.tanh %607 : vector<8x64xf32>
    %cst_177 = arith.constant 5.000000e-01 : f32
    %609 = vector.broadcast %cst_177 : f32 to vector<8x64xf32>
    %610 = arith.mulf %609, %608 : vector<8x64xf32>
    %cst_178 = arith.constant 5.000000e-01 : f32
    %611 = vector.broadcast %cst_178 : f32 to vector<8x64xf32>
    %612 = arith.addf %610, %611 : vector<8x64xf32>
    %613 = arith.mulf %605, %612 : vector<8x64xf32>
    %cst_179 = arith.constant dense<0.000000e+00> : vector<8x64xf32>
    %614 = tpu.matmul %613, %5, %cst_179 {dimension_numbers = #tpu.dot_dimension_numbers<[1], [0], [0], [1], [0, 0, 1, 1], [], []>} : vector<8x64xf32>, vector<64x64xf32>, vector<8x64xf32> -> vector<8x64xf32>
    %615 = vector.broadcast %7 : vector<1x64xf32> to vector<8x64xf32>
    %616 = arith.addf %614, %615 : vector<8x64xf32>
    %cst_180 = arith.constant 0.908999979 : f32
    %617 = vector.broadcast %cst_180 : f32 to vector<8x64xf32>
    %618 = arith.mulf %617, %616 : vector<8x64xf32>
    %cst_181 = arith.constant 5.000000e-01 : f32
    %619 = vector.broadcast %cst_181 : f32 to vector<8x64xf32>
    %620 = arith.mulf %619, %616 : vector<8x64xf32>
    %621 = math.tanh %620 : vector<8x64xf32>
    %cst_182 = arith.constant 5.000000e-01 : f32
    %622 = vector.broadcast %cst_182 : f32 to vector<8x64xf32>
    %623 = arith.mulf %622, %621 : vector<8x64xf32>
    %cst_183 = arith.constant 5.000000e-01 : f32
    %624 = vector.broadcast %cst_183 : f32 to vector<8x64xf32>
    %625 = arith.addf %623, %624 : vector<8x64xf32>
    %626 = arith.mulf %618, %625 : vector<8x64xf32>
    %cst_184 = arith.constant dense<0.000000e+00> : vector<8x80xf32>
    %627 = tpu.matmul %626, %2, %cst_184 {dimension_numbers = #tpu.dot_dimension_numbers<[1], [0], [0], [1], [0, 0, 1, 1], [], []>} : vector<8x64xf32>, vector<64x80xf32>, vector<8x80xf32> -> vector<8x80xf32>
    %628 = vector.broadcast %3 : vector<1x80xf32> to vector<8x80xf32>
    %629 = arith.addf %627, %628 : vector<8x80xf32>
    %630 = math.tanh %629 : vector<8x80xf32>
    %cst_185 = arith.constant 1.000000e+00 : f32
    %631 = vector.broadcast %cst_185 : f32 to vector<8x80xf32>
    %632 = arith.mulf %631, %630 : vector<8x80xf32>
    %633 = vector.extract_strided_slice %632 {offsets = [0, 0], sizes = [8, 16], strides = [1, 1]} : vector<8x80xf32> to vector<8x16xf32>
    %634 = vector.extract_strided_slice %632 {offsets = [0, 16], sizes = [8, 64], strides = [1, 1]} : vector<8x80xf32> to vector<8x64xf32>
    %635 = arith.mulf %634, %581 : vector<8x64xf32>
    %636 = vector.extract_strided_slice %635 {offsets = [0, 0], sizes = [8, 16], strides = [1, 1]} : vector<8x64xf32> to vector<8x16xf32>
    %637 = vector.extract_strided_slice %635 {offsets = [0, 16], sizes = [8, 16], strides = [1, 1]} : vector<8x64xf32> to vector<8x16xf32>
    %638 = arith.addf %636, %637 : vector<8x16xf32>
    %639 = vector.extract_strided_slice %635 {offsets = [0, 32], sizes = [8, 16], strides = [1, 1]} : vector<8x64xf32> to vector<8x16xf32>
    %640 = arith.addf %638, %639 : vector<8x16xf32>
    %641 = vector.extract_strided_slice %635 {offsets = [0, 48], sizes = [8, 16], strides = [1, 1]} : vector<8x64xf32> to vector<8x16xf32>
    %642 = arith.addf %640, %641 : vector<8x16xf32>
    %cst_186 = arith.constant 5.000000e-01 : f32
    %643 = arith.mulf %cst_186, %578 : f32
    %644 = arith.addf %553, %633 : vector<8x16xf32>
    %645 = vector.broadcast %643 : f32 to vector<8x16xf32>
    %646 = arith.mulf %645, %644 : vector<8x16xf32>
    %647 = arith.addf %571, %646 : vector<8x16xf32>
    %648 = arith.addf %592, %642 : vector<8x16xf32>
    %cst_187 = arith.constant 5.000000e-01 : f32
    %649 = vector.broadcast %cst_187 : f32 to vector<8x16xf32>
    %650 = arith.mulf %649, %648 : vector<8x16xf32>
    %651 = arith.addf %647, %650 : vector<8x16xf32>
    %652 = arith.index_cast %c7_i32 : i32 to index
    %c0_188 = arith.constant 0 : index
    %c0_189 = arith.constant 0 : index
    %653 = vector.load %arg12[%652, %c0_188, %c0_189] : memref<8x8x16xf32, #tpu.memory_space<vmem>>, vector<1x8x16xf32>
    %654 = vector.shape_cast %653 : vector<1x8x16xf32> to vector<8x16xf32>
    %655 = vector.shape_cast %651 : vector<8x16xf32> to vector<1x8x16xf32>
    tpu.vector_store %arg12[%652, %c0_188, %c0_189], %655 {strides = array<i32>} : memref<8x8x16xf32, #tpu.memory_space<vmem>>, vector<1x8x16xf32>,
    %c8_i32_190 = arith.constant 8 : i32
    %c0_191 = arith.constant 0 : index
    %c0_192 = arith.constant 0 : index
    %656 = vector.load %arg13[%c0_191, %c0_192] : memref<8x16xf32, #tpu.memory_space<vmem>>, vector<8x16xf32>
    tpu.vector_store %arg13[%c0_191, %c0_192], %651 {strides = array<i32>} : memref<8x16xf32, #tpu.memory_space<vmem>>, vector<8x16xf32>,
    %c0_193 = arith.constant 0 : index
    %c0_194 = arith.constant 0 : index
    %657 = vector.load %arg14[%c0_193, %c0_194] : memref<8x16xf32, #tpu.memory_space<vmem>>, vector<8x16xf32>
    tpu.vector_store %arg14[%c0_193, %c0_194], %599 {strides = array<i32>} : memref<8x16xf32, #tpu.memory_space<vmem>>, vector<8x16xf32>,
    %c0_195 = arith.constant 0 : index
    %c0_196 = arith.constant 0 : index
    %658 = vector.load %arg15[%c0_195, %c0_196] : memref<8x16xf32, #tpu.memory_space<vmem>>, vector<8x16xf32>
    tpu.vector_store %arg15[%c0_195, %c0_196], %633 {strides = array<i32>} : memref<8x16xf32, #tpu.memory_space<vmem>>, vector<8x16xf32>,
    %c0_197 = arith.constant 0 : index
    %c0_198 = arith.constant 0 : index
    %659 = vector.load %arg16[%c0_197, %c0_198] : memref<8x64xf32, #tpu.memory_space<vmem>>, vector<8x64xf32>
    tpu.vector_store %arg16[%c0_197, %c0_198], %634 {strides = array<i32>} : memref<8x64xf32, #tpu.memory_space<vmem>>, vector<8x64xf32>,
    return
  }
  func.func @transform_0(%arg0: i32) -> i32 {
    %c0_i32 = arith.constant 0 : i32
    %c0_i32_0 = arith.constant 0 : i32
    return %c0_i32 : i32
  }
  func.func @transform_1(%arg0: i32) -> (i32, i32, i32) {
    %c0_i32 = arith.constant 0 : i32
    %c0_i32_0 = arith.constant 0 : i32
    %c0_i32_1 = arith.constant 0 : i32
    return %arg0, %c0_i32, %c0_i32_0 : i32, i32, i32
  }
  func.func @transform_2(%arg0: i32) -> (i32, i32, i32) {
    %c0_i32 = arith.constant 0 : i32
    %c0_i32_0 = arith.constant 0 : i32
    %c0_i32_1 = arith.constant 0 : i32
    return %arg0, %c0_i32, %c0_i32_0 : i32, i32, i32
  }
  func.func @transform_3(%arg0: i32) -> (i32, i32) {
    %c0_i32 = arith.constant 0 : i32
    %c0_i32_0 = arith.constant 0 : i32
    %c0_i32_1 = arith.constant 0 : i32
    return %c0_i32, %c0_i32_0 : i32, i32
  }
  func.func @transform_4(%arg0: i32) -> (i32, i32) {
    %c0_i32 = arith.constant 0 : i32
    %c0_i32_0 = arith.constant 0 : i32
    %c0_i32_1 = arith.constant 0 : i32
    return %c0_i32, %c0_i32_0 : i32, i32
  }
  func.func @transform_5(%arg0: i32) -> (i32, i32) {
    %c0_i32 = arith.constant 0 : i32
    %c0_i32_0 = arith.constant 0 : i32
    %c0_i32_1 = arith.constant 0 : i32
    return %c0_i32, %c0_i32_0 : i32, i32
  }
  func.func @transform_6(%arg0: i32) -> (i32, i32) {
    %c0_i32 = arith.constant 0 : i32
    %c0_i32_0 = arith.constant 0 : i32
    %c0_i32_1 = arith.constant 0 : i32
    return %c0_i32, %c0_i32_0 : i32, i32
  }
  func.func @transform_7(%arg0: i32) -> (i32, i32, i32) {
    %c0_i32 = arith.constant 0 : i32
    %c0_i32_0 = arith.constant 0 : i32
    %c0_i32_1 = arith.constant 0 : i32
    %c0_i32_2 = arith.constant 0 : i32
    return %c0_i32, %c0_i32_0, %c0_i32_1 : i32, i32, i32
  }
  func.func @transform_8(%arg0: i32) -> (i32, i32, i32) {
    %c0_i32 = arith.constant 0 : i32
    %c0_i32_0 = arith.constant 0 : i32
    %c0_i32_1 = arith.constant 0 : i32
    %c0_i32_2 = arith.constant 0 : i32
    return %c0_i32, %c0_i32_0, %c0_i32_1 : i32, i32, i32
  }
  func.func @transform_9(%arg0: i32) -> (i32, i32) {
    %c0_i32 = arith.constant 0 : i32
    %c0_i32_0 = arith.constant 0 : i32
    %c0_i32_1 = arith.constant 0 : i32
    return %c0_i32, %c0_i32_0 : i32, i32
  }
  func.func @transform_10(%arg0: i32) -> (i32, i32) {
    %c0_i32 = arith.constant 0 : i32
    %c0_i32_0 = arith.constant 0 : i32
    %c0_i32_1 = arith.constant 0 : i32
    return %c0_i32, %c0_i32_0 : i32, i32
  }
  func.func @transform_11(%arg0: i32) -> (i32, i32, i32) {
    %c0_i32 = arith.constant 0 : i32
    %c0_i32_0 = arith.constant 0 : i32
    %c0_i32_1 = arith.constant 0 : i32
    return %arg0, %c0_i32, %c0_i32_0 : i32, i32, i32
  }
}

</mosaic_0001>

<llo_original>
// kernel: forward.1
$region0: #{forward.1}
  #allocation0 [shape = 'u32[]', space=smem, size = 0x4, offset = 0x4, fixed_abs, tag = 'smem constant byte address 0x4 - core index']
  #allocation1 [shape = 'u32[144,128]{1,0:T(1,128)}', space=vmem, size = 0x12000, scoped, tag = 'internal scratch']
  #allocation2 [shape = 'f32[8,16]{1,0:T(8,128)}', space=vmem, size = 0x1000, scoped, tag = 'scratch operand']
  #allocation3 [shape = 'f32[8,16]{1,0:T(8,128)}', space=vmem, size = 0x1000, scoped, tag = 'scratch operand']
  #allocation4 [shape = 'f32[8,16]{1,0:T(8,128)}', space=vmem, size = 0x1000, scoped, tag = 'scratch operand']
  #allocation5 [shape = 'f32[8,64]{1,0:T(8,128)}', space=vmem, size = 0x1000, scoped, tag = 'scratch operand']
  %s0 = inlined_call_operand.vmem [shape: f32[8], index: 0, kind: input, shape index: {}]
  %s1 = inlined_call_operand.vmem [shape: f32[8,8,64], index: 1, kind: input, shape index: {}]
  %s2 = inlined_call_operand.vmem [shape: f32[8,1,64], index: 2, kind: input, shape index: {}]
  %s3 = inlined_call_operand.vmem [shape: f32[1,64], index: 3, kind: input, shape index: {}]
  %s4 = inlined_call_operand.vmem [shape: f32[8,16], index: 4, kind: input, shape index: {}]
  %s5 = inlined_call_operand.vmem [shape: f32[8,64], index: 5, kind: input, shape index: {}]
  %s6 = inlined_call_operand.vmem [shape: f32[16,64], index: 6, kind: input, shape index: {}]
  %s7 = inlined_call_operand.vmem [shape: f32[1,64,64], index: 7, kind: input, shape index: {}]
  %s8 = inlined_call_operand.vmem [shape: f32[1,1,64], index: 8, kind: input, shape index: {}]
  %s9 = inlined_call_operand.vmem [shape: f32[64,80], index: 9, kind: input, shape index: {}]
  %s10 = inlined_call_operand.vmem [shape: f32[1,80], index: 10, kind: input, shape index: {}]
  %s11 = inlined_call_operand.vmem [shape: f32[8,8,16], index: 11, kind: output, shape index: {}]
  %s12 = sld [smem:[#allocation0]]
  $region62: #{forward.1} parent=0
    _
  %s14 = ssub.s32 1, %s12
  %s15 = scalar_select 0, %s14, %s12
  $region1: #{forward.1} parent=0
    #allocation6 [shape = 'u8[512]{0}', space=smem, size = 0x200, scoped, tag = 'input window, operand 0, single buffered']
    #allocation7 [shape = 's32[1]{0}', space=sflag, size = 0x4, scoped, tag = 'scoped memory for forward.1']
    %16 = vsyncpa [#allocation7], 0
    // Predicated region
    $region2: #{forward.1} parent=1 // pred_check
      _
    $region3: #{forward.1} parent=1 // pred_check_branch
      %18 = sbr.rel (0) target = $region5
    $region4: #{forward.1} parent=1 // pred_region
      %s20 = ssub.s32 16, 16
      %21 = vsyncadd [#allocation7], %s20
      %s23 = sshll.u32 %s0, 4
      %s24 = int_to_ptr.vmem [resolvable:$true] %s23
      %26 = dma.vmem_to_smem %s24, 16, [#allocation6], [#allocation7]
    $region5: #{forward.1} parent=1 // pred_fallthru
      _
    // Predicated region
    $region6: #{forward.1} parent=1 // pred_check
      _
    $region7: #{forward.1} parent=1 // pred_check_branch
      %28 = sbr.rel (0) target = $region9
    $region8: #{forward.1} parent=1 // pred_region
      _
    $region9: #{forward.1} parent=1 // pred_fallthru
      _
    // Predicated region
    $region10: #{forward.1} parent=1 // pred_check
      _
    $region11: #{forward.1} parent=1 // pred_check_branch
      %30 = sbr.rel (0) target = $region13
    $region12: #{forward.1} parent=1 // pred_region
      _
    $region13: #{forward.1} parent=1 // pred_fallthru
      _
    // Predicated region
    $region14: #{forward.1} parent=1 // pred_check
      _
    $region15: #{forward.1} parent=1 // pred_check_branch
      %32 = sbr.rel (0) target = $region17
    $region16: #{forward.1} parent=1 // pred_region
      _
    $region17: #{forward.1} parent=1 // pred_fallthru
      _
    // Predicated region
    $region18: #{forward.1} parent=1 // pred_check
      _
    $region19: #{forward.1} parent=1 // pred_check_branch
      %34 = sbr.rel (0) target = $region21
    $region20: #{forward.1} parent=1 // pred_region
      _
    $region21: #{forward.1} parent=1 // pred_fallthru
      _
    // Predicated region
    $region22: #{forward.1} parent=1 // pred_check
      _
    $region23: #{forward.1} parent=1 // pred_check_branch
      %36 = sbr.rel (0) target = $region25
    $region24: #{forward.1} parent=1 // pred_region
      _
    $region25: #{forward.1} parent=1 // pred_fallthru
      _
    // Predicated region
    $region26: #{forward.1} parent=1 // pred_check
      _
    $region27: #{forward.1} parent=1 // pred_check_branch
      %38 = sbr.rel (0) target = $region29
    $region28: #{forward.1} parent=1 // pred_region
      _
    $region29: #{forward.1} parent=1 // pred_fallthru
      _
    // Predicated region
    $region30: #{forward.1} parent=1 // pred_check
      _
    $region31: #{forward.1} parent=1 // pred_check_branch
      %40 = sbr.rel (0) target = $region33
    $region32: #{forward.1} parent=1 // pred_region
      _
    $region33: #{forward.1} parent=1 // pred_fallthru
      _
    // Predicated region
    $region34: #{forward.1} parent=1 // pred_check
      _
    $region35: #{forward.1} parent=1 // pred_check_branch
      %42 = sbr.rel (0) target = $region37
    $region36: #{forward.1} parent=1 // pred_region
      _
    $region37: #{forward.1} parent=1 // pred_fallthru
      _
    // Predicated region
    $region38: #{forward.1} parent=1 // pred_check
      _
    $region39: #{forward.1} parent=1 // pred_check_branch
      %44 = sbr.rel (0) target = $region41
    $region40: #{forward.1} parent=1 // pred_region
      _
    $region41: #{forward.1} parent=1 // pred_fallthru
      _
    // Predicated region
    $region42: #{forward.1} parent=1 // pred_check
      _
    $region43: #{forward.1} parent=1 // pred_check_branch
      %46 = sbr.rel (0) target = $region45
    $region44: #{forward.1} parent=1 // pred_region
      _
    $region45: #{forward.1} parent=1 // pred_fallthru
      _
    // Predicated region
    $region46: #{forward.1} parent=1 // pred_check
      _
    $region47: #{forward.1} parent=1 // pred_check_branch
      %48 = sbr.rel (0) target = $region49
    $region48: #{forward.1} parent=1 // pred_region
      %49 = dma.done [#allocation7], 16
    $region49: #{forward.1} parent=1 // pred_fallthru
      _
    %50 = sfence
    %v51 = vld [vmem:[%s6] sm:$0xff]
    %v52 = vld [vmem:[%s6 + $0x8] sm:$0xff]
    %v53 = vld [vmem:[%s5] sm:$0xff]
    %v54 = vld [vmem:[%s9] sm:$0xff]
    %v55 = vld [vmem:[%s9 + $0x8] sm:$0xff]
    %v56 = vld [vmem:[%s9 + $0x10] sm:$0xff]
    %v57 = vld [vmem:[%s9 + $0x18] sm:$0xff]
    %v58 = vld [vmem:[%s9 + $0x20] sm:$0xff]
    %v59 = vld [vmem:[%s9 + $0x28] sm:$0xff]
    %v60 = vld [vmem:[%s9 + $0x30] sm:$0xff]
    %v61 = vld [vmem:[%s9 + $0x38] sm:$0xff]
    %v62 = vld [vmem:[%s10] sm:$0x1]
    %v63 = vld [vmem:[%s7] sm:$0xff]
    %v64 = vld [vmem:[%s7 + $0x8] sm:$0xff]
    %v65 = vld [vmem:[%s7 + $0x10] sm:$0xff]
    %v66 = vld [vmem:[%s7 + $0x18] sm:$0xff]
    %v67 = vld [vmem:[%s7 + $0x20] sm:$0xff]
    %v68 = vld [vmem:[%s7 + $0x28] sm:$0xff]
    %v69 = vld [vmem:[%s7 + $0x30] sm:$0xff]
    %v70 = vld [vmem:[%s7 + $0x38] sm:$0xff]
    %v71 = vld [vmem:[%s8] sm:$0x1]
    %p72 = scmp.eq.s32.totalorder 0, 0
    // Predicated region
    $region50: #{forward.1} parent=1 // pred_check
      %p73 = pneg %p72
    $region51: #{forward.1} parent=1 // pred_check_branch
      %75 = sbr.rel (%p73) target = $region53
    $region52: #{forward.1} parent=1 // pred_region
      %v76 = vld [vmem:[%s4] sm:$0xff]
      %vm77 = vcmask 130048
      %78 = vst.msk [vmem:[#allocation2] sm:$0xff] %vm77, %v76
      %79 = vst.msk [vmem:[#allocation3] sm:$0xff] %vm77, %v76
      %v80 = vld [vmem:[%s3] sm:$0x1]
      %v82 = vlaneseq
      %v83 = vshrl.u32 %v82, 7
      %v84 = vsub.s32 0, %v83
      %v85 = vrot.slane %v80, %v84
      %v88 = vsel %vm77, %v76, 0
      %90 = vmatprep.subr.mxu0 0.0
      %91 = vmatpush1.msra.mxu0 %v51
      %92 = vmatprep.subr.mxu0 0.0
      %93 = vmatpush1.msra.mxu0 %v52
      %94 = vmatprep.subr.mxu0 0.0
      %95 = vmatpush1.msra.mxu0 0.0
      %96 = vmatprep.subr.mxu0 0.0
      %97 = vmatpush1.msra.mxu0 0.0
      %98 = vmatprep.subr.mxu0 0.0
      %99 = vmatpush1.msra.mxu0 0.0
      %100 = vmatprep.subr.mxu0 0.0
      %101 = vmatpush1.msra.mxu0 0.0
      %102 = vmatprep.subr.mxu0 0.0
      %103 = vmatpush1.msra.mxu0 0.0
      %104 = vmatprep.subr.mxu0 0.0
      %105 = vmatpush1.msra.mxu0 0.0
      %106 = vmatprep.subr.mxu0 0.0
      %107 = vmatpush1.msra.mxu0 0.0
      %108 = vmatprep.subr.mxu0 0.0
      %109 = vmatpush1.msra.mxu0 0.0
      %110 = vmatprep.subr.mxu0 0.0
      %111 = vmatpush1.msra.mxu0 0.0
      %112 = vmatprep.subr.mxu0 0.0
      %113 = vmatpush1.msra.mxu0 0.0
      %114 = vmatprep.subr.mxu0 0.0
      %115 = vmatpush1.msra.mxu0 0.0
      %116 = vmatprep.subr.mxu0 0.0
      %117 = vmatpush1.msra.mxu0 0.0
      %118 = vmatprep.subr.mxu0 0.0
      %119 = vmatpush1.msra.mxu0 0.0
      %120 = vmatprep.subr.mxu0 0.0
      %121 = vmatpush1.msra.mxu0 0.0
      %122 = vmatprep.subr.mxu0 0.0
      %123 = vmatpush1.msra.mxu0 0.0
      %124 = vmatprep.subr.mxu0 0.0
      %125 = vmatpush1.msra.mxu0 0.0
      %126 = vmatprep.subr.mxu0 0.0
      %127 = vmatpush1.msra.mxu0 0.0
      %128 = vmatprep.subr.mxu0 0.0
      %129 = vmatpush1.msra.mxu0 0.0
      %130 = vmatprep.subr.mxu0 0.0
      %131 = vmatpush1.msra.mxu0 0.0
      %132 = vmatprep.subr.mxu0 0.0
      %133 = vmatpush1.msra.mxu0 0.0
      %134 = vmatprep.subr.mxu0 0.0
      %135 = vmatpush1.msra.mxu0 0.0
      %136 = vmatprep.subr.mxu0 0.0
      %137 = vmatpush1.msra.mxu0 0.0
      %138 = vmatprep.subr.mxu0 0.0
      %139 = vmatpush1.msra.mxu0 0.0
      %140 = vmatprep.subr.mxu0 0.0
      %141 = vmatpush1.msra.mxu0 0.0
      %142 = vmatprep.subr.mxu0 0.0
      %143 = vmatpush1.msra.mxu0 0.0
      %144 = vmatprep.subr.mxu0 0.0
      %145 = vmatpush1.msra.mxu0 0.0
      %146 = vmatprep.subr.mxu0 0.0
      %147 = vmatpush1.msra.mxu0 0.0
      %148 = vmatprep.subr.mxu0 0.0
      %149 = vmatpush1.msra.mxu0 0.0
      %150 = vmatprep.subr.mxu0 0.0
      %151 = vmatpush1.msra.mxu0 0.0
      %152 = vmatprep.subr.mxu0 0.0
      %153 = vmatpush1.msra.mxu0 0.0
      %154 = vmatprep.mubr.f32.mxu0 0.0
      %155 = vmatmul.mubr.f32.gmra.mrb[0].mxu0 %v88
      %v156 = vpop.f32.mrb[0].mxu0
      %v157 = vadd.f32 %v85, %v156
      %v158 = vpop.f32.mrb[0].mxu0
      %159 = vdwg.mxu0
      %v160 = vadd.f32 %v157, %v53
      %v161 = vmul.f32 %v160, 0.909
      %v162 = vmul.f32 %v160, 0.5
      %v163 = vtanh.pop %v162
      %v164 = vmul.f32 %v163, 0.5
      %v165 = vadd.f32 %v164, 0.5
      %v166 = vmul.f32 %v161, %v165
      %v168 = vlaneseq
      %v169 = vshrl.u32 %v168, 7
      %v170 = vsub.s32 0, %v169
      %v171 = vrot.slane %v71, %v170
      %vm173 = vcmask 523264
      %v175 = vsel %vm173, %v166, 0
      %177 = vmatprep.subr.mxu0 0.0
      %178 = vmatpush1.msra.mxu0 %v63
      %179 = vmatprep.subr.mxu0 0.0
      %180 = vmatpush1.msra.mxu0 %v64
      %181 = vmatprep.subr.mxu0 0.0
      %182 = vmatpush1.msra.mxu0 %v65
      %183 = vmatprep.subr.mxu0 0.0
      %184 = vmatpush1.msra.mxu0 %v66
      %185 = vmatprep.subr.mxu0 0.0
      %186 = vmatpush1.msra.mxu0 %v67
      %187 = vmatprep.subr.mxu0 0.0
      %188 = vmatpush1.msra.mxu0 %v68
      %189 = vmatprep.subr.mxu0 0.0
      %190 = vmatpush1.msra.mxu0 %v69
      %191 = vmatprep.subr.mxu0 0.0
      %192 = vmatpush1.msra.mxu0 %v70
      %193 = vmatprep.subr.mxu0 0.0
      %194 = vmatpush1.msra.mxu0 0.0
      %195 = vmatprep.subr.mxu0 0.0
      %196 = vmatpush1.msra.mxu0 0.0
      %197 = vmatprep.subr.mxu0 0.0
      %198 = vmatpush1.msra.mxu0 0.0
      %199 = vmatprep.subr.mxu0 0.0
      %200 = vmatpush1.msra.mxu0 0.0
      %201 = vmatprep.subr.mxu0 0.0
      %202 = vmatpush1.msra.mxu0 0.0
      %203 = vmatprep.subr.mxu0 0.0
      %204 = vmatpush1.msra.mxu0 0.0
      %205 = vmatprep.subr.mxu0 0.0
      %206 = vmatpush1.msra.mxu0 0.0
      %207 = vmatprep.subr.mxu0 0.0
      %208 = vmatpush1.msra.mxu0 0.0
      %209 = vmatprep.subr.mxu0 0.0
      %210 = vmatpush1.msra.mxu0 0.0
      %211 = vmatprep.subr.mxu0 0.0
      %212 = vmatpush1.msra.mxu0 0.0
      %213 = vmatprep.subr.mxu0 0.0
      %214 = vmatpush1.msra.mxu0 0.0
      %215 = vmatprep.subr.mxu0 0.0
      %216 = vmatpush1.msra.mxu0 0.0
      %217 = vmatprep.subr.mxu0 0.0
      %218 = vmatpush1.msra.mxu0 0.0
      %219 = vmatprep.subr.mxu0 0.0
      %220 = vmatpush1.msra.mxu0 0.0
      %221 = vmatprep.subr.mxu0 0.0
      %222 = vmatpush1.msra.mxu0 0.0
      %223 = vmatprep.subr.mxu0 0.0
      %224 = vmatpush1.msra.mxu0 0.0
      %225 = vmatprep.subr.mxu0 0.0
      %226 = vmatpush1.msra.mxu0 0.0
      %227 = vmatprep.subr.mxu0 0.0
      %228 = vmatpush1.msra.mxu0 0.0
      %229 = vmatprep.subr.mxu0 0.0
      %230 = vmatpush1.msra.mxu0 0.0
      %231 = vmatprep.subr.mxu0 0.0
      %232 = vmatpush1.msra.mxu0 0.0
      %233 = vmatprep.subr.mxu0 0.0
      %234 = vmatpush1.msra.mxu0 0.0
      %235 = vmatprep.subr.mxu0 0.0
      %236 = vmatpush1.msra.mxu0 0.0
      %237 = vmatprep.subr.mxu0 0.0
      %238 = vmatpush1.msra.mxu0 0.0
      %239 = vmatprep.subr.mxu0 0.0
      %240 = vmatpush1.msra.mxu0 0.0
      %241 = vmatprep.mubr.f32.mxu0 0.0
      %242 = vmatmul.mubr.f32.gmra.mrb[0].mxu0 %v175
      %v243 = vpop.f32.mrb[0].mxu0
      %v244 = vadd.f32 %v171, %v243
      %v245 = vpop.f32.mrb[0].mxu0
      %246 = vdwg.mxu0
      %v247 = vmul.f32 %v244, 0.909
      %v248 = vmul.f32 %v244, 0.5
      %v249 = vtanh.pop %v248
      %v250 = vmul.f32 %v249, 0.5
      %v251 = vadd.f32 %v250, 0.5
      %v252 = vmul.f32 %v247, %v251
      %v254 = vlaneseq
      %v255 = vshrl.u32 %v254, 7
      %v256 = vsub.s32 0, %v255
      %v257 = vrot.slane %v62, %v256
      %v260 = vsel %vm173, %v252, 0
      %262 = vmatprep.subr.mxu0 0.0
      %263 = vmatpush1.msra.mxu0 %v54
      %264 = vmatprep.subr.mxu0 0.0
      %265 = vmatpush1.msra.mxu0 %v55
      %266 = vmatprep.subr.mxu0 0.0
      %267 = vmatpush1.msra.mxu0 %v56
      %268 = vmatprep.subr.mxu0 0.0
      %269 = vmatpush1.msra.mxu0 %v57
      %270 = vmatprep.subr.mxu0 0.0
      %271 = vmatpush1.msra.mxu0 %v58
      %272 = vmatprep.subr.mxu0 0.0
      %273 = vmatpush1.msra.mxu0 %v59
      %274 = vmatprep.subr.mxu0 0.0
      %275 = vmatpush1.msra.mxu0 %v60
      %276 = vmatprep.subr.mxu0 0.0
      %277 = vmatpush1.msra.mxu0 %v61
      %278 = vmatprep.subr.mxu0 0.0
      %279 = vmatpush1.msra.mxu0 0.0
      %280 = vmatprep.subr.mxu0 0.0
      %281 = vmatpush1.msra.mxu0 0.0
      %282 = vmatprep.subr.mxu0 0.0
      %283 = vmatpush1.msra.mxu0 0.0
      %284 = vmatprep.subr.mxu0 0.0
      %285 = vmatpush1.msra.mxu0 0.0
      %286 = vmatprep.subr.mxu0 0.0
      %287 = vmatpush1.msra.mxu0 0.0
      %288 = vmatprep.subr.mxu0 0.0
      %289 = vmatpush1.msra.mxu0 0.0
      %290 = vmatprep.subr.mxu0 0.0
      %291 = vmatpush1.msra.mxu0 0.0
      %292 = vmatprep.subr.mxu0 0.0
      %293 = vmatpush1.msra.mxu0 0.0
      %294 = vmatprep.subr.mxu0 0.0
      %295 = vmatpush1.msra.mxu0 0.0
      %296 = vmatprep.subr.mxu0 0.0
      %297 = vmatpush1.msra.mxu0 0.0
      %298 = vmatprep.subr.mxu0 0.0
      %299 = vmatpush1.msra.mxu0 0.0
      %300 = vmatprep.subr.mxu0 0.0
      %301 = vmatpush1.msra.mxu0 0.0
      %302 = vmatprep.subr.mxu0 0.0
      %303 = vmatpush1.msra.mxu0 0.0
      %304 = vmatprep.subr.mxu0 0.0
      %305 = vmatpush1.msra.mxu0 0.0
      %306 = vmatprep.subr.mxu0 0.0
      %307 = vmatpush1.msra.mxu0 0.0
      %308 = vmatprep.subr.mxu0 0.0
      %309 = vmatpush1.msra.mxu0 0.0
      %310 = vmatprep.subr.mxu0 0.0
      %311 = vmatpush1.msra.mxu0 0.0
      %312 = vmatprep.subr.mxu0 0.0
      %313 = vmatpush1.msra.mxu0 0.0
      %314 = vmatprep.subr.mxu0 0.0
      %315 = vmatpush1.msra.mxu0 0.0
      %316 = vmatprep.subr.mxu0 0.0
      %317 = vmatpush1.msra.mxu0 0.0
      %318 = vmatprep.subr.mxu0 0.0
      %319 = vmatpush1.msra.mxu0 0.0
      %320 = vmatprep.subr.mxu0 0.0
      %321 = vmatpush1.msra.mxu0 0.0
      %322 = vmatprep.subr.mxu0 0.0
      %323 = vmatpush1.msra.mxu0 0.0
      %324 = vmatprep.subr.mxu0 0.0
      %325 = vmatpush1.msra.mxu0 0.0
      %326 = vmatprep.mubr.f32.mxu0 0.0
      %327 = vmatmul.mubr.f32.gmra.mrb[0].mxu0 %v260
      %v328 = vpop.f32.mrb[0].mxu0
      %v329 = vadd.f32 %v257, %v328
      %v330 = vpop.f32.mrb[0].mxu0
      %331 = vdwg.mxu0
      %v332 = vtanh.pop %v329
      %333 = vst.msk [vmem:[#allocation4] sm:$0xff] %vm77, %v332
      %335 = vrot.lane.b32.xlu0 %v332, 112
      %v336 = vpop.permute.xlu0 %335
      %338 = vst.msk [vmem:[#allocation5] sm:$0xff] %vm173, %v336
    $region53: #{forward.1} parent=1 // pred_fallthru
      _
    %s339 = smul.u32 0, 8
    %v340 = vld [vmem:[#allocation2] sm:$0xff]
    %v341 = vld [vmem:[#allocation3] sm:$0xff]
    %v342 = vld [vmem:[#allocation4] sm:$0xff]
    %v343 = vld [vmem:[#allocation5] sm:$0xff]
    %s344 = sld [smem:[#allocation6 + %s339]]
    %v345 = vld [vmem:[%s1] sm:$0xff]
    %v346 = vld [vmem:[%s2] sm:$0x1]
    %v347 = vmul.f32 %v343, %v345
    %349 = vrot.lane.b32.xlu0 %v347, 112
    %v350 = vpop.permute.xlu0 %349
    %v352 = vadd.f32 %v347, %v350
    %353 = vrot.lane.b32.xlu0 %v347, 96
    %v354 = vpop.permute.xlu0 %353
    %v356 = vadd.f32 %v352, %v354
    %357 = vrot.lane.b32.xlu0 %v347, 80
    %v358 = vpop.permute.xlu0 %357
    %v360 = vadd.f32 %v356, %v358
    %v361 = vmul.f32 %v340, 2.0
    %v362 = vsub.f32 %v361, %v341
    %v363 = vstv %s344
    %v364 = vmul.f32 %v342, %v363
    %v365 = vadd.f32 %v362, %v364
    %v366 = vadd.f32 %v365, %v360
    %v368 = vlaneseq
    %v369 = vshrl.u32 %v368, 7
    %v370 = vsub.s32 0, %v369
    %v371 = vrot.slane %v346, %v370
    %vm373 = vcmask 130048
    %v375 = vsel %vm373, %v366, 0
    %377 = vmatprep.subr.mxu0 0.0
    %378 = vmatpush1.msra.mxu0 %v51
    %379 = vmatprep.subr.mxu0 0.0
    %380 = vmatpush1.msra.mxu0 %v52
    %381 = vmatprep.subr.mxu0 0.0
    %382 = vmatpush1.msra.mxu0 0.0
    %383 = vmatprep.subr.mxu0 0.0
    %384 = vmatpush1.msra.mxu0 0.0
    %385 = vmatprep.subr.mxu0 0.0
    %386 = vmatpush1.msra.mxu0 0.0
    %387 = vmatprep.subr.mxu0 0.0
    %388 = vmatpush1.msra.mxu0 0.0
    %389 = vmatprep.subr.mxu0 0.0
    %390 = vmatpush1.msra.mxu0 0.0
    %391 = vmatprep.subr.mxu0 0.0
    %392 = vmatpush1.msra.mxu0 0.0
    %393 = vmatprep.subr.mxu0 0.0
    %394 = vmatpush1.msra.mxu0 0.0
    %395 = vmatprep.subr.mxu0 0.0
    %396 = vmatpush1.msra.mxu0 0.0
    %397 = vmatprep.subr.mxu0 0.0
    %398 = vmatpush1.msra.mxu0 0.0
    %399 = vmatprep.subr.mxu0 0.0
    %400 = vmatpush1.msra.mxu0 0.0
    %401 = vmatprep.subr.mxu0 0.0
    %402 = vmatpush1.msra.mxu0 0.0
    %403 = vmatprep.subr.mxu0 0.0
    %404 = vmatpush1.msra.mxu0 0.0
    %405 = vmatprep.subr.mxu0 0.0
    %406 = vmatpush1.msra.mxu0 0.0
    %407 = vmatprep.subr.mxu0 0.0
    %408 = vmatpush1.msra.mxu0 0.0
    %409 = vmatprep.subr.mxu0 0.0
    %410 = vmatpush1.msra.mxu0 0.0
    %411 = vmatprep.subr.mxu0 0.0
    %412 = vmatpush1.msra.mxu0 0.0
    %413 = vmatprep.subr.mxu0 0.0
    %414 = vmatpush1.msra.mxu0 0.0
    %415 = vmatprep.subr.mxu0 0.0
    %416 = vmatpush1.msra.mxu0 0.0
    %417 = vmatprep.subr.mxu0 0.0
    %418 = vmatpush1.msra.mxu0 0.0
    %419 = vmatprep.subr.mxu0 0.0
    %420 = vmatpush1.msra.mxu0 0.0
    %421 = vmatprep.subr.mxu0 0.0
    %422 = vmatpush1.msra.mxu0 0.0
    %423 = vmatprep.subr.mxu0 0.0
    %424 = vmatpush1.msra.mxu0 0.0
    %425 = vmatprep.subr.mxu0 0.0
    %426 = vmatpush1.msra.mxu0 0.0
    %427 = vmatprep.subr.mxu0 0.0
    %428 = vmatpush1.msra.mxu0 0.0
    %429 = vmatprep.subr.mxu0 0.0
    %430 = vmatpush1.msra.mxu0 0.0
    %431 = vmatprep.subr.mxu0 0.0
    %432 = vmatpush1.msra.mxu0 0.0
    %433 = vmatprep.subr.mxu0 0.0
    %434 = vmatpush1.msra.mxu0 0.0
    %435 = vmatprep.subr.mxu0 0.0
    %436 = vmatpush1.msra.mxu0 0.0
    %437 = vmatprep.subr.mxu0 0.0
    %438 = vmatpush1.msra.mxu0 0.0
    %439 = vmatprep.subr.mxu0 0.0
    %440 = vmatpush1.msra.mxu0 0.0
    %441 = vmatprep.mubr.f32.mxu0 0.0
    %442 = vmatmul.mubr.f32.gmra.mrb[0].mxu0 %v375
    %v443 = vpop.f32.mrb[0].mxu0
    %v444 = vadd.f32 %v371, %v443
    %v445 = vpop.f32.mrb[0].mxu0
    %446 = vdwg.mxu0
    %v447 = vadd.f32 %v444, %v53
    %v448 = vmul.f32 %v447, 0.909
    %v449 = vmul.f32 %v447, 0.5
    %v450 = vtanh.pop %v449
    %v451 = vmul.f32 %v450, 0.5
    %v452 = vadd.f32 %v451, 0.5
    %v453 = vmul.f32 %v448, %v452
    %v455 = vlaneseq
    %v456 = vshrl.u32 %v455, 7
    %v457 = vsub.s32 0, %v456
    %v458 = vrot.slane %v71, %v457
    %vm460 = vcmask 523264
    %v462 = vsel %vm460, %v453, 0
    %464 = vmatprep.subr.mxu0 0.0
    %465 = vmatpush1.msra.mxu0 %v63
    %466 = vmatprep.subr.mxu0 0.0
    %467 = vmatpush1.msra.mxu0 %v64
    %468 = vmatprep.subr.mxu0 0.0
    %469 = vmatpush1.msra.mxu0 %v65
    %470 = vmatprep.subr.mxu0 0.0
    %471 = vmatpush1.msra.mxu0 %v66
    %472 = vmatprep.subr.mxu0 0.0
    %473 = vmatpush1.msra.mxu0 %v67
    %474 = vmatprep.subr.mxu0 0.0
    %475 = vmatpush1.msra.mxu0 %v68
    %476 = vmatprep.subr.mxu0 0.0
    %477 = vmatpush1.msra.mxu0 %v69
    %478 = vmatprep.subr.mxu0 0.0
    %479 = vmatpush1.msra.mxu0 %v70
    %480 = vmatprep.subr.mxu0 0.0
    %481 = vmatpush1.msra.mxu0 0.0
    %482 = vmatprep.subr.mxu0 0.0
    %483 = vmatpush1.msra.mxu0 0.0
    %484 = vmatprep.subr.mxu0 0.0
    %485 = vmatpush1.msra.mxu0 0.0
    %486 = vmatprep.subr.mxu0 0.0
    %487 = vmatpush1.msra.mxu0 0.0
    %488 = vmatprep.subr.mxu0 0.0
    %489 = vmatpush1.msra.mxu0 0.0
    %490 = vmatprep.subr.mxu0 0.0
    %491 = vmatpush1.msra.mxu0 0.0
    %492 = vmatprep.subr.mxu0 0.0
    %493 = vmatpush1.msra.mxu0 0.0
    %494 = vmatprep.subr.mxu0 0.0
    %495 = vmatpush1.msra.mxu0 0.0
    %496 = vmatprep.subr.mxu0 0.0
    %497 = vmatpush1.msra.mxu0 0.0
    %498 = vmatprep.subr.mxu0 0.0
    %499 = vmatpush1.msra.mxu0 0.0
    %500 = vmatprep.subr.mxu0 0.0
    %501 = vmatpush1.msra.mxu0 0.0
    %502 = vmatprep.subr.mxu0 0.0
    %503 = vmatpush1.msra.mxu0 0.0
    %504 = vmatprep.subr.mxu0 0.0
    %505 = vmatpush1.msra.mxu0 0.0
    %506 = vmatprep.subr.mxu0 0.0
    %507 = vmatpush1.msra.mxu0 0.0
    %508 = vmatprep.subr.mxu0 0.0
    %509 = vmatpush1.msra.mxu0 0.0
    %510 = vmatprep.subr.mxu0 0.0
    %511 = vmatpush1.msra.mxu0 0.0
    %512 = vmatprep.subr.mxu0 0.0
    %513 = vmatpush1.msra.mxu0 0.0
    %514 = vmatprep.subr.mxu0 0.0
    %515 = vmatpush1.msra.mxu0 0.0
    %516 = vmatprep.subr.mxu0 0.0
    %517 = vmatpush1.msra.mxu0 0.0
    %518 = vmatprep.subr.mxu0 0.0
    %519 = vmatpush1.msra.mxu0 0.0
    %520 = vmatprep.subr.mxu0 0.0
    %521 = vmatpush1.msra.mxu0 0.0
    %522 = vmatprep.subr.mxu0 0.0
    %523 = vmatpush1.msra.mxu0 0.0
    %524 = vmatprep.subr.mxu0 0.0
    %525 = vmatpush1.msra.mxu0 0.0
    %526 = vmatprep.subr.mxu0 0.0
    %527 = vmatpush1.msra.mxu0 0.0
    %528 = vmatprep.mubr.f32.mxu0 0.0
    %529 = vmatmul.mubr.f32.gmra.mrb[0].mxu0 %v462
    %v530 = vpop.f32.mrb[0].mxu0
    %v531 = vadd.f32 %v458, %v530
    %v532 = vpop.f32.mrb[0].mxu0
    %533 = vdwg.mxu0
    %v534 = vmul.f32 %v531, 0.909
    %v535 = vmul.f32 %v531, 0.5
    %v536 = vtanh.pop %v535
    %v537 = vmul.f32 %v536, 0.5
    %v538 = vadd.f32 %v537, 0.5
    %v539 = vmul.f32 %v534, %v538
    %v541 = vlaneseq
    %v542 = vshrl.u32 %v541, 7
    %v543 = vsub.s32 0, %v542
    %v544 = vrot.slane %v62, %v543
    %v547 = vsel %vm460, %v539, 0
    %549 = vmatprep.subr.mxu0 0.0
    %550 = vmatpush1.msra.mxu0 %v54
    %551 = vmatprep.subr.mxu0 0.0
    %552 = vmatpush1.msra.mxu0 %v55
    %553 = vmatprep.subr.mxu0 0.0
    %554 = vmatpush1.msra.mxu0 %v56
    %555 = vmatprep.subr.mxu0 0.0
    %556 = vmatpush1.msra.mxu0 %v57
    %557 = vmatprep.subr.mxu0 0.0
    %558 = vmatpush1.msra.mxu0 %v58
    %559 = vmatprep.subr.mxu0 0.0
    %560 = vmatpush1.msra.mxu0 %v59
    %561 = vmatprep.subr.mxu0 0.0
    %562 = vmatpush1.msra.mxu0 %v60
    %563 = vmatprep.subr.mxu0 0.0
    %564 = vmatpush1.msra.mxu0 %v61
    %565 = vmatprep.subr.mxu0 0.0
    %566 = vmatpush1.msra.mxu0 0.0
    %567 = vmatprep.subr.mxu0 0.0
    %568 = vmatpush1.msra.mxu0 0.0
    %569 = vmatprep.subr.mxu0 0.0
    %570 = vmatpush1.msra.mxu0 0.0
    %571 = vmatprep.subr.mxu0 0.0
    %572 = vmatpush1.msra.mxu0 0.0
    %573 = vmatprep.subr.mxu0 0.0
    %574 = vmatpush1.msra.mxu0 0.0
    %575 = vmatprep.subr.mxu0 0.0
    %576 = vmatpush1.msra.mxu0 0.0
    %577 = vmatprep.subr.mxu0 0.0
    %578 = vmatpush1.msra.mxu0 0.0
    %579 = vmatprep.subr.mxu0 0.0
    %580 = vmatpush1.msra.mxu0 0.0
    %581 = vmatprep.subr.mxu0 0.0
    %582 = vmatpush1.msra.mxu0 0.0
    %583 = vmatprep.subr.mxu0 0.0
    %584 = vmatpush1.msra.mxu0 0.0
    %585 = vmatprep.subr.mxu0 0.0
    %586 = vmatpush1.msra.mxu0 0.0
    %587 = vmatprep.subr.mxu0 0.0
    %588 = vmatpush1.msra.mxu0 0.0
    %589 = vmatprep.subr.mxu0 0.0
    %590 = vmatpush1.msra.mxu0 0.0
    %591 = vmatprep.subr.mxu0 0.0
    %592 = vmatpush1.msra.mxu0 0.0
    %593 = vmatprep.subr.mxu0 0.0
    %594 = vmatpush1.msra.mxu0 0.0
    %595 = vmatprep.subr.mxu0 0.0
    %596 = vmatpush1.msra.mxu0 0.0
    %597 = vmatprep.subr.mxu0 0.0
    %598 = vmatpush1.msra.mxu0 0.0
    %599 = vmatprep.subr.mxu0 0.0
    %600 = vmatpush1.msra.mxu0 0.0
    %601 = vmatprep.subr.mxu0 0.0
    %602 = vmatpush1.msra.mxu0 0.0
    %603 = vmatprep.subr.mxu0 0.0
    %604 = vmatpush1.msra.mxu0 0.0
    %605 = vmatprep.subr.mxu0 0.0
    %606 = vmatpush1.msra.mxu0 0.0
    %607 = vmatprep.subr.mxu0 0.0
    %608 = vmatpush1.msra.mxu0 0.0
    %609 = vmatprep.subr.mxu0 0.0
    %610 = vmatpush1.msra.mxu0 0.0
    %611 = vmatprep.subr.mxu0 0.0
    %612 = vmatpush1.msra.mxu0 0.0
    %613 = vmatprep.mubr.f32.mxu0 0.0
    %614 = vmatmul.mubr.f32.gmra.mrb[0].mxu0 %v547
    %v615 = vpop.f32.mrb[0].mxu0
    %v616 = vadd.f32 %v544, %v615
    %v617 = vpop.f32.mrb[0].mxu0
    %618 = vdwg.mxu0
    %v619 = vtanh.pop %v616
    %621 = vrot.lane.b32.xlu0 %v345, 16
    %v622 = vpop.permute.xlu0 %621
    %v624 = vmul.f32 %v619, %v622
    %626 = vrot.lane.b32.xlu0 %v624, 112
    %v627 = vpop.permute.xlu0 %626
    %v629 = vadd.f32 %v624, %v627
    %630 = vrot.lane.b32.xlu0 %v624, 96
    %v631 = vpop.permute.xlu0 %630
    %v633 = vadd.f32 %v629, %v631
    %634 = vrot.lane.b32.xlu0 %v624, 80
    %v635 = vpop.permute.xlu0 %634
    %v637 = vadd.f32 %v633, %v635
    %s638 = smul.f32 %s344, 0.5
    %v639 = vadd.f32 %v342, %v619
    %v640 = vstv %s638
    %v641 = vmul.f32 %v640, %v639
    %v642 = vadd.f32 %v340, %v641
    %644 = vrot.lane.b32.xlu0 %v637, 112
    %v645 = vpop.permute.xlu0 %644
    %v647 = vadd.f32 %v360, %v645
    %v648 = vmul.f32 %v647, 0.5
    %v649 = vadd.f32 %v642, %v648
    %650 = vst.msk [vmem:[%s11] sm:$0xff] %vm373, %v649
    %s651 = sadd.s32 %s339, 1
    %s652 = sld [smem:[#allocation6 + %s651]]
    %s653 = scalar_lea.vmem %s1, 8
    %v654 = vld [vmem:[%s653] sm:$0xff]
    %s655 = scalar_lea.vmem %s2, 1
    %v656 = vld [vmem:[%s655] sm:$0x1]
    %658 = vrot.lane.b32.xlu0 %v654, 16
    %v659 = vpop.permute.xlu0 %658
    %v661 = vmul.f32 %v619, %v659
    %663 = vrot.lane.b32.xlu0 %v661, 112
    %v664 = vpop.permute.xlu0 %663
    %v666 = vadd.f32 %v661, %v664
    %667 = vrot.lane.b32.xlu0 %v661, 96
    %v668 = vpop.permute.xlu0 %667
    %v670 = vadd.f32 %v666, %v668
    %671 = vrot.lane.b32.xlu0 %v661, 80
    %v672 = vpop.permute.xlu0 %671
    %v674 = vadd.f32 %v670, %v672
    %v675 = vmul.f32 %v649, 2.0
    %v676 = vsub.f32 %v675, %v366
    %v677 = vstv %s652
    %v678 = vmul.f32 %v619, %v677
    %v679 = vadd.f32 %v676, %v678
    %681 = vrot.lane.b32.xlu0 %v674, 112
    %v682 = vpop.permute.xlu0 %681
    %v684 = vadd.f32 %v679, %v682
    %v686 = vlaneseq
    %v687 = vshrl.u32 %v686, 7
    %v688 = vsub.s32 0, %v687
    %v689 = vrot.slane %v656, %v688
    %v692 = vsel %vm373, %v684, 0
    %694 = vmatprep.subr.mxu0 0.0
    %695 = vmatpush1.msra.mxu0 %v51
    %696 = vmatprep.subr.mxu0 0.0
    %697 = vmatpush1.msra.mxu0 %v52
    %698 = vmatprep.subr.mxu0 0.0
    %699 = vmatpush1.msra.mxu0 0.0
    %700 = vmatprep.subr.mxu0 0.0
    %701 = vmatpush1.msra.mxu0 0.0
    %702 = vmatprep.subr.mxu0 0.0
    %703 = vmatpush1.msra.mxu0 0.0
    %704 = vmatprep.subr.mxu0 0.0
    %705 = vmatpush1.msra.mxu0 0.0
    %706 = vmatprep.subr.mxu0 0.0
    %707 = vmatpush1.msra.mxu0 0.0
    %708 = vmatprep.subr.mxu0 0.0
    %709 = vmatpush1.msra.mxu0 0.0
    %710 = vmatprep.subr.mxu0 0.0
    %711 = vmatpush1.msra.mxu0 0.0
    %712 = vmatprep.subr.mxu0 0.0
    %713 = vmatpush1.msra.mxu0 0.0
    %714 = vmatprep.subr.mxu0 0.0
    %715 = vmatpush1.msra.mxu0 0.0
    %716 = vmatprep.subr.mxu0 0.0
    %717 = vmatpush1.msra.mxu0 0.0
    %718 = vmatprep.subr.mxu0 0.0
    %719 = vmatpush1.msra.mxu0 0.0
    %720 = vmatprep.subr.mxu0 0.0
    %721 = vmatpush1.msra.mxu0 0.0
    %722 = vmatprep.subr.mxu0 0.0
    %723 = vmatpush1.msra.mxu0 0.0
    %724 = vmatprep.subr.mxu0 0.0
    %725 = vmatpush1.msra.mxu0 0.0
    %726 = vmatprep.subr.mxu0 0.0
    %727 = vmatpush1.msra.mxu0 0.0
    %728 = vmatprep.subr.mxu0 0.0
    %729 = vmatpush1.msra.mxu0 0.0
    %730 = vmatprep.subr.mxu0 0.0
    %731 = vmatpush1.msra.mxu0 0.0
    %732 = vmatprep.subr.mxu0 0.0
    %733 = vmatpush1.msra.mxu0 0.0
    %734 = vmatprep.subr.mxu0 0.0
    %735 = vmatpush1.msra.mxu0 0.0
    %736 = vmatprep.subr.mxu0 0.0
    %737 = vmatpush1.msra.mxu0 0.0
    %738 = vmatprep.subr.mxu0 0.0
    %739 = vmatpush1.msra.mxu0 0.0
    %740 = vmatprep.subr.mxu0 0.0
    %741 = vmatpush1.msra.mxu0 0.0
    %742 = vmatprep.subr.mxu0 0.0
    %743 = vmatpush1.msra.mxu0 0.0
    %744 = vmatprep.subr.mxu0 0.0
    %745 = vmatpush1.msra.mxu0 0.0
    %746 = vmatprep.subr.mxu0 0.0
    %747 = vmatpush1.msra.mxu0 0.0
    %748 = vmatprep.subr.mxu0 0.0
    %749 = vmatpush1.msra.mxu0 0.0
    %750 = vmatprep.subr.mxu0 0.0
    %751 = vmatpush1.msra.mxu0 0.0
    %752 = vmatprep.subr.mxu0 0.0
    %753 = vmatpush1.msra.mxu0 0.0
    %754 = vmatprep.subr.mxu0 0.0
    %755 = vmatpush1.msra.mxu0 0.0
    %756 = vmatprep.subr.mxu0 0.0
    %757 = vmatpush1.msra.mxu0 0.0
    %758 = vmatprep.mubr.f32.mxu0 0.0
    %759 = vmatmul.mubr.f32.gmra.mrb[0].mxu0 %v692
    %v760 = vpop.f32.mrb[0].mxu0
    %v761 = vadd.f32 %v689, %v760
    %v762 = vpop.f32.mrb[0].mxu0
    %763 = vdwg.mxu0
    %v764 = vadd.f32 %v761, %v53
    %v765 = vmul.f32 %v764, 0.909
    %v766 = vmul.f32 %v764, 0.5
    %v767 = vtanh.pop %v766
    %v768 = vmul.f32 %v767, 0.5
    %v769 = vadd.f32 %v768, 0.5
    %v770 = vmul.f32 %v765, %v769
    %v772 = vsel %vm460, %v770, 0
    %774 = vmatprep.subr.mxu0 0.0
    %775 = vmatpush1.msra.mxu0 %v63
    %776 = vmatprep.subr.mxu0 0.0
    %777 = vmatpush1.msra.mxu0 %v64
    %778 = vmatprep.subr.mxu0 0.0
    %779 = vmatpush1.msra.mxu0 %v65
    %780 = vmatprep.subr.mxu0 0.0
    %781 = vmatpush1.msra.mxu0 %v66
    %782 = vmatprep.subr.mxu0 0.0
    %783 = vmatpush1.msra.mxu0 %v67
    %784 = vmatprep.subr.mxu0 0.0
    %785 = vmatpush1.msra.mxu0 %v68
    %786 = vmatprep.subr.mxu0 0.0
    %787 = vmatpush1.msra.mxu0 %v69
    %788 = vmatprep.subr.mxu0 0.0
    %789 = vmatpush1.msra.mxu0 %v70
    %790 = vmatprep.subr.mxu0 0.0
    %791 = vmatpush1.msra.mxu0 0.0
    %792 = vmatprep.subr.mxu0 0.0
    %793 = vmatpush1.msra.mxu0 0.0
    %794 = vmatprep.subr.mxu0 0.0
    %795 = vmatpush1.msra.mxu0 0.0
    %796 = vmatprep.subr.mxu0 0.0
    %797 = vmatpush1.msra.mxu0 0.0
    %798 = vmatprep.subr.mxu0 0.0
    %799 = vmatpush1.msra.mxu0 0.0
    %800 = vmatprep.subr.mxu0 0.0
    %801 = vmatpush1.msra.mxu0 0.0
    %802 = vmatprep.subr.mxu0 0.0
    %803 = vmatpush1.msra.mxu0 0.0
    %804 = vmatprep.subr.mxu0 0.0
    %805 = vmatpush1.msra.mxu0 0.0
    %806 = vmatprep.subr.mxu0 0.0
    %807 = vmatpush1.msra.mxu0 0.0
    %808 = vmatprep.subr.mxu0 0.0
    %809 = vmatpush1.msra.mxu0 0.0
    %810 = vmatprep.subr.mxu0 0.0
    %811 = vmatpush1.msra.mxu0 0.0
    %812 = vmatprep.subr.mxu0 0.0
    %813 = vmatpush1.msra.mxu0 0.0
    %814 = vmatprep.subr.mxu0 0.0
    %815 = vmatpush1.msra.mxu0 0.0
    %816 = vmatprep.subr.mxu0 0.0
    %817 = vmatpush1.msra.mxu0 0.0
    %818 = vmatprep.subr.mxu0 0.0
    %819 = vmatpush1.msra.mxu0 0.0
    %820 = vmatprep.subr.mxu0 0.0
    %821 = vmatpush1.msra.mxu0 0.0
    %822 = vmatprep.subr.mxu0 0.0
    %823 = vmatpush1.msra.mxu0 0.0
    %824 = vmatprep.subr.mxu0 0.0
    %825 = vmatpush1.msra.mxu0 0.0
    %826 = vmatprep.subr.mxu0 0.0
    %827 = vmatpush1.msra.mxu0 0.0
    %828 = vmatprep.subr.mxu0 0.0
    %829 = vmatpush1.msra.mxu0 0.0
    %830 = vmatprep.subr.mxu0 0.0
    %831 = vmatpush1.msra.mxu0 0.0
    %832 = vmatprep.subr.mxu0 0.0
    %833 = vmatpush1.msra.mxu0 0.0
    %834 = vmatprep.subr.mxu0 0.0
    %835 = vmatpush1.msra.mxu0 0.0
    %836 = vmatprep.subr.mxu0 0.0
    %837 = vmatpush1.msra.mxu0 0.0
    %838 = vmatprep.mubr.f32.mxu0 0.0
    %839 = vmatmul.mubr.f32.gmra.mrb[0].mxu0 %v772
    %v840 = vpop.f32.mrb[0].mxu0
    %v841 = vadd.f32 %v458, %v840
    %v842 = vpop.f32.mrb[0].mxu0
    %843 = vdwg.mxu0
    %v844 = vmul.f32 %v841, 0.909
    %v845 = vmul.f32 %v841, 0.5
    %v846 = vtanh.pop %v845
    %v847 = vmul.f32 %v846, 0.5
    %v848 = vadd.f32 %v847, 0.5
    %v849 = vmul.f32 %v844, %v848
    %v851 = vsel %vm460, %v849, 0
    %853 = vmatprep.subr.mxu0 0.0
    %854 = vmatpush1.msra.mxu0 %v54
    %855 = vmatprep.subr.mxu0 0.0
    %856 = vmatpush1.msra.mxu0 %v55
    %857 = vmatprep.subr.mxu0 0.0
    %858 = vmatpush1.msra.mxu0 %v56
    %859 = vmatprep.subr.mxu0 0.0
    %860 = vmatpush1.msra.mxu0 %v57
    %861 = vmatprep.subr.mxu0 0.0
    %862 = vmatpush1.msra.mxu0 %v58
    %863 = vmatprep.subr.mxu0 0.0
    %864 = vmatpush1.msra.mxu0 %v59
    %865 = vmatprep.subr.mxu0 0.0
    %866 = vmatpush1.msra.mxu0 %v60
    %867 = vmatprep.subr.mxu0 0.0
    %868 = vmatpush1.msra.mxu0 %v61
    %869 = vmatprep.subr.mxu0 0.0
    %870 = vmatpush1.msra.mxu0 0.0
    %871 = vmatprep.subr.mxu0 0.0
    %872 = vmatpush1.msra.mxu0 0.0
    %873 = vmatprep.subr.mxu0 0.0
    %874 = vmatpush1.msra.mxu0 0.0
    %875 = vmatprep.subr.mxu0 0.0
    %876 = vmatpush1.msra.mxu0 0.0
    %877 = vmatprep.subr.mxu0 0.0
    %878 = vmatpush1.msra.mxu0 0.0
    %879 = vmatprep.subr.mxu0 0.0
    %880 = vmatpush1.msra.mxu0 0.0
    %881 = vmatprep.subr.mxu0 0.0
    %882 = vmatpush1.msra.mxu0 0.0
    %883 = vmatprep.subr.mxu0 0.0
    %884 = vmatpush1.msra.mxu0 0.0
    %885 = vmatprep.subr.mxu0 0.0
    %886 = vmatpush1.msra.mxu0 0.0
    %887 = vmatprep.subr.mxu0 0.0
    %888 = vmatpush1.msra.mxu0 0.0
    %889 = vmatprep.subr.mxu0 0.0
    %890 = vmatpush1.msra.mxu0 0.0
    %891 = vmatprep.subr.mxu0 0.0
    %892 = vmatpush1.msra.mxu0 0.0
    %893 = vmatprep.subr.mxu0 0.0
    %894 = vmatpush1.msra.mxu0 0.0
    %895 = vmatprep.subr.mxu0 0.0
    %896 = vmatpush1.msra.mxu0 0.0
    %897 = vmatprep.subr.mxu0 0.0
    %898 = vmatpush1.msra.mxu0 0.0
    %899 = vmatprep.subr.mxu0 0.0
    %900 = vmatpush1.msra.mxu0 0.0
    %901 = vmatprep.subr.mxu0 0.0
    %902 = vmatpush1.msra.mxu0 0.0
    %903 = vmatprep.subr.mxu0 0.0
    %904 = vmatpush1.msra.mxu0 0.0
    %905 = vmatprep.subr.mxu0 0.0
    %906 = vmatpush1.msra.mxu0 0.0
    %907 = vmatprep.subr.mxu0 0.0
    %908 = vmatpush1.msra.mxu0 0.0
    %909 = vmatprep.subr.mxu0 0.0
    %910 = vmatpush1.msra.mxu0 0.0
    %911 = vmatprep.subr.mxu0 0.0
    %912 = vmatpush1.msra.mxu0 0.0
    %913 = vmatprep.subr.mxu0 0.0
    %914 = vmatpush1.msra.mxu0 0.0
    %915 = vmatprep.subr.mxu0 0.0
    %916 = vmatpush1.msra.mxu0 0.0
    %917 = vmatprep.mubr.f32.mxu0 0.0
    %918 = vmatmul.mubr.f32.gmra.mrb[0].mxu0 %v851
    %v919 = vpop.f32.mrb[0].mxu0
    %v920 = vadd.f32 %v544, %v919
    %v921 = vpop.f32.mrb[0].mxu0
    %922 = vdwg.mxu0
    %v923 = vtanh.pop %v920
    %v924 = vmul.f32 %v923, %v659
    %926 = vrot.lane.b32.xlu0 %v924, 112
    %v927 = vpop.permute.xlu0 %926
    %v929 = vadd.f32 %v924, %v927
    %930 = vrot.lane.b32.xlu0 %v924, 96
    %v931 = vpop.permute.xlu0 %930
    %v933 = vadd.f32 %v929, %v931
    %934 = vrot.lane.b32.xlu0 %v924, 80
    %v935 = vpop.permute.xlu0 %934
    %v937 = vadd.f32 %v933, %v935
    %s938 = smul.f32 %s652, 0.5
    %v939 = vadd.f32 %v619, %v923
    %v940 = vstv %s938
    %v941 = vmul.f32 %v940, %v939
    %v942 = vadd.f32 %v649, %v941
    %v943 = vadd.f32 %v674, %v937
    %v944 = vmul.f32 %v943, 0.5
    %946 = vrot.lane.b32.xlu0 %v944, 112
    %v947 = vpop.permute.xlu0 %946
    %v949 = vadd.f32 %v942, %v947
    %s950 = scalar_lea.vmem %s11, 8
    %951 = vst.msk [vmem:[%s950] sm:$0xff] %vm373, %v949
    %s952 = sadd.s32 %s339, 2
    %s953 = sld [smem:[#allocation6 + %s952]]
    %s954 = scalar_lea.vmem %s1, 16
    %v955 = vld [vmem:[%s954] sm:$0xff]
    %s956 = scalar_lea.vmem %s2, 2
    %v957 = vld [vmem:[%s956] sm:$0x1]
    %959 = vrot.lane.b32.xlu0 %v955, 16
    %v960 = vpop.permute.xlu0 %959
    %v962 = vmul.f32 %v923, %v960
    %964 = vrot.lane.b32.xlu0 %v962, 112
    %v965 = vpop.permute.xlu0 %964
    %v967 = vadd.f32 %v962, %v965
    %968 = vrot.lane.b32.xlu0 %v962, 96
    %v969 = vpop.permute.xlu0 %968
    %v971 = vadd.f32 %v967, %v969
    %972 = vrot.lane.b32.xlu0 %v962, 80
    %v973 = vpop.permute.xlu0 %972
    %v975 = vadd.f32 %v971, %v973
    %v976 = vmul.f32 %v949, 2.0
    %v977 = vsub.f32 %v976, %v684
    %v978 = vstv %s953
    %v979 = vmul.f32 %v923, %v978
    %v980 = vadd.f32 %v977, %v979
    %982 = vrot.lane.b32.xlu0 %v975, 112
    %v983 = vpop.permute.xlu0 %982
    %v985 = vadd.f32 %v980, %v983
    %v987 = vlaneseq
    %v988 = vshrl.u32 %v987, 7
    %v989 = vsub.s32 0, %v988
    %v990 = vrot.slane %v957, %v989
    %v993 = vsel %vm373, %v985, 0
    %995 = vmatprep.subr.mxu0 0.0
    %996 = vmatpush1.msra.mxu0 %v51
    %997 = vmatprep.subr.mxu0 0.0
    %998 = vmatpush1.msra.mxu0 %v52
    %999 = vmatprep.subr.mxu0 0.0
    %1000 = vmatpush1.msra.mxu0 0.0
    %1001 = vmatprep.subr.mxu0 0.0
    %1002 = vmatpush1.msra.mxu0 0.0
    %1003 = vmatprep.subr.mxu0 0.0
    %1004 = vmatpush1.msra.mxu0 0.0
    %1005 = vmatprep.subr.mxu0 0.0
    %1006 = vmatpush1.msra.mxu0 0.0
    %1007 = vmatprep.subr.mxu0 0.0
    %1008 = vmatpush1.msra.mxu0 0.0
    %1009 = vmatprep.subr.mxu0 0.0
    %1010 = vmatpush1.msra.mxu0 0.0
    %1011 = vmatprep.subr.mxu0 0.0
    %1012 = vmatpush1.msra.mxu0 0.0
    %1013 = vmatprep.subr.mxu0 0.0
    %1014 = vmatpush1.msra.mxu0 0.0
    %1015 = vmatprep.subr.mxu0 0.0
    %1016 = vmatpush1.msra.mxu0 0.0
    %1017 = vmatprep.subr.mxu0 0.0
    %1018 = vmatpush1.msra.mxu0 0.0
    %1019 = vmatprep.subr.mxu0 0.0
    %1020 = vmatpush1.msra.mxu0 0.0
    %1021 = vmatprep.subr.mxu0 0.0
    %1022 = vmatpush1.msra.mxu0 0.0
    %1023 = vmatprep.subr.mxu0 0.0
    %1024 = vmatpush1.msra.mxu0 0.0
    %1025 = vmatprep.subr.mxu0 0.0
    %1026 = vmatpush1.msra.mxu0 0.0
    %1027 = vmatprep.subr.mxu0 0.0
    %1028 = vmatpush1.msra.mxu0 0.0
    %1029 = vmatprep.subr.mxu0 0.0
    %1030 = vmatpush1.msra.mxu0 0.0
    %1031 = vmatprep.subr.mxu0 0.0
    %1032 = vmatpush1.msra.mxu0 0.0
    %1033 = vmatprep.subr.mxu0 0.0
    %1034 = vmatpush1.msra.mxu0 0.0
    %1035 = vmatprep.subr.mxu0 0.0
    %1036 = vmatpush1.msra.mxu0 0.0
    %1037 = vmatprep.subr.mxu0 0.0
    %1038 = vmatpush1.msra.mxu0 0.0
    %1039 = vmatprep.subr.mxu0 0.0
    %1040 = vmatpush1.msra.mxu0 0.0
    %1041 = vmatprep.subr.mxu0 0.0
    %1042 = vmatpush1.msra.mxu0 0.0
    %1043 = vmatprep.subr.mxu0 0.0
    %1044 = vmatpush1.msra.mxu0 0.0
    %1045 = vmatprep.subr.mxu0 0.0
    %1046 = vmatpush1.msra.mxu0 0.0
    %1047 = vmatprep.subr.mxu0 0.0
    %1048 = vmatpush1.msra.mxu0 0.0
    %1049 = vmatprep.subr.mxu0 0.0
    %1050 = vmatpush1.msra.mxu0 0.0
    %1051 = vmatprep.subr.mxu0 0.0
    %1052 = vmatpush1.msra.mxu0 0.0
    %1053 = vmatprep.subr.mxu0 0.0
    %1054 = vmatpush1.msra.mxu0 0.0
    %1055 = vmatprep.subr.mxu0 0.0
    %1056 = vmatpush1.msra.mxu0 0.0
    %1057 = vmatprep.subr.mxu0 0.0
    %1058 = vmatpush1.msra.mxu0 0.0
    %1059 = vmatprep.mubr.f32.mxu0 0.0
    %1060 = vmatmul.mubr.f32.gmra.mrb[0].mxu0 %v993
    %v1061 = vpop.f32.mrb[0].mxu0
    %v1062 = vadd.f32 %v990, %v1061
    %v1063 = vpop.f32.mrb[0].mxu0
    %1064 = vdwg.mxu0
    %v1065 = vadd.f32 %v1062, %v53
    %v1066 = vmul.f32 %v1065, 0.909
    %v1067 = vmul.f32 %v1065, 0.5
    %v1068 = vtanh.pop %v1067
    %v1069 = vmul.f32 %v1068, 0.5
    %v1070 = vadd.f32 %v1069, 0.5
    %v1071 = vmul.f32 %v1066, %v1070
    %v1073 = vsel %vm460, %v1071, 0
    %1075 = vmatprep.subr.mxu0 0.0
    %1076 = vmatpush1.msra.mxu0 %v63
    %1077 = vmatprep.subr.mxu0 0.0
    %1078 = vmatpush1.msra.mxu0 %v64
    %1079 = vmatprep.subr.mxu0 0.0
    %1080 = vmatpush1.msra.mxu0 %v65
    %1081 = vmatprep.subr.mxu0 0.0
    %1082 = vmatpush1.msra.mxu0 %v66
    %1083 = vmatprep.subr.mxu0 0.0
    %1084 = vmatpush1.msra.mxu0 %v67
    %1085 = vmatprep.subr.mxu0 0.0
    %1086 = vmatpush1.msra.mxu0 %v68
    %1087 = vmatprep.subr.mxu0 0.0
    %1088 = vmatpush1.msra.mxu0 %v69
    %1089 = vmatprep.subr.mxu0 0.0
    %1090 = vmatpush1.msra.mxu0 %v70
    %1091 = vmatprep.subr.mxu0 0.0
    %1092 = vmatpush1.msra.mxu0 0.0
    %1093 = vmatprep.subr.mxu0 0.0
    %1094 = vmatpush1.msra.mxu0 0.0
    %1095 = vmatprep.subr.mxu0 0.0
    %1096 = vmatpush1.msra.mxu0 0.0
    %1097 = vmatprep.subr.mxu0 0.0
    %1098 = vmatpush1.msra.mxu0 0.0
    %1099 = vmatprep.subr.mxu0 0.0
    %1100 = vmatpush1.msra.mxu0 0.0
    %1101 = vmatprep.subr.mxu0 0.0
    %1102 = vmatpush1.msra.mxu0 0.0
    %1103 = vmatprep.subr.mxu0 0.0
    %1104 = vmatpush1.msra.mxu0 0.0
    %1105 = vmatprep.subr.mxu0 0.0
    %1106 = vmatpush1.msra.mxu0 0.0
    %1107 = vmatprep.subr.mxu0 0.0
    %1108 = vmatpush1.msra.mxu0 0.0
    %1109 = vmatprep.subr.mxu0 0.0
    %1110 = vmatpush1.msra.mxu0 0.0
    %1111 = vmatprep.subr.mxu0 0.0
    %1112 = vmatpush1.msra.mxu0 0.0
    %1113 = vmatprep.subr.mxu0 0.0
    %1114 = vmatpush1.msra.mxu0 0.0
    %1115 = vmatprep.subr.mxu0 0.0
    %1116 = vmatpush1.msra.mxu0 0.0
    %1117 = vmatprep.subr.mxu0 0.0
    %1118 = vmatpush1.msra.mxu0 0.0
    %1119 = vmatprep.subr.mxu0 0.0
    %1120 = vmatpush1.msra.mxu0 0.0
    %1121 = vmatprep.subr.mxu0 0.0
    %1122 = vmatpush1.msra.mxu0 0.0
    %1123 = vmatprep.subr.mxu0 0.0
    %1124 = vmatpush1.msra.mxu0 0.0
    %1125 = vmatprep.subr.mxu0 0.0
    %1126 = vmatpush1.msra.mxu0 0.0
    %1127 = vmatprep.subr.mxu0 0.0
    %1128 = vmatpush1.msra.mxu0 0.0
    %1129 = vmatprep.subr.mxu0 0.0
    %1130 = vmatpush1.msra.mxu0 0.0
    %1131 = vmatprep.subr.mxu0 0.0
    %1132 = vmatpush1.msra.mxu0 0.0
    %1133 = vmatprep.subr.mxu0 0.0
    %1134 = vmatpush1.msra.mxu0 0.0
    %1135 = vmatprep.subr.mxu0 0.0
    %1136 = vmatpush1.msra.mxu0 0.0
    %1137 = vmatprep.subr.mxu0 0.0
    %1138 = vmatpush1.msra.mxu0 0.0
    %1139 = vmatprep.mubr.f32.mxu0 0.0
    %1140 = vmatmul.mubr.f32.gmra.mrb[0].mxu0 %v1073
    %v1141 = vpop.f32.mrb[0].mxu0
    %v1142 = vadd.f32 %v458, %v1141
    %v1143 = vpop.f32.mrb[0].mxu0
    %1144 = vdwg.mxu0
    %v1145 = vmul.f32 %v1142, 0.909
    %v1146 = vmul.f32 %v1142, 0.5
    %v1147 = vtanh.pop %v1146
    %v1148 = vmul.f32 %v1147, 0.5
    %v1149 = vadd.f32 %v1148, 0.5
    %v1150 = vmul.f32 %v1145, %v1149
    %v1152 = vsel %vm460, %v1150, 0
    %1154 = vmatprep.subr.mxu0 0.0
    %1155 = vmatpush1.msra.mxu0 %v54
    %1156 = vmatprep.subr.mxu0 0.0
    %1157 = vmatpush1.msra.mxu0 %v55
    %1158 = vmatprep.subr.mxu0 0.0
    %1159 = vmatpush1.msra.mxu0 %v56
    %1160 = vmatprep.subr.mxu0 0.0
    %1161 = vmatpush1.msra.mxu0 %v57
    %1162 = vmatprep.subr.mxu0 0.0
    %1163 = vmatpush1.msra.mxu0 %v58
    %1164 = vmatprep.subr.mxu0 0.0
    %1165 = vmatpush1.msra.mxu0 %v59
    %1166 = vmatprep.subr.mxu0 0.0
    %1167 = vmatpush1.msra.mxu0 %v60
    %1168 = vmatprep.subr.mxu0 0.0
    %1169 = vmatpush1.msra.mxu0 %v61
    %1170 = vmatprep.subr.mxu0 0.0
    %1171 = vmatpush1.msra.mxu0 0.0
    %1172 = vmatprep.subr.mxu0 0.0
    %1173 = vmatpush1.msra.mxu0 0.0
    %1174 = vmatprep.subr.mxu0 0.0
    %1175 = vmatpush1.msra.mxu0 0.0
    %1176 = vmatprep.subr.mxu0 0.0
    %1177 = vmatpush1.msra.mxu0 0.0
    %1178 = vmatprep.subr.mxu0 0.0
    %1179 = vmatpush1.msra.mxu0 0.0
    %1180 = vmatprep.subr.mxu0 0.0
    %1181 = vmatpush1.msra.mxu0 0.0
    %1182 = vmatprep.subr.mxu0 0.0
    %1183 = vmatpush1.msra.mxu0 0.0
    %1184 = vmatprep.subr.mxu0 0.0
    %1185 = vmatpush1.msra.mxu0 0.0
    %1186 = vmatprep.subr.mxu0 0.0
    %1187 = vmatpush1.msra.mxu0 0.0
    %1188 = vmatprep.subr.mxu0 0.0
    %1189 = vmatpush1.msra.mxu0 0.0
    %1190 = vmatprep.subr.mxu0 0.0
    %1191 = vmatpush1.msra.mxu0 0.0
    %1192 = vmatprep.subr.mxu0 0.0
    %1193 = vmatpush1.msra.mxu0 0.0
    %1194 = vmatprep.subr.mxu0 0.0
    %1195 = vmatpush1.msra.mxu0 0.0
    %1196 = vmatprep.subr.mxu0 0.0
    %1197 = vmatpush1.msra.mxu0 0.0
    %1198 = vmatprep.subr.mxu0 0.0
    %1199 = vmatpush1.msra.mxu0 0.0
    %1200 = vmatprep.subr.mxu0 0.0
    %1201 = vmatpush1.msra.mxu0 0.0
    %1202 = vmatprep.subr.mxu0 0.0
    %1203 = vmatpush1.msra.mxu0 0.0
    %1204 = vmatprep.subr.mxu0 0.0
    %1205 = vmatpush1.msra.mxu0 0.0
    %1206 = vmatprep.subr.mxu0 0.0
    %1207 = vmatpush1.msra.mxu0 0.0
    %1208 = vmatprep.subr.mxu0 0.0
    %1209 = vmatpush1.msra.mxu0 0.0
    %1210 = vmatprep.subr.mxu0 0.0
    %1211 = vmatpush1.msra.mxu0 0.0
    %1212 = vmatprep.subr.mxu0 0.0
    %1213 = vmatpush1.msra.mxu0 0.0
    %1214 = vmatprep.subr.mxu0 0.0
    %1215 = vmatpush1.msra.mxu0 0.0
    %1216 = vmatprep.subr.mxu0 0.0
    %1217 = vmatpush1.msra.mxu0 0.0
    %1218 = vmatprep.mubr.f32.mxu0 0.0
    %1219 = vmatmul.mubr.f32.gmra.mrb[0].mxu0 %v1152
    %v1220 = vpop.f32.mrb[0].mxu0
    %v1221 = vadd.f32 %v544, %v1220
    %v1222 = vpop.f32.mrb[0].mxu0
    %1223 = vdwg.mxu0
    %v1224 = vtanh.pop %v1221
    %v1225 = vmul.f32 %v1224, %v960
    %1227 = vrot.lane.b32.xlu0 %v1225, 112
    %v1228 = vpop.permute.xlu0 %1227
    %v1230 = vadd.f32 %v1225, %v1228
    %1231 = vrot.lane.b32.xlu0 %v1225, 96
    %v1232 = vpop.permute.xlu0 %1231
    %v1234 = vadd.f32 %v1230, %v1232
    %1235 = vrot.lane.b32.xlu0 %v1225, 80
    %v1236 = vpop.permute.xlu0 %1235
    %v1238 = vadd.f32 %v1234, %v1236
    %s1239 = smul.f32 %s953, 0.5
    %v1240 = vadd.f32 %v923, %v1224
    %v1241 = vstv %s1239
    %v1242 = vmul.f32 %v1241, %v1240
    %v1243 = vadd.f32 %v949, %v1242
    %v1244 = vadd.f32 %v975, %v1238
    %v1245 = vmul.f32 %v1244, 0.5
    %1247 = vrot.lane.b32.xlu0 %v1245, 112
    %v1248 = vpop.permute.xlu0 %1247
    %v1250 = vadd.f32 %v1243, %v1248
    %s1251 = scalar_lea.vmem %s11, 16
    %1252 = vst.msk [vmem:[%s1251] sm:$0xff] %vm373, %v1250
    %s1253 = sadd.s32 %s339, 3
    %s1254 = sld [smem:[#allocation6 + %s1253]]
    %s1255 = scalar_lea.vmem %s1, 24
    %v1256 = vld [vmem:[%s1255] sm:$0xff]
    %s1257 = scalar_lea.vmem %s2, 3
    %v1258 = vld [vmem:[%s1257] sm:$0x1]
    %1260 = vrot.lane.b32.xlu0 %v1256, 16
    %v1261 = vpop.permute.xlu0 %1260
    %v1263 = vmul.f32 %v1224, %v1261
    %1265 = vrot.lane.b32.xlu0 %v1263, 112
    %v1266 = vpop.permute.xlu0 %1265
    %v1268 = vadd.f32 %v1263, %v1266
    %1269 = vrot.lane.b32.xlu0 %v1263, 96
    %v1270 = vpop.permute.xlu0 %1269
    %v1272 = vadd.f32 %v1268, %v1270
    %1273 = vrot.lane.b32.xlu0 %v1263, 80
    %v1274 = vpop.permute.xlu0 %1273
    %v1276 = vadd.f32 %v1272, %v1274
    %v1277 = vmul.f32 %v1250, 2.0
    %v1278 = vsub.f32 %v1277, %v985
    %v1279 = vstv %s1254
    %v1280 = vmul.f32 %v1224, %v1279
    %v1281 = vadd.f32 %v1278, %v1280
    %1283 = vrot.lane.b32.xlu0 %v1276, 112
    %v1284 = vpop.permute.xlu0 %1283
    %v1286 = vadd.f32 %v1281, %v1284
    %v1288 = vlaneseq
    %v1289 = vshrl.u32 %v1288, 7
    %v1290 = vsub.s32 0, %v1289
    %v1291 = vrot.slane %v1258, %v1290
    %v1294 = vsel %vm373, %v1286, 0
    %1296 = vmatprep.subr.mxu0 0.0
    %1297 = vmatpush1.msra.mxu0 %v51
    %1298 = vmatprep.subr.mxu0 0.0
    %1299 = vmatpush1.msra.mxu0 %v52
    %1300 = vmatprep.subr.mxu0 0.0
    %1301 = vmatpush1.msra.mxu0 0.0
    %1302 = vmatprep.subr.mxu0 0.0
    %1303 = vmatpush1.msra.mxu0 0.0
    %1304 = vmatprep.subr.mxu0 0.0
    %1305 = vmatpush1.msra.mxu0 0.0
    %1306 = vmatprep.subr.mxu0 0.0
    %1307 = vmatpush1.msra.mxu0 0.0
    %1308 = vmatprep.subr.mxu0 0.0
    %1309 = vmatpush1.msra.mxu0 0.0
    %1310 = vmatprep.subr.mxu0 0.0
    %1311 = vmatpush1.msra.mxu0 0.0
    %1312 = vmatprep.subr.mxu0 0.0
    %1313 = vmatpush1.msra.mxu0 0.0
    %1314 = vmatprep.subr.mxu0 0.0
    %1315 = vmatpush1.msra.mxu0 0.0
    %1316 = vmatprep.subr.mxu0 0.0
    %1317 = vmatpush1.msra.mxu0 0.0
    %1318 = vmatprep.subr.mxu0 0.0
    %1319 = vmatpush1.msra.mxu0 0.0
    %1320 = vmatprep.subr.mxu0 0.0
    %1321 = vmatpush1.msra.mxu0 0.0
    %1322 = vmatprep.subr.mxu0 0.0
    %1323 = vmatpush1.msra.mxu0 0.0
    %1324 = vmatprep.subr.mxu0 0.0
    %1325 = vmatpush1.msra.mxu0 0.0
    %1326 = vmatprep.subr.mxu0 0.0
    %1327 = vmatpush1.msra.mxu0 0.0
    %1328 = vmatprep.subr.mxu0 0.0
    %1329 = vmatpush1.msra.mxu0 0.0
    %1330 = vmatprep.subr.mxu0 0.0
    %1331 = vmatpush1.msra.mxu0 0.0
    %1332 = vmatprep.subr.mxu0 0.0
    %1333 = vmatpush1.msra.mxu0 0.0
    %1334 = vmatprep.subr.mxu0 0.0
    %1335 = vmatpush1.msra.mxu0 0.0
    %1336 = vmatprep.subr.mxu0 0.0
    %1337 = vmatpush1.msra.mxu0 0.0
    %1338 = vmatprep.subr.mxu0 0.0
    %1339 = vmatpush1.msra.mxu0 0.0
    %1340 = vmatprep.subr.mxu0 0.0
    %1341 = vmatpush1.msra.mxu0 0.0
    %1342 = vmatprep.subr.mxu0 0.0
    %1343 = vmatpush1.msra.mxu0 0.0
    %1344 = vmatprep.subr.mxu0 0.0
    %1345 = vmatpush1.msra.mxu0 0.0
    %1346 = vmatprep.subr.mxu0 0.0
    %1347 = vmatpush1.msra.mxu0 0.0
    %1348 = vmatprep.subr.mxu0 0.0
    %1349 = vmatpush1.msra.mxu0 0.0
    %1350 = vmatprep.subr.mxu0 0.0
    %1351 = vmatpush1.msra.mxu0 0.0
    %1352 = vmatprep.subr.mxu0 0.0
    %1353 = vmatpush1.msra.mxu0 0.0
    %1354 = vmatprep.subr.mxu0 0.0
    %1355 = vmatpush1.msra.mxu0 0.0
    %1356 = vmatprep.subr.mxu0 0.0
    %1357 = vmatpush1.msra.mxu0 0.0
    %1358 = vmatprep.subr.mxu0 0.0
    %1359 = vmatpush1.msra.mxu0 0.0
    %1360 = vmatprep.mubr.f32.mxu0 0.0
    %1361 = vmatmul.mubr.f32.gmra.mrb[0].mxu0 %v1294
    %v1362 = vpop.f32.mrb[0].mxu0
    %v1363 = vadd.f32 %v1291, %v1362
    %v1364 = vpop.f32.mrb[0].mxu0
    %1365 = vdwg.mxu0
    %v1366 = vadd.f32 %v1363, %v53
    %v1367 = vmul.f32 %v1366, 0.909
    %v1368 = vmul.f32 %v1366, 0.5
    %v1369 = vtanh.pop %v1368
    %v1370 = vmul.f32 %v1369, 0.5
    %v1371 = vadd.f32 %v1370, 0.5
    %v1372 = vmul.f32 %v1367, %v1371
    %v1374 = vsel %vm460, %v1372, 0
    %1376 = vmatprep.subr.mxu0 0.0
    %1377 = vmatpush1.msra.mxu0 %v63
    %1378 = vmatprep.subr.mxu0 0.0
    %1379 = vmatpush1.msra.mxu0 %v64
    %1380 = vmatprep.subr.mxu0 0.0
    %1381 = vmatpush1.msra.mxu0 %v65
    %1382 = vmatprep.subr.mxu0 0.0
    %1383 = vmatpush1.msra.mxu0 %v66
    %1384 = vmatprep.subr.mxu0 0.0
    %1385 = vmatpush1.msra.mxu0 %v67
    %1386 = vmatprep.subr.mxu0 0.0
    %1387 = vmatpush1.msra.mxu0 %v68
    %1388 = vmatprep.subr.mxu0 0.0
    %1389 = vmatpush1.msra.mxu0 %v69
    %1390 = vmatprep.subr.mxu0 0.0
    %1391 = vmatpush1.msra.mxu0 %v70
    %1392 = vmatprep.subr.mxu0 0.0
    %1393 = vmatpush1.msra.mxu0 0.0
    %1394 = vmatprep.subr.mxu0 0.0
    %1395 = vmatpush1.msra.mxu0 0.0
    %1396 = vmatprep.subr.mxu0 0.0
    %1397 = vmatpush1.msra.mxu0 0.0
    %1398 = vmatprep.subr.mxu0 0.0
    %1399 = vmatpush1.msra.mxu0 0.0
    %1400 = vmatprep.subr.mxu0 0.0
    %1401 = vmatpush1.msra.mxu0 0.0
    %1402 = vmatprep.subr.mxu0 0.0
    %1403 = vmatpush1.msra.mxu0 0.0
    %1404 = vmatprep.subr.mxu0 0.0
    %1405 = vmatpush1.msra.mxu0 0.0
    %1406 = vmatprep.subr.mxu0 0.0
    %1407 = vmatpush1.msra.mxu0 0.0
    %1408 = vmatprep.subr.mxu0 0.0
    %1409 = vmatpush1.msra.mxu0 0.0
    %1410 = vmatprep.subr.mxu0 0.0
    %1411 = vmatpush1.msra.mxu0 0.0
    %1412 = vmatprep.subr.mxu0 0.0
    %1413 = vmatpush1.msra.mxu0 0.0
    %1414 = vmatprep.subr.mxu0 0.0
    %1415 = vmatpush1.msra.mxu0 0.0
    %1416 = vmatprep.subr.mxu0 0.0
    %1417 = vmatpush1.msra.mxu0 0.0
    %1418 = vmatprep.subr.mxu0 0.0
    %1419 = vmatpush1.msra.mxu0 0.0
    %1420 = vmatprep.subr.mxu0 0.0
    %1421 = vmatpush1.msra.mxu0 0.0
    %1422 = vmatprep.subr.mxu0 0.0
    %1423 = vmatpush1.msra.mxu0 0.0
    %1424 = vmatprep.subr.mxu0 0.0
    %1425 = vmatpush1.msra.mxu0 0.0
    %1426 = vmatprep.subr.mxu0 0.0
    %1427 = vmatpush1.msra.mxu0 0.0
    %1428 = vmatprep.subr.mxu0 0.0
    %1429 = vmatpush1.msra.mxu0 0.0
    %1430 = vmatprep.subr.mxu0 0.0
    %1431 = vmatpush1.msra.mxu0 0.0
    %1432 = vmatprep.subr.mxu0 0.0
    %1433 = vmatpush1.msra.mxu0 0.0
    %1434 = vmatprep.subr.mxu0 0.0
    %1435 = vmatpush1.msra.mxu0 0.0
    %1436 = vmatprep.subr.mxu0 0.0
    %1437 = vmatpush1.msra.mxu0 0.0
    %1438 = vmatprep.subr.mxu0 0.0
    %1439 = vmatpush1.msra.mxu0 0.0
    %1440 = vmatprep.mubr.f32.mxu0 0.0
    %1441 = vmatmul.mubr.f32.gmra.mrb[0].mxu0 %v1374
    %v1442 = vpop.f32.mrb[0].mxu0
    %v1443 = vadd.f32 %v458, %v1442
    %v1444 = vpop.f32.mrb[0].mxu0
    %1445 = vdwg.mxu0
    %v1446 = vmul.f32 %v1443, 0.909
    %v1447 = vmul.f32 %v1443, 0.5
    %v1448 = vtanh.pop %v1447
    %v1449 = vmul.f32 %v1448, 0.5
    %v1450 = vadd.f32 %v1449, 0.5
    %v1451 = vmul.f32 %v1446, %v1450
    %v1453 = vsel %vm460, %v1451, 0
    %1455 = vmatprep.subr.mxu0 0.0
    %1456 = vmatpush1.msra.mxu0 %v54
    %1457 = vmatprep.subr.mxu0 0.0
    %1458 = vmatpush1.msra.mxu0 %v55
    %1459 = vmatprep.subr.mxu0 0.0
    %1460 = vmatpush1.msra.mxu0 %v56
    %1461 = vmatprep.subr.mxu0 0.0
    %1462 = vmatpush1.msra.mxu0 %v57
    %1463 = vmatprep.subr.mxu0 0.0
    %1464 = vmatpush1.msra.mxu0 %v58
    %1465 = vmatprep.subr.mxu0 0.0
    %1466 = vmatpush1.msra.mxu0 %v59
    %1467 = vmatprep.subr.mxu0 0.0
    %1468 = vmatpush1.msra.mxu0 %v60
    %1469 = vmatprep.subr.mxu0 0.0
    %1470 = vmatpush1.msra.mxu0 %v61
    %1471 = vmatprep.subr.mxu0 0.0
    %1472 = vmatpush1.msra.mxu0 0.0
    %1473 = vmatprep.subr.mxu0 0.0
    %1474 = vmatpush1.msra.mxu0 0.0
    %1475 = vmatprep.subr.mxu0 0.0
    %1476 = vmatpush1.msra.mxu0 0.0
    %1477 = vmatprep.subr.mxu0 0.0
    %1478 = vmatpush1.msra.mxu0 0.0
    %1479 = vmatprep.subr.mxu0 0.0
    %1480 = vmatpush1.msra.mxu0 0.0
    %1481 = vmatprep.subr.mxu0 0.0
    %1482 = vmatpush1.msra.mxu0 0.0
    %1483 = vmatprep.subr.mxu0 0.0
    %1484 = vmatpush1.msra.mxu0 0.0
    %1485 = vmatprep.subr.mxu0 0.0
    %1486 = vmatpush1.msra.mxu0 0.0
    %1487 = vmatprep.subr.mxu0 0.0
    %1488 = vmatpush1.msra.mxu0 0.0
    %1489 = vmatprep.subr.mxu0 0.0
    %1490 = vmatpush1.msra.mxu0 0.0
    %1491 = vmatprep.subr.mxu0 0.0
    %1492 = vmatpush1.msra.mxu0 0.0
    %1493 = vmatprep.subr.mxu0 0.0
    %1494 = vmatpush1.msra.mxu0 0.0
    %1495 = vmatprep.subr.mxu0 0.0
    %1496 = vmatpush1.msra.mxu0 0.0
    %1497 = vmatprep.subr.mxu0 0.0
    %1498 = vmatpush1.msra.mxu0 0.0
    %1499 = vmatprep.subr.mxu0 0.0
    %1500 = vmatpush1.msra.mxu0 0.0
    %1501 = vmatprep.subr.mxu0 0.0
    %1502 = vmatpush1.msra.mxu0 0.0
    %1503 = vmatprep.subr.mxu0 0.0
    %1504 = vmatpush1.msra.mxu0 0.0
    %1505 = vmatprep.subr.mxu0 0.0
    %1506 = vmatpush1.msra.mxu0 0.0
    %1507 = vmatprep.subr.mxu0 0.0
    %1508 = vmatpush1.msra.mxu0 0.0
    %1509 = vmatprep.subr.mxu0 0.0
    %1510 = vmatpush1.msra.mxu0 0.0
    %1511 = vmatprep.subr.mxu0 0.0
    %1512 = vmatpush1.msra.mxu0 0.0
    %1513 = vmatprep.subr.mxu0 0.0
    %1514 = vmatpush1.msra.mxu0 0.0
    %1515 = vmatprep.subr.mxu0 0.0
    %1516 = vmatpush1.msra.mxu0 0.0
    %1517 = vmatprep.subr.mxu0 0.0
    %1518 = vmatpush1.msra.mxu0 0.0
    %1519 = vmatprep.mubr.f32.mxu0 0.0
    %1520 = vmatmul.mubr.f32.gmra.mrb[0].mxu0 %v1453
    %v1521 = vpop.f32.mrb[0].mxu0
    %v1522 = vadd.f32 %v544, %v1521
    %v1523 = vpop.f32.mrb[0].mxu0
    %1524 = vdwg.mxu0
    %v1525 = vtanh.pop %v1522
    %v1526 = vmul.f32 %v1525, %v1261
    %1528 = vrot.lane.b32.xlu0 %v1526, 112
    %v1529 = vpop.permute.xlu0 %1528
    %v1531 = vadd.f32 %v1526, %v1529
    %1532 = vrot.lane.b32.xlu0 %v1526, 96
    %v1533 = vpop.permute.xlu0 %1532
    %v1535 = vadd.f32 %v1531, %v1533
    %1536 = vrot.lane.b32.xlu0 %v1526, 80
    %v1537 = vpop.permute.xlu0 %1536
    %v1539 = vadd.f32 %v1535, %v1537
    %s1540 = smul.f32 %s1254, 0.5
    %v1541 = vadd.f32 %v1224, %v1525
    %v1542 = vstv %s1540
    %v1543 = vmul.f32 %v1542, %v1541
    %v1544 = vadd.f32 %v1250, %v1543
    %v1545 = vadd.f32 %v1276, %v1539
    %v1546 = vmul.f32 %v1545, 0.5
    %1548 = vrot.lane.b32.xlu0 %v1546, 112
    %v1549 = vpop.permute.xlu0 %1548
    %v1551 = vadd.f32 %v1544, %v1549
    %s1552 = scalar_lea.vmem %s11, 24
    %1553 = vst.msk [vmem:[%s1552] sm:$0xff] %vm373, %v1551
    %s1554 = sadd.s32 %s339, 4
    %s1555 = sld [smem:[#allocation6 + %s1554]]
    %s1556 = scalar_lea.vmem %s1, 32
    %v1557 = vld [vmem:[%s1556] sm:$0xff]
    %s1558 = scalar_lea.vmem %s2, 4
    %v1559 = vld [vmem:[%s1558] sm:$0x1]
    %1561 = vrot.lane.b32.xlu0 %v1557, 16
    %v1562 = vpop.permute.xlu0 %1561
    %v1564 = vmul.f32 %v1525, %v1562
    %1566 = vrot.lane.b32.xlu0 %v1564, 112
    %v1567 = vpop.permute.xlu0 %1566
    %v1569 = vadd.f32 %v1564, %v1567
    %1570 = vrot.lane.b32.xlu0 %v1564, 96
    %v1571 = vpop.permute.xlu0 %1570
    %v1573 = vadd.f32 %v1569, %v1571
    %1574 = vrot.lane.b32.xlu0 %v1564, 80
    %v1575 = vpop.permute.xlu0 %1574
    %v1577 = vadd.f32 %v1573, %v1575
    %v1578 = vmul.f32 %v1551, 2.0
    %v1579 = vsub.f32 %v1578, %v1286
    %v1580 = vstv %s1555
    %v1581 = vmul.f32 %v1525, %v1580
    %v1582 = vadd.f32 %v1579, %v1581
    %1584 = vrot.lane.b32.xlu0 %v1577, 112
    %v1585 = vpop.permute.xlu0 %1584
    %v1587 = vadd.f32 %v1582, %v1585
    %v1589 = vlaneseq
    %v1590 = vshrl.u32 %v1589, 7
    %v1591 = vsub.s32 0, %v1590
    %v1592 = vrot.slane %v1559, %v1591
    %v1595 = vsel %vm373, %v1587, 0
    %1597 = vmatprep.subr.mxu0 0.0
    %1598 = vmatpush1.msra.mxu0 %v51
    %1599 = vmatprep.subr.mxu0 0.0
    %1600 = vmatpush1.msra.mxu0 %v52
    %1601 = vmatprep.subr.mxu0 0.0
    %1602 = vmatpush1.msra.mxu0 0.0
    %1603 = vmatprep.subr.mxu0 0.0
    %1604 = vmatpush1.msra.mxu0 0.0
    %1605 = vmatprep.subr.mxu0 0.0
    %1606 = vmatpush1.msra.mxu0 0.0
    %1607 = vmatprep.subr.mxu0 0.0
    %1608 = vmatpush1.msra.mxu0 0.0
    %1609 = vmatprep.subr.mxu0 0.0
    %1610 = vmatpush1.msra.mxu0 0.0
    %1611 = vmatprep.subr.mxu0 0.0
    %1612 = vmatpush1.msra.mxu0 0.0
    %1613 = vmatprep.subr.mxu0 0.0
    %1614 = vmatpush1.msra.mxu0 0.0
    %1615 = vmatprep.subr.mxu0 0.0
    %1616 = vmatpush1.msra.mxu0 0.0
    %1617 = vmatprep.subr.mxu0 0.0
    %1618 = vmatpush1.msra.mxu0 0.0
    %1619 = vmatprep.subr.mxu0 0.0
    %1620 = vmatpush1.msra.mxu0 0.0
    %1621 = vmatprep.subr.mxu0 0.0
    %1622 = vmatpush1.msra.mxu0 0.0
    %1623 = vmatprep.subr.mxu0 0.0
    %1624 = vmatpush1.msra.mxu0 0.0
    %1625 = vmatprep.subr.mxu0 0.0
    %1626 = vmatpush1.msra.mxu0 0.0
    %1627 = vmatprep.subr.mxu0 0.0
    %1628 = vmatpush1.msra.mxu0 0.0
    %1629 = vmatprep.subr.mxu0 0.0
    %1630 = vmatpush1.msra.mxu0 0.0
    %1631 = vmatprep.subr.mxu0 0.0
    %1632 = vmatpush1.msra.mxu0 0.0
    %1633 = vmatprep.subr.mxu0 0.0
    %1634 = vmatpush1.msra.mxu0 0.0
    %1635 = vmatprep.subr.mxu0 0.0
    %1636 = vmatpush1.msra.mxu0 0.0
    %1637 = vmatprep.subr.mxu0 0.0
    %1638 = vmatpush1.msra.mxu0 0.0
    %1639 = vmatprep.subr.mxu0 0.0
    %1640 = vmatpush1.msra.mxu0 0.0
    %1641 = vmatprep.subr.mxu0 0.0
    %1642 = vmatpush1.msra.mxu0 0.0
    %1643 = vmatprep.subr.mxu0 0.0
    %1644 = vmatpush1.msra.mxu0 0.0
    %1645 = vmatprep.subr.mxu0 0.0
    %1646 = vmatpush1.msra.mxu0 0.0
    %1647 = vmatprep.subr.mxu0 0.0
    %1648 = vmatpush1.msra.mxu0 0.0
    %1649 = vmatprep.subr.mxu0 0.0
    %1650 = vmatpush1.msra.mxu0 0.0
    %1651 = vmatprep.subr.mxu0 0.0
    %1652 = vmatpush1.msra.mxu0 0.0
    %1653 = vmatprep.subr.mxu0 0.0
    %1654 = vmatpush1.msra.mxu0 0.0
    %1655 = vmatprep.subr.mxu0 0.0
    %1656 = vmatpush1.msra.mxu0 0.0
    %1657 = vmatprep.subr.mxu0 0.0
    %1658 = vmatpush1.msra.mxu0 0.0
    %1659 = vmatprep.subr.mxu0 0.0
    %1660 = vmatpush1.msra.mxu0 0.0
    %1661 = vmatprep.mubr.f32.mxu0 0.0
    %1662 = vmatmul.mubr.f32.gmra.mrb[0].mxu0 %v1595
    %v1663 = vpop.f32.mrb[0].mxu0
    %v1664 = vadd.f32 %v1592, %v1663
    %v1665 = vpop.f32.mrb[0].mxu0
    %1666 = vdwg.mxu0
    %v1667 = vadd.f32 %v1664, %v53
    %v1668 = vmul.f32 %v1667, 0.909
    %v1669 = vmul.f32 %v1667, 0.5
    %v1670 = vtanh.pop %v1669
    %v1671 = vmul.f32 %v1670, 0.5
    %v1672 = vadd.f32 %v1671, 0.5
    %v1673 = vmul.f32 %v1668, %v1672
    %v1675 = vsel %vm460, %v1673, 0
    %1677 = vmatprep.subr.mxu0 0.0
    %1678 = vmatpush1.msra.mxu0 %v63
    %1679 = vmatprep.subr.mxu0 0.0
    %1680 = vmatpush1.msra.mxu0 %v64
    %1681 = vmatprep.subr.mxu0 0.0
    %1682 = vmatpush1.msra.mxu0 %v65
    %1683 = vmatprep.subr.mxu0 0.0
    %1684 = vmatpush1.msra.mxu0 %v66
    %1685 = vmatprep.subr.mxu0 0.0
    %1686 = vmatpush1.msra.mxu0 %v67
    %1687 = vmatprep.subr.mxu0 0.0
    %1688 = vmatpush1.msra.mxu0 %v68
    %1689 = vmatprep.subr.mxu0 0.0
    %1690 = vmatpush1.msra.mxu0 %v69
    %1691 = vmatprep.subr.mxu0 0.0
    %1692 = vmatpush1.msra.mxu0 %v70
    %1693 = vmatprep.subr.mxu0 0.0
    %1694 = vmatpush1.msra.mxu0 0.0
    %1695 = vmatprep.subr.mxu0 0.0
    %1696 = vmatpush1.msra.mxu0 0.0
    %1697 = vmatprep.subr.mxu0 0.0
    %1698 = vmatpush1.msra.mxu0 0.0
    %1699 = vmatprep.subr.mxu0 0.0
    %1700 = vmatpush1.msra.mxu0 0.0
    %1701 = vmatprep.subr.mxu0 0.0
    %1702 = vmatpush1.msra.mxu0 0.0
    %1703 = vmatprep.subr.mxu0 0.0
    %1704 = vmatpush1.msra.mxu0 0.0
    %1705 = vmatprep.subr.mxu0 0.0
    %1706 = vmatpush1.msra.mxu0 0.0
    %1707 = vmatprep.subr.mxu0 0.0
    %1708 = vmatpush1.msra.mxu0 0.0
    %1709 = vmatprep.subr.mxu0 0.0
    %1710 = vmatpush1.msra.mxu0 0.0
    %1711 = vmatprep.subr.mxu0 0.0
    %1712 = vmatpush1.msra.mxu0 0.0
    %1713 = vmatprep.subr.mxu0 0.0
    %1714 = vmatpush1.msra.mxu0 0.0
    %1715 = vmatprep.subr.mxu0 0.0
    %1716 = vmatpush1.msra.mxu0 0.0
    %1717 = vmatprep.subr.mxu0 0.0
    %1718 = vmatpush1.msra.mxu0 0.0
    %1719 = vmatprep.subr.mxu0 0.0
    %1720 = vmatpush1.msra.mxu0 0.0
    %1721 = vmatprep.subr.mxu0 0.0
    %1722 = vmatpush1.msra.mxu0 0.0
    %1723 = vmatprep.subr.mxu0 0.0
    %1724 = vmatpush1.msra.mxu0 0.0
    %1725 = vmatprep.subr.mxu0 0.0
    %1726 = vmatpush1.msra.mxu0 0.0
    %1727 = vmatprep.subr.mxu0 0.0
    %1728 = vmatpush1.msra.mxu0 0.0
    %1729 = vmatprep.subr.mxu0 0.0
    %1730 = vmatpush1.msra.mxu0 0.0
    %1731 = vmatprep.subr.mxu0 0.0
    %1732 = vmatpush1.msra.mxu0 0.0
    %1733 = vmatprep.subr.mxu0 0.0
    %1734 = vmatpush1.msra.mxu0 0.0
    %1735 = vmatprep.subr.mxu0 0.0
    %1736 = vmatpush1.msra.mxu0 0.0
    %1737 = vmatprep.subr.mxu0 0.0
    %1738 = vmatpush1.msra.mxu0 0.0
    %1739 = vmatprep.subr.mxu0 0.0
    %1740 = vmatpush1.msra.mxu0 0.0
    %1741 = vmatprep.mubr.f32.mxu0 0.0
    %1742 = vmatmul.mubr.f32.gmra.mrb[0].mxu0 %v1675
    %v1743 = vpop.f32.mrb[0].mxu0
    %v1744 = vadd.f32 %v458, %v1743
    %v1745 = vpop.f32.mrb[0].mxu0
    %1746 = vdwg.mxu0
    %v1747 = vmul.f32 %v1744, 0.909
    %v1748 = vmul.f32 %v1744, 0.5
    %v1749 = vtanh.pop %v1748
    %v1750 = vmul.f32 %v1749, 0.5
    %v1751 = vadd.f32 %v1750, 0.5
    %v1752 = vmul.f32 %v1747, %v1751
    %v1754 = vsel %vm460, %v1752, 0
    %1756 = vmatprep.subr.mxu0 0.0
    %1757 = vmatpush1.msra.mxu0 %v54
    %1758 = vmatprep.subr.mxu0 0.0
    %1759 = vmatpush1.msra.mxu0 %v55
    %1760 = vmatprep.subr.mxu0 0.0
    %1761 = vmatpush1.msra.mxu0 %v56
    %1762 = vmatprep.subr.mxu0 0.0
    %1763 = vmatpush1.msra.mxu0 %v57
    %1764 = vmatprep.subr.mxu0 0.0
    %1765 = vmatpush1.msra.mxu0 %v58
    %1766 = vmatprep.subr.mxu0 0.0
    %1767 = vmatpush1.msra.mxu0 %v59
    %1768 = vmatprep.subr.mxu0 0.0
    %1769 = vmatpush1.msra.mxu0 %v60
    %1770 = vmatprep.subr.mxu0 0.0
    %1771 = vmatpush1.msra.mxu0 %v61
    %1772 = vmatprep.subr.mxu0 0.0
    %1773 = vmatpush1.msra.mxu0 0.0
    %1774 = vmatprep.subr.mxu0 0.0
    %1775 = vmatpush1.msra.mxu0 0.0
    %1776 = vmatprep.subr.mxu0 0.0
    %1777 = vmatpush1.msra.mxu0 0.0
    %1778 = vmatprep.subr.mxu0 0.0
    %1779 = vmatpush1.msra.mxu0 0.0
    %1780 = vmatprep.subr.mxu0 0.0
    %1781 = vmatpush1.msra.mxu0 0.0
    %1782 = vmatprep.subr.mxu0 0.0
    %1783 = vmatpush1.msra.mxu0 0.0
    %1784 = vmatprep.subr.mxu0 0.0
    %1785 = vmatpush1.msra.mxu0 0.0
    %1786 = vmatprep.subr.mxu0 0.0
    %1787 = vmatpush1.msra.mxu0 0.0
    %1788 = vmatprep.subr.mxu0 0.0
    %1789 = vmatpush1.msra.mxu0 0.0
    %1790 = vmatprep.subr.mxu0 0.0
    %1791 = vmatpush1.msra.mxu0 0.0
    %1792 = vmatprep.subr.mxu0 0.0
    %1793 = vmatpush1.msra.mxu0 0.0
    %1794 = vmatprep.subr.mxu0 0.0
    %1795 = vmatpush1.msra.mxu0 0.0
    %1796 = vmatprep.subr.mxu0 0.0
    %1797 = vmatpush1.msra.mxu0 0.0
    %1798 = vmatprep.subr.mxu0 0.0
    %1799 = vmatpush1.msra.mxu0 0.0
    %1800 = vmatprep.subr.mxu0 0.0
    %1801 = vmatpush1.msra.mxu0 0.0
    %1802 = vmatprep.subr.mxu0 0.0
    %1803 = vmatpush1.msra.mxu0 0.0
    %1804 = vmatprep.subr.mxu0 0.0
    %1805 = vmatpush1.msra.mxu0 0.0
    %1806 = vmatprep.subr.mxu0 0.0
    %1807 = vmatpush1.msra.mxu0 0.0
    %1808 = vmatprep.subr.mxu0 0.0
    %1809 = vmatpush1.msra.mxu0 0.0
    %1810 = vmatprep.subr.mxu0 0.0
    %1811 = vmatpush1.msra.mxu0 0.0
    %1812 = vmatprep.subr.mxu0 0.0
    %1813 = vmatpush1.msra.mxu0 0.0
    %1814 = vmatprep.subr.mxu0 0.0
    %1815 = vmatpush1.msra.mxu0 0.0
    %1816 = vmatprep.subr.mxu0 0.0
    %1817 = vmatpush1.msra.mxu0 0.0
    %1818 = vmatprep.subr.mxu0 0.0
    %1819 = vmatpush1.msra.mxu0 0.0
    %1820 = vmatprep.mubr.f32.mxu0 0.0
    %1821 = vmatmul.mubr.f32.gmra.mrb[0].mxu0 %v1754
    %v1822 = vpop.f32.mrb[0].mxu0
    %v1823 = vadd.f32 %v544, %v1822
    %v1824 = vpop.f32.mrb[0].mxu0
    %1825 = vdwg.mxu0
    %v1826 = vtanh.pop %v1823
    %v1827 = vmul.f32 %v1826, %v1562
    %1829 = vrot.lane.b32.xlu0 %v1827, 112
    %v1830 = vpop.permute.xlu0 %1829
    %v1832 = vadd.f32 %v1827, %v1830
    %1833 = vrot.lane.b32.xlu0 %v1827, 96
    %v1834 = vpop.permute.xlu0 %1833
    %v1836 = vadd.f32 %v1832, %v1834
    %1837 = vrot.lane.b32.xlu0 %v1827, 80
    %v1838 = vpop.permute.xlu0 %1837
    %v1840 = vadd.f32 %v1836, %v1838
    %s1841 = smul.f32 %s1555, 0.5
    %v1842 = vadd.f32 %v1525, %v1826
    %v1843 = vstv %s1841
    %v1844 = vmul.f32 %v1843, %v1842
    %v1845 = vadd.f32 %v1551, %v1844
    %v1846 = vadd.f32 %v1577, %v1840
    %v1847 = vmul.f32 %v1846, 0.5
    %1849 = vrot.lane.b32.xlu0 %v1847, 112
    %v1850 = vpop.permute.xlu0 %1849
    %v1852 = vadd.f32 %v1845, %v1850
    %s1853 = scalar_lea.vmem %s11, 32
    %1854 = vst.msk [vmem:[%s1853] sm:$0xff] %vm373, %v1852
    %s1855 = sadd.s32 %s339, 5
    %s1856 = sld [smem:[#allocation6 + %s1855]]
    %s1857 = scalar_lea.vmem %s1, 40
    %v1858 = vld [vmem:[%s1857] sm:$0xff]
    %s1859 = scalar_lea.vmem %s2, 5
    %v1860 = vld [vmem:[%s1859] sm:$0x1]
    %1862 = vrot.lane.b32.xlu0 %v1858, 16
    %v1863 = vpop.permute.xlu0 %1862
    %v1865 = vmul.f32 %v1826, %v1863
    %1867 = vrot.lane.b32.xlu0 %v1865, 112
    %v1868 = vpop.permute.xlu0 %1867
    %v1870 = vadd.f32 %v1865, %v1868
    %1871 = vrot.lane.b32.xlu0 %v1865, 96
    %v1872 = vpop.permute.xlu0 %1871
    %v1874 = vadd.f32 %v1870, %v1872
    %1875 = vrot.lane.b32.xlu0 %v1865, 80
    %v1876 = vpop.permute.xlu0 %1875
    %v1878 = vadd.f32 %v1874, %v1876
    %v1879 = vmul.f32 %v1852, 2.0
    %v1880 = vsub.f32 %v1879, %v1587
    %v1881 = vstv %s1856
    %v1882 = vmul.f32 %v1826, %v1881
    %v1883 = vadd.f32 %v1880, %v1882
    %1885 = vrot.lane.b32.xlu0 %v1878, 112
    %v1886 = vpop.permute.xlu0 %1885
    %v1888 = vadd.f32 %v1883, %v1886
    %v1890 = vlaneseq
    %v1891 = vshrl.u32 %v1890, 7
    %v1892 = vsub.s32 0, %v1891
    %v1893 = vrot.slane %v1860, %v1892
    %v1896 = vsel %vm373, %v1888, 0
    %1898 = vmatprep.subr.mxu0 0.0
    %1899 = vmatpush1.msra.mxu0 %v51
    %1900 = vmatprep.subr.mxu0 0.0
    %1901 = vmatpush1.msra.mxu0 %v52
    %1902 = vmatprep.subr.mxu0 0.0
    %1903 = vmatpush1.msra.mxu0 0.0
    %1904 = vmatprep.subr.mxu0 0.0
    %1905 = vmatpush1.msra.mxu0 0.0
    %1906 = vmatprep.subr.mxu0 0.0
    %1907 = vmatpush1.msra.mxu0 0.0
    %1908 = vmatprep.subr.mxu0 0.0
    %1909 = vmatpush1.msra.mxu0 0.0
    %1910 = vmatprep.subr.mxu0 0.0
    %1911 = vmatpush1.msra.mxu0 0.0
    %1912 = vmatprep.subr.mxu0 0.0
    %1913 = vmatpush1.msra.mxu0 0.0
    %1914 = vmatprep.subr.mxu0 0.0
    %1915 = vmatpush1.msra.mxu0 0.0
    %1916 = vmatprep.subr.mxu0 0.0
    %1917 = vmatpush1.msra.mxu0 0.0
    %1918 = vmatprep.subr.mxu0 0.0
    %1919 = vmatpush1.msra.mxu0 0.0
    %1920 = vmatprep.subr.mxu0 0.0
    %1921 = vmatpush1.msra.mxu0 0.0
    %1922 = vmatprep.subr.mxu0 0.0
    %1923 = vmatpush1.msra.mxu0 0.0
    %1924 = vmatprep.subr.mxu0 0.0
    %1925 = vmatpush1.msra.mxu0 0.0
    %1926 = vmatprep.subr.mxu0 0.0
    %1927 = vmatpush1.msra.mxu0 0.0
    %1928 = vmatprep.subr.mxu0 0.0
    %1929 = vmatpush1.msra.mxu0 0.0
    %1930 = vmatprep.subr.mxu0 0.0
    %1931 = vmatpush1.msra.mxu0 0.0
    %1932 = vmatprep.subr.mxu0 0.0
    %1933 = vmatpush1.msra.mxu0 0.0
    %1934 = vmatprep.subr.mxu0 0.0
    %1935 = vmatpush1.msra.mxu0 0.0
    %1936 = vmatprep.subr.mxu0 0.0
    %1937 = vmatpush1.msra.mxu0 0.0
    %1938 = vmatprep.subr.mxu0 0.0
    %1939 = vmatpush1.msra.mxu0 0.0
    %1940 = vmatprep.subr.mxu0 0.0
    %1941 = vmatpush1.msra.mxu0 0.0
    %1942 = vmatprep.subr.mxu0 0.0
    %1943 = vmatpush1.msra.mxu0 0.0
    %1944 = vmatprep.subr.mxu0 0.0
    %1945 = vmatpush1.msra.mxu0 0.0
    %1946 = vmatprep.subr.mxu0 0.0
    %1947 = vmatpush1.msra.mxu0 0.0
    %1948 = vmatprep.subr.mxu0 0.0
    %1949 = vmatpush1.msra.mxu0 0.0
    %1950 = vmatprep.subr.mxu0 0.0
    %1951 = vmatpush1.msra.mxu0 0.0
    %1952 = vmatprep.subr.mxu0 0.0
    %1953 = vmatpush1.msra.mxu0 0.0
    %1954 = vmatprep.subr.mxu0 0.0
    %1955 = vmatpush1.msra.mxu0 0.0
    %1956 = vmatprep.subr.mxu0 0.0
    %1957 = vmatpush1.msra.mxu0 0.0
    %1958 = vmatprep.subr.mxu0 0.0
    %1959 = vmatpush1.msra.mxu0 0.0
    %1960 = vmatprep.subr.mxu0 0.0
    %1961 = vmatpush1.msra.mxu0 0.0
    %1962 = vmatprep.mubr.f32.mxu0 0.0
    %1963 = vmatmul.mubr.f32.gmra.mrb[0].mxu0 %v1896
    %v1964 = vpop.f32.mrb[0].mxu0
    %v1965 = vadd.f32 %v1893, %v1964
    %v1966 = vpop.f32.mrb[0].mxu0
    %1967 = vdwg.mxu0
    %v1968 = vadd.f32 %v1965, %v53
    %v1969 = vmul.f32 %v1968, 0.909
    %v1970 = vmul.f32 %v1968, 0.5
    %v1971 = vtanh.pop %v1970
    %v1972 = vmul.f32 %v1971, 0.5
    %v1973 = vadd.f32 %v1972, 0.5
    %v1974 = vmul.f32 %v1969, %v1973
    %v1976 = vsel %vm460, %v1974, 0
    %1978 = vmatprep.subr.mxu0 0.0
    %1979 = vmatpush1.msra.mxu0 %v63
    %1980 = vmatprep.subr.mxu0 0.0
    %1981 = vmatpush1.msra.mxu0 %v64
    %1982 = vmatprep.subr.mxu0 0.0
    %1983 = vmatpush1.msra.mxu0 %v65
    %1984 = vmatprep.subr.mxu0 0.0
    %1985 = vmatpush1.msra.mxu0 %v66
    %1986 = vmatprep.subr.mxu0 0.0
    %1987 = vmatpush1.msra.mxu0 %v67
    %1988 = vmatprep.subr.mxu0 0.0
    %1989 = vmatpush1.msra.mxu0 %v68
    %1990 = vmatprep.subr.mxu0 0.0
    %1991 = vmatpush1.msra.mxu0 %v69
    %1992 = vmatprep.subr.mxu0 0.0
    %1993 = vmatpush1.msra.mxu0 %v70
    %1994 = vmatprep.subr.mxu0 0.0
    %1995 = vmatpush1.msra.mxu0 0.0
    %1996 = vmatprep.subr.mxu0 0.0
    %1997 = vmatpush1.msra.mxu0 0.0
    %1998 = vmatprep.subr.mxu0 0.0
    %1999 = vmatpush1.msra.mxu0 0.0
    %2000 = vmatprep.subr.mxu0 0.0
    %2001 = vmatpush1.msra.mxu0 0.0
    %2002 = vmatprep.subr.mxu0 0.0
    %2003 = vmatpush1.msra.mxu0 0.0
    %2004 = vmatprep.subr.mxu0 0.0
    %2005 = vmatpush1.msra.mxu0 0.0
    %2006 = vmatprep.subr.mxu0 0.0
    %2007 = vmatpush1.msra.mxu0 0.0
    %2008 = vmatprep.subr.mxu0 0.0
    %2009 = vmatpush1.msra.mxu0 0.0
    %2010 = vmatprep.subr.mxu0 0.0
    %2011 = vmatpush1.msra.mxu0 0.0
    %2012 = vmatprep.subr.mxu0 0.0
    %2013 = vmatpush1.msra.mxu0 0.0
    %2014 = vmatprep.subr.mxu0 0.0
    %2015 = vmatpush1.msra.mxu0 0.0
    %2016 = vmatprep.subr.mxu0 0.0
    %2017 = vmatpush1.msra.mxu0 0.0
    %2018 = vmatprep.subr.mxu0 0.0
    %2019 = vmatpush1.msra.mxu0 0.0
    %2020 = vmatprep.subr.mxu0 0.0
    %2021 = vmatpush1.msra.mxu0 0.0
    %2022 = vmatprep.subr.mxu0 0.0
    %2023 = vmatpush1.msra.mxu0 0.0
    %2024 = vmatprep.subr.mxu0 0.0
    %2025 = vmatpush1.msra.mxu0 0.0
    %2026 = vmatprep.subr.mxu0 0.0
    %2027 = vmatpush1.msra.mxu0 0.0
    %2028 = vmatprep.subr.mxu0 0.0
    %2029 = vmatpush1.msra.mxu0 0.0
    %2030 = vmatprep.subr.mxu0 0.0
    %2031 = vmatpush1.msra.mxu0 0.0
    %2032 = vmatprep.subr.mxu0 0.0
    %2033 = vmatpush1.msra.mxu0 0.0
    %2034 = vmatprep.subr.mxu0 0.0
    %2035 = vmatpush1.msra.mxu0 0.0
    %2036 = vmatprep.subr.mxu0 0.0
    %2037 = vmatpush1.msra.mxu0 0.0
    %2038 = vmatprep.subr.mxu0 0.0
    %2039 = vmatpush1.msra.mxu0 0.0
    %2040 = vmatprep.subr.mxu0 0.0
    %2041 = vmatpush1.msra.mxu0 0.0
    %2042 = vmatprep.mubr.f32.mxu0 0.0
    %2043 = vmatmul.mubr.f32.gmra.mrb[0].mxu0 %v1976
    %v2044 = vpop.f32.mrb[0].mxu0
    %v2045 = vadd.f32 %v458, %v2044
    %v2046 = vpop.f32.mrb[0].mxu0
    %2047 = vdwg.mxu0
    %v2048 = vmul.f32 %v2045, 0.909
    %v2049 = vmul.f32 %v2045, 0.5
    %v2050 = vtanh.pop %v2049
    %v2051 = vmul.f32 %v2050, 0.5
    %v2052 = vadd.f32 %v2051, 0.5
    %v2053 = vmul.f32 %v2048, %v2052
    %v2055 = vsel %vm460, %v2053, 0
    %2057 = vmatprep.subr.mxu0 0.0
    %2058 = vmatpush1.msra.mxu0 %v54
    %2059 = vmatprep.subr.mxu0 0.0
    %2060 = vmatpush1.msra.mxu0 %v55
    %2061 = vmatprep.subr.mxu0 0.0
    %2062 = vmatpush1.msra.mxu0 %v56
    %2063 = vmatprep.subr.mxu0 0.0
    %2064 = vmatpush1.msra.mxu0 %v57
    %2065 = vmatprep.subr.mxu0 0.0
    %2066 = vmatpush1.msra.mxu0 %v58
    %2067 = vmatprep.subr.mxu0 0.0
    %2068 = vmatpush1.msra.mxu0 %v59
    %2069 = vmatprep.subr.mxu0 0.0
    %2070 = vmatpush1.msra.mxu0 %v60
    %2071 = vmatprep.subr.mxu0 0.0
    %2072 = vmatpush1.msra.mxu0 %v61
    %2073 = vmatprep.subr.mxu0 0.0
    %2074 = vmatpush1.msra.mxu0 0.0
    %2075 = vmatprep.subr.mxu0 0.0
    %2076 = vmatpush1.msra.mxu0 0.0
    %2077 = vmatprep.subr.mxu0 0.0
    %2078 = vmatpush1.msra.mxu0 0.0
    %2079 = vmatprep.subr.mxu0 0.0
    %2080 = vmatpush1.msra.mxu0 0.0
    %2081 = vmatprep.subr.mxu0 0.0
    %2082 = vmatpush1.msra.mxu0 0.0
    %2083 = vmatprep.subr.mxu0 0.0
    %2084 = vmatpush1.msra.mxu0 0.0
    %2085 = vmatprep.subr.mxu0 0.0
    %2086 = vmatpush1.msra.mxu0 0.0
    %2087 = vmatprep.subr.mxu0 0.0
    %2088 = vmatpush1.msra.mxu0 0.0
    %2089 = vmatprep.subr.mxu0 0.0
    %2090 = vmatpush1.msra.mxu0 0.0
    %2091 = vmatprep.subr.mxu0 0.0
    %2092 = vmatpush1.msra.mxu0 0.0
    %2093 = vmatprep.subr.mxu0 0.0
    %2094 = vmatpush1.msra.mxu0 0.0
    %2095 = vmatprep.subr.mxu0 0.0
    %2096 = vmatpush1.msra.mxu0 0.0
    %2097 = vmatprep.subr.mxu0 0.0
    %2098 = vmatpush1.msra.mxu0 0.0
    %2099 = vmatprep.subr.mxu0 0.0
    %2100 = vmatpush1.msra.mxu0 0.0
    %2101 = vmatprep.subr.mxu0 0.0
    %2102 = vmatpush1.msra.mxu0 0.0
    %2103 = vmatprep.subr.mxu0 0.0
    %2104 = vmatpush1.msra.mxu0 0.0
    %2105 = vmatprep.subr.mxu0 0.0
    %2106 = vmatpush1.msra.mxu0 0.0
    %2107 = vmatprep.subr.mxu0 0.0
    %2108 = vmatpush1.msra.mxu0 0.0
    %2109 = vmatprep.subr.mxu0 0.0
    %2110 = vmatpush1.msra.mxu0 0.0
    %2111 = vmatprep.subr.mxu0 0.0
    %2112 = vmatpush1.msra.mxu0 0.0
    %2113 = vmatprep.subr.mxu0 0.0
    %2114 = vmatpush1.msra.mxu0 0.0
    %2115 = vmatprep.subr.mxu0 0.0
    %2116 = vmatpush1.msra.mxu0 0.0
    %2117 = vmatprep.subr.mxu0 0.0
    %2118 = vmatpush1.msra.mxu0 0.0
    %2119 = vmatprep.subr.mxu0 0.0
    %2120 = vmatpush1.msra.mxu0 0.0
    %2121 = vmatprep.mubr.f32.mxu0 0.0
    %2122 = vmatmul.mubr.f32.gmra.mrb[0].mxu0 %v2055
    %v2123 = vpop.f32.mrb[0].mxu0
    %v2124 = vadd.f32 %v544, %v2123
    %v2125 = vpop.f32.mrb[0].mxu0
    %2126 = vdwg.mxu0
    %v2127 = vtanh.pop %v2124
    %v2128 = vmul.f32 %v2127, %v1863
    %2130 = vrot.lane.b32.xlu0 %v2128, 112
    %v2131 = vpop.permute.xlu0 %2130
    %v2133 = vadd.f32 %v2128, %v2131
    %2134 = vrot.lane.b32.xlu0 %v2128, 96
    %v2135 = vpop.permute.xlu0 %2134
    %v2137 = vadd.f32 %v2133, %v2135
    %2138 = vrot.lane.b32.xlu0 %v2128, 80
    %v2139 = vpop.permute.xlu0 %2138
    %v2141 = vadd.f32 %v2137, %v2139
    %s2142 = smul.f32 %s1856, 0.5
    %v2143 = vadd.f32 %v1826, %v2127
    %v2144 = vstv %s2142
    %v2145 = vmul.f32 %v2144, %v2143
    %v2146 = vadd.f32 %v1852, %v2145
    %v2147 = vadd.f32 %v1878, %v2141
    %v2148 = vmul.f32 %v2147, 0.5
    %2150 = vrot.lane.b32.xlu0 %v2148, 112
    %v2151 = vpop.permute.xlu0 %2150
    %v2153 = vadd.f32 %v2146, %v2151
    %s2154 = scalar_lea.vmem %s11, 40
    %2155 = vst.msk [vmem:[%s2154] sm:$0xff] %vm373, %v2153
    %s2156 = sadd.s32 %s339, 6
    %s2157 = sld [smem:[#allocation6 + %s2156]]
    %s2158 = scalar_lea.vmem %s1, 48
    %v2159 = vld [vmem:[%s2158] sm:$0xff]
    %s2160 = scalar_lea.vmem %s2, 6
    %v2161 = vld [vmem:[%s2160] sm:$0x1]
    %2163 = vrot.lane.b32.xlu0 %v2159, 16
    %v2164 = vpop.permute.xlu0 %2163
    %v2166 = vmul.f32 %v2127, %v2164
    %2168 = vrot.lane.b32.xlu0 %v2166, 112
    %v2169 = vpop.permute.xlu0 %2168
    %v2171 = vadd.f32 %v2166, %v2169
    %2172 = vrot.lane.b32.xlu0 %v2166, 96
    %v2173 = vpop.permute.xlu0 %2172
    %v2175 = vadd.f32 %v2171, %v2173
    %2176 = vrot.lane.b32.xlu0 %v2166, 80
    %v2177 = vpop.permute.xlu0 %2176
    %v2179 = vadd.f32 %v2175, %v2177
    %v2180 = vmul.f32 %v2153, 2.0
    %v2181 = vsub.f32 %v2180, %v1888
    %v2182 = vstv %s2157
    %v2183 = vmul.f32 %v2127, %v2182
    %v2184 = vadd.f32 %v2181, %v2183
    %2186 = vrot.lane.b32.xlu0 %v2179, 112
    %v2187 = vpop.permute.xlu0 %2186
    %v2189 = vadd.f32 %v2184, %v2187
    %v2191 = vlaneseq
    %v2192 = vshrl.u32 %v2191, 7
    %v2193 = vsub.s32 0, %v2192
    %v2194 = vrot.slane %v2161, %v2193
    %v2197 = vsel %vm373, %v2189, 0
    %2199 = vmatprep.subr.mxu0 0.0
    %2200 = vmatpush1.msra.mxu0 %v51
    %2201 = vmatprep.subr.mxu0 0.0
    %2202 = vmatpush1.msra.mxu0 %v52
    %2203 = vmatprep.subr.mxu0 0.0
    %2204 = vmatpush1.msra.mxu0 0.0
    %2205 = vmatprep.subr.mxu0 0.0
    %2206 = vmatpush1.msra.mxu0 0.0
    %2207 = vmatprep.subr.mxu0 0.0
    %2208 = vmatpush1.msra.mxu0 0.0
    %2209 = vmatprep.subr.mxu0 0.0
    %2210 = vmatpush1.msra.mxu0 0.0
    %2211 = vmatprep.subr.mxu0 0.0
    %2212 = vmatpush1.msra.mxu0 0.0
    %2213 = vmatprep.subr.mxu0 0.0
    %2214 = vmatpush1.msra.mxu0 0.0
    %2215 = vmatprep.subr.mxu0 0.0
    %2216 = vmatpush1.msra.mxu0 0.0
    %2217 = vmatprep.subr.mxu0 0.0
    %2218 = vmatpush1.msra.mxu0 0.0
    %2219 = vmatprep.subr.mxu0 0.0
    %2220 = vmatpush1.msra.mxu0 0.0
    %2221 = vmatprep.subr.mxu0 0.0
    %2222 = vmatpush1.msra.mxu0 0.0
    %2223 = vmatprep.subr.mxu0 0.0
    %2224 = vmatpush1.msra.mxu0 0.0
    %2225 = vmatprep.subr.mxu0 0.0
    %2226 = vmatpush1.msra.mxu0 0.0
    %2227 = vmatprep.subr.mxu0 0.0
    %2228 = vmatpush1.msra.mxu0 0.0
    %2229 = vmatprep.subr.mxu0 0.0
    %2230 = vmatpush1.msra.mxu0 0.0
    %2231 = vmatprep.subr.mxu0 0.0
    %2232 = vmatpush1.msra.mxu0 0.0
    %2233 = vmatprep.subr.mxu0 0.0
    %2234 = vmatpush1.msra.mxu0 0.0
    %2235 = vmatprep.subr.mxu0 0.0
    %2236 = vmatpush1.msra.mxu0 0.0
    %2237 = vmatprep.subr.mxu0 0.0
    %2238 = vmatpush1.msra.mxu0 0.0
    %2239 = vmatprep.subr.mxu0 0.0
    %2240 = vmatpush1.msra.mxu0 0.0
    %2241 = vmatprep.subr.mxu0 0.0
    %2242 = vmatpush1.msra.mxu0 0.0
    %2243 = vmatprep.subr.mxu0 0.0
    %2244 = vmatpush1.msra.mxu0 0.0
    %2245 = vmatprep.subr.mxu0 0.0
    %2246 = vmatpush1.msra.mxu0 0.0
    %2247 = vmatprep.subr.mxu0 0.0
    %2248 = vmatpush1.msra.mxu0 0.0
    %2249 = vmatprep.subr.mxu0 0.0
    %2250 = vmatpush1.msra.mxu0 0.0
    %2251 = vmatprep.subr.mxu0 0.0
    %2252 = vmatpush1.msra.mxu0 0.0
    %2253 = vmatprep.subr.mxu0 0.0
    %2254 = vmatpush1.msra.mxu0 0.0
    %2255 = vmatprep.subr.mxu0 0.0
    %2256 = vmatpush1.msra.mxu0 0.0
    %2257 = vmatprep.subr.mxu0 0.0
    %2258 = vmatpush1.msra.mxu0 0.0
    %2259 = vmatprep.subr.mxu0 0.0
    %2260 = vmatpush1.msra.mxu0 0.0
    %2261 = vmatprep.subr.mxu0 0.0
    %2262 = vmatpush1.msra.mxu0 0.0
    %2263 = vmatprep.mubr.f32.mxu0 0.0
    %2264 = vmatmul.mubr.f32.gmra.mrb[0].mxu0 %v2197
    %v2265 = vpop.f32.mrb[0].mxu0
    %v2266 = vadd.f32 %v2194, %v2265
    %v2267 = vpop.f32.mrb[0].mxu0
    %2268 = vdwg.mxu0
    %v2269 = vadd.f32 %v2266, %v53
    %v2270 = vmul.f32 %v2269, 0.909
    %v2271 = vmul.f32 %v2269, 0.5
    %v2272 = vtanh.pop %v2271
    %v2273 = vmul.f32 %v2272, 0.5
    %v2274 = vadd.f32 %v2273, 0.5
    %v2275 = vmul.f32 %v2270, %v2274
    %v2277 = vsel %vm460, %v2275, 0
    %2279 = vmatprep.subr.mxu0 0.0
    %2280 = vmatpush1.msra.mxu0 %v63
    %2281 = vmatprep.subr.mxu0 0.0
    %2282 = vmatpush1.msra.mxu0 %v64
    %2283 = vmatprep.subr.mxu0 0.0
    %2284 = vmatpush1.msra.mxu0 %v65
    %2285 = vmatprep.subr.mxu0 0.0
    %2286 = vmatpush1.msra.mxu0 %v66
    %2287 = vmatprep.subr.mxu0 0.0
    %2288 = vmatpush1.msra.mxu0 %v67
    %2289 = vmatprep.subr.mxu0 0.0
    %2290 = vmatpush1.msra.mxu0 %v68
    %2291 = vmatprep.subr.mxu0 0.0
    %2292 = vmatpush1.msra.mxu0 %v69
    %2293 = vmatprep.subr.mxu0 0.0
    %2294 = vmatpush1.msra.mxu0 %v70
    %2295 = vmatprep.subr.mxu0 0.0
    %2296 = vmatpush1.msra.mxu0 0.0
    %2297 = vmatprep.subr.mxu0 0.0
    %2298 = vmatpush1.msra.mxu0 0.0
    %2299 = vmatprep.subr.mxu0 0.0
    %2300 = vmatpush1.msra.mxu0 0.0
    %2301 = vmatprep.subr.mxu0 0.0
    %2302 = vmatpush1.msra.mxu0 0.0
    %2303 = vmatprep.subr.mxu0 0.0
    %2304 = vmatpush1.msra.mxu0 0.0
    %2305 = vmatprep.subr.mxu0 0.0
    %2306 = vmatpush1.msra.mxu0 0.0
    %2307 = vmatprep.subr.mxu0 0.0
    %2308 = vmatpush1.msra.mxu0 0.0
    %2309 = vmatprep.subr.mxu0 0.0
    %2310 = vmatpush1.msra.mxu0 0.0
    %2311 = vmatprep.subr.mxu0 0.0
    %2312 = vmatpush1.msra.mxu0 0.0
    %2313 = vmatprep.subr.mxu0 0.0
    %2314 = vmatpush1.msra.mxu0 0.0
    %2315 = vmatprep.subr.mxu0 0.0
    %2316 = vmatpush1.msra.mxu0 0.0
    %2317 = vmatprep.subr.mxu0 0.0
    %2318 = vmatpush1.msra.mxu0 0.0
    %2319 = vmatprep.subr.mxu0 0.0
    %2320 = vmatpush1.msra.mxu0 0.0
    %2321 = vmatprep.subr.mxu0 0.0
    %2322 = vmatpush1.msra.mxu0 0.0
    %2323 = vmatprep.subr.mxu0 0.0
    %2324 = vmatpush1.msra.mxu0 0.0
    %2325 = vmatprep.subr.mxu0 0.0
    %2326 = vmatpush1.msra.mxu0 0.0
    %2327 = vmatprep.subr.mxu0 0.0
    %2328 = vmatpush1.msra.mxu0 0.0
    %2329 = vmatprep.subr.mxu0 0.0
    %2330 = vmatpush1.msra.mxu0 0.0
    %2331 = vmatprep.subr.mxu0 0.0
    %2332 = vmatpush1.msra.mxu0 0.0
    %2333 = vmatprep.subr.mxu0 0.0
    %2334 = vmatpush1.msra.mxu0 0.0
    %2335 = vmatprep.subr.mxu0 0.0
    %2336 = vmatpush1.msra.mxu0 0.0
    %2337 = vmatprep.subr.mxu0 0.0
    %2338 = vmatpush1.msra.mxu0 0.0
    %2339 = vmatprep.subr.mxu0 0.0
    %2340 = vmatpush1.msra.mxu0 0.0
    %2341 = vmatprep.subr.mxu0 0.0
    %2342 = vmatpush1.msra.mxu0 0.0
    %2343 = vmatprep.mubr.f32.mxu0 0.0
    %2344 = vmatmul.mubr.f32.gmra.mrb[0].mxu0 %v2277
    %v2345 = vpop.f32.mrb[0].mxu0
    %v2346 = vadd.f32 %v458, %v2345
    %v2347 = vpop.f32.mrb[0].mxu0
    %2348 = vdwg.mxu0
    %v2349 = vmul.f32 %v2346, 0.909
    %v2350 = vmul.f32 %v2346, 0.5
    %v2351 = vtanh.pop %v2350
    %v2352 = vmul.f32 %v2351, 0.5
    %v2353 = vadd.f32 %v2352, 0.5
    %v2354 = vmul.f32 %v2349, %v2353
    %v2356 = vsel %vm460, %v2354, 0
    %2358 = vmatprep.subr.mxu0 0.0
    %2359 = vmatpush1.msra.mxu0 %v54
    %2360 = vmatprep.subr.mxu0 0.0
    %2361 = vmatpush1.msra.mxu0 %v55
    %2362 = vmatprep.subr.mxu0 0.0
    %2363 = vmatpush1.msra.mxu0 %v56
    %2364 = vmatprep.subr.mxu0 0.0
    %2365 = vmatpush1.msra.mxu0 %v57
    %2366 = vmatprep.subr.mxu0 0.0
    %2367 = vmatpush1.msra.mxu0 %v58
    %2368 = vmatprep.subr.mxu0 0.0
    %2369 = vmatpush1.msra.mxu0 %v59
    %2370 = vmatprep.subr.mxu0 0.0
    %2371 = vmatpush1.msra.mxu0 %v60
    %2372 = vmatprep.subr.mxu0 0.0
    %2373 = vmatpush1.msra.mxu0 %v61
    %2374 = vmatprep.subr.mxu0 0.0
    %2375 = vmatpush1.msra.mxu0 0.0
    %2376 = vmatprep.subr.mxu0 0.0
    %2377 = vmatpush1.msra.mxu0 0.0
    %2378 = vmatprep.subr.mxu0 0.0
    %2379 = vmatpush1.msra.mxu0 0.0
    %2380 = vmatprep.subr.mxu0 0.0
    %2381 = vmatpush1.msra.mxu0 0.0
    %2382 = vmatprep.subr.mxu0 0.0
    %2383 = vmatpush1.msra.mxu0 0.0
    %2384 = vmatprep.subr.mxu0 0.0
    %2385 = vmatpush1.msra.mxu0 0.0
    %2386 = vmatprep.subr.mxu0 0.0
    %2387 = vmatpush1.msra.mxu0 0.0
    %2388 = vmatprep.subr.mxu0 0.0
    %2389 = vmatpush1.msra.mxu0 0.0
    %2390 = vmatprep.subr.mxu0 0.0
    %2391 = vmatpush1.msra.mxu0 0.0
    %2392 = vmatprep.subr.mxu0 0.0
    %2393 = vmatpush1.msra.mxu0 0.0
    %2394 = vmatprep.subr.mxu0 0.0
    %2395 = vmatpush1.msra.mxu0 0.0
    %2396 = vmatprep.subr.mxu0 0.0
    %2397 = vmatpush1.msra.mxu0 0.0
    %2398 = vmatprep.subr.mxu0 0.0
    %2399 = vmatpush1.msra.mxu0 0.0
    %2400 = vmatprep.subr.mxu0 0.0
    %2401 = vmatpush1.msra.mxu0 0.0
    %2402 = vmatprep.subr.mxu0 0.0
    %2403 = vmatpush1.msra.mxu0 0.0
    %2404 = vmatprep.subr.mxu0 0.0
    %2405 = vmatpush1.msra.mxu0 0.0
    %2406 = vmatprep.subr.mxu0 0.0
    %2407 = vmatpush1.msra.mxu0 0.0
    %2408 = vmatprep.subr.mxu0 0.0
    %2409 = vmatpush1.msra.mxu0 0.0
    %2410 = vmatprep.subr.mxu0 0.0
    %2411 = vmatpush1.msra.mxu0 0.0
    %2412 = vmatprep.subr.mxu0 0.0
    %2413 = vmatpush1.msra.mxu0 0.0
    %2414 = vmatprep.subr.mxu0 0.0
    %2415 = vmatpush1.msra.mxu0 0.0
    %2416 = vmatprep.subr.mxu0 0.0
    %2417 = vmatpush1.msra.mxu0 0.0
    %2418 = vmatprep.subr.mxu0 0.0
    %2419 = vmatpush1.msra.mxu0 0.0
    %2420 = vmatprep.subr.mxu0 0.0
    %2421 = vmatpush1.msra.mxu0 0.0
    %2422 = vmatprep.mubr.f32.mxu0 0.0
    %2423 = vmatmul.mubr.f32.gmra.mrb[0].mxu0 %v2356
    %v2424 = vpop.f32.mrb[0].mxu0
    %v2425 = vadd.f32 %v544, %v2424
    %v2426 = vpop.f32.mrb[0].mxu0
    %2427 = vdwg.mxu0
    %v2428 = vtanh.pop %v2425
    %v2429 = vmul.f32 %v2428, %v2164
    %2431 = vrot.lane.b32.xlu0 %v2429, 112
    %v2432 = vpop.permute.xlu0 %2431
    %v2434 = vadd.f32 %v2429, %v2432
    %2435 = vrot.lane.b32.xlu0 %v2429, 96
    %v2436 = vpop.permute.xlu0 %2435
    %v2438 = vadd.f32 %v2434, %v2436
    %2439 = vrot.lane.b32.xlu0 %v2429, 80
    %v2440 = vpop.permute.xlu0 %2439
    %v2442 = vadd.f32 %v2438, %v2440
    %s2443 = smul.f32 %s2157, 0.5
    %v2444 = vadd.f32 %v2127, %v2428
    %v2445 = vstv %s2443
    %v2446 = vmul.f32 %v2445, %v2444
    %v2447 = vadd.f32 %v2153, %v2446
    %v2448 = vadd.f32 %v2179, %v2442
    %v2449 = vmul.f32 %v2448, 0.5
    %2451 = vrot.lane.b32.xlu0 %v2449, 112
    %v2452 = vpop.permute.xlu0 %2451
    %v2454 = vadd.f32 %v2447, %v2452
    %s2455 = scalar_lea.vmem %s11, 48
    %2456 = vst.msk [vmem:[%s2455] sm:$0xff] %vm373, %v2454
    %s2457 = sadd.s32 %s339, 7
    %s2458 = sld [smem:[#allocation6 + %s2457]]
    %s2459 = scalar_lea.vmem %s1, 56
    %v2460 = vld [vmem:[%s2459] sm:$0xff]
    %s2461 = scalar_lea.vmem %s2, 7
    %v2462 = vld [vmem:[%s2461] sm:$0x1]
    %2464 = vrot.lane.b32.xlu0 %v2460, 16
    %v2465 = vpop.permute.xlu0 %2464
    %v2467 = vmul.f32 %v2428, %v2465
    %2469 = vrot.lane.b32.xlu0 %v2467, 112
    %v2470 = vpop.permute.xlu0 %2469
    %v2472 = vadd.f32 %v2467, %v2470
    %2473 = vrot.lane.b32.xlu0 %v2467, 96
    %v2474 = vpop.permute.xlu0 %2473
    %v2476 = vadd.f32 %v2472, %v2474
    %2477 = vrot.lane.b32.xlu0 %v2467, 80
    %v2478 = vpop.permute.xlu0 %2477
    %v2480 = vadd.f32 %v2476, %v2478
    %v2481 = vmul.f32 %v2454, 2.0
    %v2482 = vsub.f32 %v2481, %v2189
    %v2483 = vstv %s2458
    %v2484 = vmul.f32 %v2428, %v2483
    %v2485 = vadd.f32 %v2482, %v2484
    %2487 = vrot.lane.b32.xlu0 %v2480, 112
    %v2488 = vpop.permute.xlu0 %2487
    %v2490 = vadd.f32 %v2485, %v2488
    %v2492 = vlaneseq
    %v2493 = vshrl.u32 %v2492, 7
    %v2494 = vsub.s32 0, %v2493
    %v2495 = vrot.slane %v2462, %v2494
    %v2498 = vsel %vm373, %v2490, 0
    %2500 = vmatprep.subr.mxu0 0.0
    %2501 = vmatpush1.msra.mxu0 %v51
    %2502 = vmatprep.subr.mxu0 0.0
    %2503 = vmatpush1.msra.mxu0 %v52
    %2504 = vmatprep.subr.mxu0 0.0
    %2505 = vmatpush1.msra.mxu0 0.0
    %2506 = vmatprep.subr.mxu0 0.0
    %2507 = vmatpush1.msra.mxu0 0.0
    %2508 = vmatprep.subr.mxu0 0.0
    %2509 = vmatpush1.msra.mxu0 0.0
    %2510 = vmatprep.subr.mxu0 0.0
    %2511 = vmatpush1.msra.mxu0 0.0
    %2512 = vmatprep.subr.mxu0 0.0
    %2513 = vmatpush1.msra.mxu0 0.0
    %2514 = vmatprep.subr.mxu0 0.0
    %2515 = vmatpush1.msra.mxu0 0.0
    %2516 = vmatprep.subr.mxu0 0.0
    %2517 = vmatpush1.msra.mxu0 0.0
    %2518 = vmatprep.subr.mxu0 0.0
    %2519 = vmatpush1.msra.mxu0 0.0
    %2520 = vmatprep.subr.mxu0 0.0
    %2521 = vmatpush1.msra.mxu0 0.0
    %2522 = vmatprep.subr.mxu0 0.0
    %2523 = vmatpush1.msra.mxu0 0.0
    %2524 = vmatprep.subr.mxu0 0.0
    %2525 = vmatpush1.msra.mxu0 0.0
    %2526 = vmatprep.subr.mxu0 0.0
    %2527 = vmatpush1.msra.mxu0 0.0
    %2528 = vmatprep.subr.mxu0 0.0
    %2529 = vmatpush1.msra.mxu0 0.0
    %2530 = vmatprep.subr.mxu0 0.0
    %2531 = vmatpush1.msra.mxu0 0.0
    %2532 = vmatprep.subr.mxu0 0.0
    %2533 = vmatpush1.msra.mxu0 0.0
    %2534 = vmatprep.subr.mxu0 0.0
    %2535 = vmatpush1.msra.mxu0 0.0
    %2536 = vmatprep.subr.mxu0 0.0
    %2537 = vmatpush1.msra.mxu0 0.0
    %2538 = vmatprep.subr.mxu0 0.0
    %2539 = vmatpush1.msra.mxu0 0.0
    %2540 = vmatprep.subr.mxu0 0.0
    %2541 = vmatpush1.msra.mxu0 0.0
    %2542 = vmatprep.subr.mxu0 0.0
    %2543 = vmatpush1.msra.mxu0 0.0
    %2544 = vmatprep.subr.mxu0 0.0
    %2545 = vmatpush1.msra.mxu0 0.0
    %2546 = vmatprep.subr.mxu0 0.0
    %2547 = vmatpush1.msra.mxu0 0.0
    %2548 = vmatprep.subr.mxu0 0.0
    %2549 = vmatpush1.msra.mxu0 0.0
    %2550 = vmatprep.subr.mxu0 0.0
    %2551 = vmatpush1.msra.mxu0 0.0
    %2552 = vmatprep.subr.mxu0 0.0
    %2553 = vmatpush1.msra.mxu0 0.0
    %2554 = vmatprep.subr.mxu0 0.0
    %2555 = vmatpush1.msra.mxu0 0.0
    %2556 = vmatprep.subr.mxu0 0.0
    %2557 = vmatpush1.msra.mxu0 0.0
    %2558 = vmatprep.subr.mxu0 0.0
    %2559 = vmatpush1.msra.mxu0 0.0
    %2560 = vmatprep.subr.mxu0 0.0
    %2561 = vmatpush1.msra.mxu0 0.0
    %2562 = vmatprep.subr.mxu0 0.0
    %2563 = vmatpush1.msra.mxu0 0.0
    %2564 = vmatprep.mubr.f32.mxu0 0.0
    %2565 = vmatmul.mubr.f32.gmra.mrb[0].mxu0 %v2498
    %v2566 = vpop.f32.mrb[0].mxu0
    %v2567 = vadd.f32 %v2495, %v2566
    %v2568 = vpop.f32.mrb[0].mxu0
    %2569 = vdwg.mxu0
    %v2570 = vadd.f32 %v2567, %v53
    %v2571 = vmul.f32 %v2570, 0.909
    %v2572 = vmul.f32 %v2570, 0.5
    %v2573 = vtanh.pop %v2572
    %v2574 = vmul.f32 %v2573, 0.5
    %v2575 = vadd.f32 %v2574, 0.5
    %v2576 = vmul.f32 %v2571, %v2575
    %v2578 = vsel %vm460, %v2576, 0
    %2580 = vmatprep.subr.mxu0 0.0
    %2581 = vmatpush1.msra.mxu0 %v63
    %2582 = vmatprep.subr.mxu0 0.0
    %2583 = vmatpush1.msra.mxu0 %v64
    %2584 = vmatprep.subr.mxu0 0.0
    %2585 = vmatpush1.msra.mxu0 %v65
    %2586 = vmatprep.subr.mxu0 0.0
    %2587 = vmatpush1.msra.mxu0 %v66
    %2588 = vmatprep.subr.mxu0 0.0
    %2589 = vmatpush1.msra.mxu0 %v67
    %2590 = vmatprep.subr.mxu0 0.0
    %2591 = vmatpush1.msra.mxu0 %v68
    %2592 = vmatprep.subr.mxu0 0.0
    %2593 = vmatpush1.msra.mxu0 %v69
    %2594 = vmatprep.subr.mxu0 0.0
    %2595 = vmatpush1.msra.mxu0 %v70
    %2596 = vmatprep.subr.mxu0 0.0
    %2597 = vmatpush1.msra.mxu0 0.0
    %2598 = vmatprep.subr.mxu0 0.0
    %2599 = vmatpush1.msra.mxu0 0.0
    %2600 = vmatprep.subr.mxu0 0.0
    %2601 = vmatpush1.msra.mxu0 0.0
    %2602 = vmatprep.subr.mxu0 0.0
    %2603 = vmatpush1.msra.mxu0 0.0
    %2604 = vmatprep.subr.mxu0 0.0
    %2605 = vmatpush1.msra.mxu0 0.0
    %2606 = vmatprep.subr.mxu0 0.0
    %2607 = vmatpush1.msra.mxu0 0.0
    %2608 = vmatprep.subr.mxu0 0.0
    %2609 = vmatpush1.msra.mxu0 0.0
    %2610 = vmatprep.subr.mxu0 0.0
    %2611 = vmatpush1.msra.mxu0 0.0
    %2612 = vmatprep.subr.mxu0 0.0
    %2613 = vmatpush1.msra.mxu0 0.0
    %2614 = vmatprep.subr.mxu0 0.0
    %2615 = vmatpush1.msra.mxu0 0.0
    %2616 = vmatprep.subr.mxu0 0.0
    %2617 = vmatpush1.msra.mxu0 0.0
    %2618 = vmatprep.subr.mxu0 0.0
    %2619 = vmatpush1.msra.mxu0 0.0
    %2620 = vmatprep.subr.mxu0 0.0
    %2621 = vmatpush1.msra.mxu0 0.0
    %2622 = vmatprep.subr.mxu0 0.0
    %2623 = vmatpush1.msra.mxu0 0.0
    %2624 = vmatprep.subr.mxu0 0.0
    %2625 = vmatpush1.msra.mxu0 0.0
    %2626 = vmatprep.subr.mxu0 0.0
    %2627 = vmatpush1.msra.mxu0 0.0
    %2628 = vmatprep.subr.mxu0 0.0
    %2629 = vmatpush1.msra.mxu0 0.0
    %2630 = vmatprep.subr.mxu0 0.0
    %2631 = vmatpush1.msra.mxu0 0.0
    %2632 = vmatprep.subr.mxu0 0.0
    %2633 = vmatpush1.msra.mxu0 0.0
    %2634 = vmatprep.subr.mxu0 0.0
    %2635 = vmatpush1.msra.mxu0 0.0
    %2636 = vmatprep.subr.mxu0 0.0
    %2637 = vmatpush1.msra.mxu0 0.0
    %2638 = vmatprep.subr.mxu0 0.0
    %2639 = vmatpush1.msra.mxu0 0.0
    %2640 = vmatprep.subr.mxu0 0.0
    %2641 = vmatpush1.msra.mxu0 0.0
    %2642 = vmatprep.subr.mxu0 0.0
    %2643 = vmatpush1.msra.mxu0 0.0
    %2644 = vmatprep.mubr.f32.mxu0 0.0
    %2645 = vmatmul.mubr.f32.gmra.mrb[0].mxu0 %v2578
    %v2646 = vpop.f32.mrb[0].mxu0
    %v2647 = vadd.f32 %v458, %v2646
    %v2648 = vpop.f32.mrb[0].mxu0
    %2649 = vdwg.mxu0
    %v2650 = vmul.f32 %v2647, 0.909
    %v2651 = vmul.f32 %v2647, 0.5
    %v2652 = vtanh.pop %v2651
    %v2653 = vmul.f32 %v2652, 0.5
    %v2654 = vadd.f32 %v2653, 0.5
    %v2655 = vmul.f32 %v2650, %v2654
    %v2657 = vsel %vm460, %v2655, 0
    %2659 = vmatprep.subr.mxu0 0.0
    %2660 = vmatpush1.msra.mxu0 %v54
    %2661 = vmatprep.subr.mxu0 0.0
    %2662 = vmatpush1.msra.mxu0 %v55
    %2663 = vmatprep.subr.mxu0 0.0
    %2664 = vmatpush1.msra.mxu0 %v56
    %2665 = vmatprep.subr.mxu0 0.0
    %2666 = vmatpush1.msra.mxu0 %v57
    %2667 = vmatprep.subr.mxu0 0.0
    %2668 = vmatpush1.msra.mxu0 %v58
    %2669 = vmatprep.subr.mxu0 0.0
    %2670 = vmatpush1.msra.mxu0 %v59
    %2671 = vmatprep.subr.mxu0 0.0
    %2672 = vmatpush1.msra.mxu0 %v60
    %2673 = vmatprep.subr.mxu0 0.0
    %2674 = vmatpush1.msra.mxu0 %v61
    %2675 = vmatprep.subr.mxu0 0.0
    %2676 = vmatpush1.msra.mxu0 0.0
    %2677 = vmatprep.subr.mxu0 0.0
    %2678 = vmatpush1.msra.mxu0 0.0
    %2679 = vmatprep.subr.mxu0 0.0
    %2680 = vmatpush1.msra.mxu0 0.0
    %2681 = vmatprep.subr.mxu0 0.0
    %2682 = vmatpush1.msra.mxu0 0.0
    %2683 = vmatprep.subr.mxu0 0.0
    %2684 = vmatpush1.msra.mxu0 0.0
    %2685 = vmatprep.subr.mxu0 0.0
    %2686 = vmatpush1.msra.mxu0 0.0
    %2687 = vmatprep.subr.mxu0 0.0
    %2688 = vmatpush1.msra.mxu0 0.0
    %2689 = vmatprep.subr.mxu0 0.0
    %2690 = vmatpush1.msra.mxu0 0.0
    %2691 = vmatprep.subr.mxu0 0.0
    %2692 = vmatpush1.msra.mxu0 0.0
    %2693 = vmatprep.subr.mxu0 0.0
    %2694 = vmatpush1.msra.mxu0 0.0
    %2695 = vmatprep.subr.mxu0 0.0
    %2696 = vmatpush1.msra.mxu0 0.0
    %2697 = vmatprep.subr.mxu0 0.0
    %2698 = vmatpush1.msra.mxu0 0.0
    %2699 = vmatprep.subr.mxu0 0.0
    %2700 = vmatpush1.msra.mxu0 0.0
    %2701 = vmatprep.subr.mxu0 0.0
    %2702 = vmatpush1.msra.mxu0 0.0
    %2703 = vmatprep.subr.mxu0 0.0
    %2704 = vmatpush1.msra.mxu0 0.0
    %2705 = vmatprep.subr.mxu0 0.0
    %2706 = vmatpush1.msra.mxu0 0.0
    %2707 = vmatprep.subr.mxu0 0.0
    %2708 = vmatpush1.msra.mxu0 0.0
    %2709 = vmatprep.subr.mxu0 0.0
    %2710 = vmatpush1.msra.mxu0 0.0
    %2711 = vmatprep.subr.mxu0 0.0
    %2712 = vmatpush1.msra.mxu0 0.0
    %2713 = vmatprep.subr.mxu0 0.0
    %2714 = vmatpush1.msra.mxu0 0.0
    %2715 = vmatprep.subr.mxu0 0.0
    %2716 = vmatpush1.msra.mxu0 0.0
    %2717 = vmatprep.subr.mxu0 0.0
    %2718 = vmatpush1.msra.mxu0 0.0
    %2719 = vmatprep.subr.mxu0 0.0
    %2720 = vmatpush1.msra.mxu0 0.0
    %2721 = vmatprep.subr.mxu0 0.0
    %2722 = vmatpush1.msra.mxu0 0.0
    %2723 = vmatprep.mubr.f32.mxu0 0.0
    %2724 = vmatmul.mubr.f32.gmra.mrb[0].mxu0 %v2657
    %v2725 = vpop.f32.mrb[0].mxu0
    %v2726 = vadd.f32 %v544, %v2725
    %v2727 = vpop.f32.mrb[0].mxu0
    %2728 = vdwg.mxu0
    %v2729 = vtanh.pop %v2726
    %v2730 = vmul.f32 %v2729, %v2465
    %2732 = vrot.lane.b32.xlu0 %v2730, 112
    %v2733 = vpop.permute.xlu0 %2732
    %v2735 = vadd.f32 %v2730, %v2733
    %2736 = vrot.lane.b32.xlu0 %v2730, 96
    %v2737 = vpop.permute.xlu0 %2736
    %v2739 = vadd.f32 %v2735, %v2737
    %2740 = vrot.lane.b32.xlu0 %v2730, 80
    %v2741 = vpop.permute.xlu0 %2740
    %v2743 = vadd.f32 %v2739, %v2741
    %s2744 = smul.f32 %s2458, 0.5
    %v2745 = vadd.f32 %v2428, %v2729
    %v2746 = vstv %s2744
    %v2747 = vmul.f32 %v2746, %v2745
    %v2748 = vadd.f32 %v2454, %v2747
    %v2749 = vadd.f32 %v2480, %v2743
    %v2750 = vmul.f32 %v2749, 0.5
    %2752 = vrot.lane.b32.xlu0 %v2750, 112
    %v2753 = vpop.permute.xlu0 %2752
    %v2755 = vadd.f32 %v2748, %v2753
    %s2756 = scalar_lea.vmem %s11, 56
    %2757 = vst.msk [vmem:[%s2756] sm:$0xff] %vm373, %v2755
    %2758 = vst.msk [vmem:[#allocation2] sm:$0xff] %vm373, %v2755
    %2759 = vst.msk [vmem:[#allocation3] sm:$0xff] %vm373, %v2490
    %2760 = vst.msk [vmem:[#allocation4] sm:$0xff] %vm373, %v2729
    %2762 = vrot.lane.b32.xlu0 %v2729, 112
    %v2763 = vpop.permute.xlu0 %2762
    %2765 = vst.msk [vmem:[#allocation5] sm:$0xff] %vm460, %v2763
    // Predicated region
    $region54: #{forward.1} parent=1 // pred_check
      _
    $region55: #{forward.1} parent=1 // pred_check_branch
      %2767 = sbr.rel (0) target = $region57
    $region56: #{forward.1} parent=1 // pred_region
      _
    $region57: #{forward.1} parent=1 // pred_fallthru
      _
    // Predicated region
    $region58: #{forward.1} parent=1 // pred_check
      _
    $region59: #{forward.1} parent=1 // pred_check_branch
      %2769 = sbr.rel (0) target = $region61
    $region60: #{forward.1} parent=1 // pred_region
      _
    $region61: #{forward.1} parent=1 // pred_fallthru
      _
    %2770 = vsyncpa [#allocation7], 1

</llo_original>
